<compile_context>
chip_gen: v5e
topology: v5e:2x2
jax: 0.10.0
libtpu: 0.0.40
codegen_flags: <defaults>
</compile_context>

<pallas_src>
import functools

import jax
import jax.numpy as jnp
from jax.experimental import pallas as pl
from jax.experimental.pallas import tpu as pltpu


# ----------------------------------------------------------------------------
# Fused BasicBlock kernel.  Canonical working layout: (N*H, W*C) fp32 slabs.
# ----------------------------------------------------------------------------
def _basic_block_kernel(x_ref, w1k_ref, g1_ref, b1_ref, w2k_ref, g2_ref, b2_ref,
                        mlp1_ref, mlp2_ref, w7k_ref, b7_ref,
                        out_ref, pad_ref, pad7_ref, *, N, H, W, C):
    NH = N * H
    WC = W * C

    # ---- helpers on the lane-dense (rows, W*C) layout ------------------------
    # lane index = w*C + c  (w = width position, c = channel)
    def group_mean_w(v):                        # (R, W*C) -> (R, C): mean over the W lane-groups
        acc = v[:, 0:C]
        for w in range(1, W):
            acc = acc + v[:, w * C:(w + 1) * C]
        return acc * (1.0 / W)

    def group_max_w(v):                         # (R, W*C) -> (R, C)
        acc = v[:, 0:C]
        for w in range(1, W):
            acc = jnp.maximum(acc, v[:, w * C:(w + 1) * C])
        return acc

    def lane_bcast_w(v):                        # (R, C) -> (R, W*C): same value for every w group
        return jnp.concatenate([v] * W, axis=-1)

    # ---- load input once (reused for the residual); zero the conv halo ------
    x0 = x_ref[...]                                              # (NH, WC) fp32
    pad_ref[...] = jnp.zeros(pad_ref.shape, pad_ref.dtype)       # border rows stay 0

    def conv3x3_bn(wk_ref, gamma_ref, beta_ref, relu):
        # 3 width-banded bf16 matmuls (one per kh tap row), fp32 accumulation.
        acc = jnp.dot(pad_ref[:, 0:H, :].reshape(NH, WC), wk_ref[0],
                      preferred_element_type=jnp.float32)
        acc = acc + jnp.dot(pad_ref[:, 1:H + 1, :].reshape(NH, WC), wk_ref[1],
                            preferred_element_type=jnp.float32)
        acc = acc + jnp.dot(pad_ref[:, 2:H + 2, :].reshape(NH, WC), wk_ref[2],
                            preferred_element_type=jnp.float32)
        # BatchNorm2d (training-mode batch stats), two-pass variance, fp32.
        mean_rows = jnp.mean(acc, axis=0, keepdims=True)         # (1, WC)
        mean_b = lane_bcast_w(group_mean_w(mean_rows))           # per-channel mean, (1, WC)
        cen = acc - mean_b
        var_rows = jnp.mean(cen * cen, axis=0, keepdims=True)
        var_b = lane_bcast_w(group_mean_w(var_rows))             # per-channel var >= 0
        y = cen * jax.lax.rsqrt(var_b + 1e-5) * gamma_ref[...] + beta_ref[...]
        if relu:
            y = jnp.maximum(y, 0.0)
        return y                                                 # (NH, WC) fp32

    # ---- conv1 + bn1 + relu --------------------------------------------------
    pad_ref[:, 1:H + 1, :] = x0.reshape(N, H, WC).astype(jnp.bfloat16)
    y1 = conv3x3_bn(w1k_ref, g1_ref, b1_ref, relu=True)

    # ---- conv2 + bn2 ---------------------------------------------------------
    pad_ref[:, 1:H + 1, :] = y1.reshape(N, H, WC).astype(jnp.bfloat16)
    y2 = conv3x3_bn(w2k_ref, g2_ref, b2_ref, relu=False)

    # ---- CBAM channel attention ----------------------------------------------
    y3 = y2.reshape(N, H, WC)                                    # leading-dim split (layout no-op)
    avg_c = group_mean_w(jnp.mean(y3, axis=1))                   # (N, C) adaptive avg pool
    max_c = group_max_w(jnp.max(y3, axis=1))                     # (N, C) adaptive max pool
    pooled = jnp.concatenate([avg_c, max_c], axis=0)             # (2N, C): fused MLP operand
    h1 = jnp.maximum(
        jnp.dot(pooled.astype(jnp.bfloat16), mlp1_ref[...],
                preferred_element_type=jnp.float32), 0.0)
    z = jnp.dot(h1.astype(jnp.bfloat16), mlp2_ref[...],
                preferred_element_type=jnp.float32)              # (2N, C)
    w_c = jax.nn.sigmoid(z[:N, :] + z[N:, :])                    # (N, C) channel gate
    xc3 = y3 * lane_bcast_w(w_c)[:, None, :]                     # (N, H, WC) fp32
    xc2 = xc3.reshape(NH, WC)

    # ---- CBAM spatial attention: 7x7 conv (pad=3) as 7 width-banded matmuls --
    spa, spm = [], []
    for w in range(W):
        g = xc2[:, w * C:(w + 1) * C]
        spa.append(jnp.mean(g, axis=-1, keepdims=True))          # channel-mean map column
        spm.append(jnp.max(g, axis=-1, keepdims=True))           # channel-max  map column
    maps = jnp.concatenate(spa + spm, axis=-1)                   # (NH, 2W): [mean | max]
    pad7_ref[...] = jnp.zeros(pad7_ref.shape, pad7_ref.dtype)
    pad7_ref[:, 3:H + 3, :] = maps.reshape(N, H, 2 * W).astype(jnp.bfloat16)
    logit = jnp.dot(pad7_ref[:, 0:H, :].reshape(NH, 2 * W), w7k_ref[0],
                    preferred_element_type=jnp.float32)
    for kh in range(1, 7):
        logit = logit + jnp.dot(
            pad7_ref[:, kh:kh + H, :].reshape(NH, 2 * W), w7k_ref[kh],
            preferred_element_type=jnp.float32)
    w_s = jax.nn.sigmoid(logit + b7_ref[0])                      # (NH, W) spatial gate

    # ---- spatial gate + residual + final ReLU (all fp32, lane-dense store) ---
    ws_wc = jnp.concatenate(
        [jnp.broadcast_to(w_s[:, w:w + 1], (NH, C)) for w in range(W)], axis=-1)
    out_ref[...] = jnp.maximum(xc2 * ws_wc + x0, 0.0)


# ----------------------------------------------------------------------------
# Wrapper-side weight preprocessing (pure weight math, done once per call).
# ----------------------------------------------------------------------------
def _conv3x3_band_mats(w_hwio, W, C):
    """(3,3,Cin,Cout) -> (3, W*Cin, W*Cout) bf16.

    mats[kh][wi*C+ci, wo*C+co] = w[kh, wi-wo+1, ci, co] (0 outside the band),
    so the 3x3 conv with padding=1 becomes 3 matmuls over height-shifted rows.
    """
    wi = jnp.arange(W)[:, None, None, None]
    ci = jnp.arange(C)[None, :, None, None]
    wo = jnp.arange(W)[None, None, :, None]
    co = jnp.arange(C)[None, None, None, :]
    kw = wi - wo + 1
    valid = (kw >= 0) & (kw <= 2)
    kwc = jnp.clip(kw, 0, 2)
    mats = []
    for kh in range(3):
        taps = w_hwio[kh][kwc, ci, co]                 # (W, C, W, C)
        taps = jnp.where(valid, taps, 0.0)
        mats.append(taps.reshape(W * C, W * C))
    return jnp.stack(mats, axis=0).astype(jnp.bfloat16)


def _conv7x7_band_mats(w7, W):
    """(2,7,7) -> (7, 2W, W) bf16; input-channel order [mean map, max map]."""
    wp = jnp.arange(W)[:, None]
    wo = jnp.arange(W)[None, :]
    kw = wp - wo + 3
    valid = (kw >= 0) & (kw <= 6)
    kwc = jnp.clip(kw, 0, 6)
    mats = []
    for kh in range(7):
        blocks = [jnp.where(valid, w7[ch, kh][kwc], 0.0) for ch in range(2)]
        mats.append(jnp.concatenate(blocks, axis=0))   # (2W, W)
    return jnp.stack(mats, axis=0).astype(jnp.bfloat16)


# ----------------------------------------------------------------------------
# BasicBlock forward (stride=1, downsample=None):
#   out = relu( CBAM( bn2(conv2( relu(bn1(conv1(x))) )) ) + x )
# ----------------------------------------------------------------------------
def basic_block_forward(x_nchw, params):
    x = jnp.transpose(x_nchw, (0, 2, 3, 1)).astype(jnp.float32)   # NCHW -> NHWC
    N, H, W, C = x.shape
    x2d = x.reshape(N * H, W * C)                                 # lane-dense working layout

    w1k = _conv3x3_band_mats(params["w1"], W, C)
    w2k = _conv3x3_band_mats(params["w2"], W, C)
    w7k = _conv7x7_band_mats(params["w7"], W)

    def tile_c(v):                                                # (C,) -> (1, W*C), lane = w*C + c
        return jnp.tile(v.astype(jnp.float32), W)[None, :]

    kernel = functools.partial(_basic_block_kernel, N=N, H=H, W=W, C=C)
    vmem = pl.BlockSpec(memory_space=pltpu.MemorySpace.VMEM)
    smem = pl.BlockSpec(memory_space=pltpu.MemorySpace.SMEM)

    out2d = pl.pallas_call(
        kernel,
        out_shape=jax.ShapeDtypeStruct((N * H, W * C), jnp.float32),
        in_specs=[vmem,                 # x (N*H, W*C) fp32
                  vmem, vmem, vmem,     # conv1 band mats (bf16), bn1 gamma, bn1 beta
                  vmem, vmem, vmem,     # conv2 band mats (bf16), bn2 gamma, bn2 beta
                  vmem, vmem,           # CBAM MLP weights (C,Cr), (Cr,C) bf16
                  vmem,                 # CBAM 7x7 band mats (7, 2W, W) bf16
                  smem],                # CBAM 7x7 conv bias (scalar)
        out_specs=vmem,
        scratch_shapes=[pltpu.VMEM((N, H + 2, W * C), jnp.bfloat16),   # 3x3 conv height halo
                        pltpu.VMEM((N, H + 6, 2 * W), jnp.bfloat16)],  # 7x7 conv height halo
    )(x2d, w1k, tile_c(params["g1"]), tile_c(params["b1"]),
      w2k, tile_c(params["g2"]), tile_c(params["b2"]),
      params["mlp1"].astype(jnp.bfloat16), params["mlp2"].astype(jnp.bfloat16),
      w7k, params["b7"].astype(jnp.float32))

    return jnp.transpose(out2d.reshape(N, H, W, C), (0, 3, 1, 2))   # NHWC -> NCHW


if __name__ == "__main__":
    # BasicBlock(inplanes=32, planes=32, stride=1, downsample=None); CBAM reduction=16.
    N, C, H, W = 2, 32, 8, 8
    reduction = 16
    Cr = C // reduction

    key = jax.random.PRNGKey(0)
    ks = jax.random.split(key, 6)

    x = jax.random.normal(ks[0], (N, C, H, W), jnp.float32)

    params = {
        # conv3x3 weights stored HWIO (equivalent to torch OIHW up to layout; synthetic init)
        "w1": jax.random.normal(ks[1], (3, 3, C, C), jnp.float32) * 0.1,
        "g1": jnp.ones((C,), jnp.float32),       # bn1 gamma (torch default 1)
        "b1": jnp.zeros((C,), jnp.float32),      # bn1 beta  (torch default 0)
        "w2": jax.random.normal(ks[2], (3, 3, C, C), jnp.float32) * 0.1,
        "g2": jnp.ones((C,), jnp.float32),
        "b2": jnp.zeros((C,), jnp.float32),
        # CBAM MLP 1x1 convs as matrices (no bias, matching nn.Conv2d(bias=False))
        "mlp1": jax.random.normal(ks[3], (C, Cr), jnp.float32) * 0.2,
        "mlp2": jax.random.normal(ks[4], (Cr, C), jnp.float32) * 0.2,
        # CBAM 7x7 conv weight (in_ch=2 [mean,max], 7, 7) + bias
        "w7": jax.random.normal(ks[5], (2, 7, 7), jnp.float32) * 0.05,
        "b7": jnp.zeros((1,), jnp.float32),
    }

    fwd = jax.jit(basic_block_forward)
    out = fwd(x, params)
    jax.block_until_ready(out)
    assert out.shape == (N, C, H, W)
    assert bool(jnp.all(jnp.isfinite(out)))
    print("KERNEL_OK")
</pallas_src>

<mosaic_0001>
module attributes {stable_mosaic.version = 11 : i64} {
  func.func @_basic_block_kernel(%arg0: memref<16x256xf32, #tpu.memory_space<vmem>>, %arg1: memref<3x256x256xbf16, #tpu.memory_space<vmem>>, %arg2: memref<1x256xf32, #tpu.memory_space<vmem>>, %arg3: memref<1x256xf32, #tpu.memory_space<vmem>>, %arg4: memref<3x256x256xbf16, #tpu.memory_space<vmem>>, %arg5: memref<1x256xf32, #tpu.memory_space<vmem>>, %arg6: memref<1x256xf32, #tpu.memory_space<vmem>>, %arg7: memref<32x2xbf16, #tpu.memory_space<vmem>>, %arg8: memref<2x32xbf16, #tpu.memory_space<vmem>>, %arg9: memref<7x16x8xbf16, #tpu.memory_space<vmem>>, %arg10: memref<1xf32, #tpu.memory_space<smem>>, %arg11: memref<16x256xf32, #tpu.memory_space<vmem>>, %arg12: memref<2x10x256xbf16, #tpu.memory_space<vmem>>, %arg13: memref<2x14x16xbf16, #tpu.memory_space<vmem>>) attributes {dimension_semantics = [], scalar_prefetch = 0 : i64, scratch_operands = 2 : i64, tpu.core_type = #tpu.core_type<tc>} {
    %c0 = arith.constant 0 : index
    %c0_0 = arith.constant 0 : index
    %0 = vector.load %arg0[%c0, %c0_0] : memref<16x256xf32, #tpu.memory_space<vmem>>, vector<16x256xf32>
    %cst = arith.constant 0.000000e+00 : bf16
    %1 = vector.broadcast %cst : bf16 to vector<2x10x256xbf16>
    %c0_1 = arith.constant 0 : index
    %c0_2 = arith.constant 0 : index
    %c0_3 = arith.constant 0 : index
    %2 = vector.load %arg12[%c0_1, %c0_2, %c0_3] : memref<2x10x256xbf16, #tpu.memory_space<vmem>>, vector<2x10x256xbf16>
    tpu.vector_store %arg12[%c0_1, %c0_2, %c0_3], %1 {strides = array<i32>} : memref<2x10x256xbf16, #tpu.memory_space<vmem>>, vector<2x10x256xbf16>,
    %3 = vector.shape_cast %0 : vector<16x256xf32> to vector<2x8x256xf32>
    %4 = arith.truncf %3 : vector<2x8x256xf32> to vector<2x8x256xbf16>
    %c0_4 = arith.constant 0 : index
    %c1 = arith.constant 1 : index
    %c0_5 = arith.constant 0 : index
    %5 = vector.load %arg12[%c0_4, %c1, %c0_5] : memref<2x10x256xbf16, #tpu.memory_space<vmem>>, vector<2x8x256xbf16>
    tpu.vector_store %arg12[%c0_4, %c1, %c0_5], %4 {strides = array<i32>} : memref<2x10x256xbf16, #tpu.memory_space<vmem>>, vector<2x8x256xbf16>,
    %c0_6 = arith.constant 0 : index
    %c0_7 = arith.constant 0 : index
    %c0_8 = arith.constant 0 : index
    %6 = vector.load %arg12[%c0_6, %c0_7, %c0_8] : memref<2x10x256xbf16, #tpu.memory_space<vmem>>, vector<2x8x256xbf16>
    %7 = vector.shape_cast %6 : vector<2x8x256xbf16> to vector<16x256xbf16>
    %c0_9 = arith.constant 0 : index
    %c0_10 = arith.constant 0 : index
    %c0_11 = arith.constant 0 : index
    %8 = vector.load %arg1[%c0_9, %c0_10, %c0_11] : memref<3x256x256xbf16, #tpu.memory_space<vmem>>, vector<1x256x256xbf16>
    %9 = vector.shape_cast %8 : vector<1x256x256xbf16> to vector<256x256xbf16>
    %cst_12 = arith.constant dense<0.000000e+00> : vector<16x256xf32>
    %10 = tpu.matmul %7, %9, %cst_12 {dimension_numbers = #tpu.dot_dimension_numbers<[1], [0], [0], [1], [0, 0, 1, 1], [], []>} : vector<16x256xbf16>, vector<256x256xbf16>, vector<16x256xf32> -> vector<16x256xf32>
    %c0_13 = arith.constant 0 : index
    %c1_14 = arith.constant 1 : index
    %c0_15 = arith.constant 0 : index
    %11 = vector.load %arg12[%c0_13, %c1_14, %c0_15] : memref<2x10x256xbf16, #tpu.memory_space<vmem>>, vector<2x8x256xbf16>
    %12 = vector.shape_cast %11 : vector<2x8x256xbf16> to vector<16x256xbf16>
    %c1_16 = arith.constant 1 : index
    %c0_17 = arith.constant 0 : index
    %c0_18 = arith.constant 0 : index
    %13 = vector.load %arg1[%c1_16, %c0_17, %c0_18] : memref<3x256x256xbf16, #tpu.memory_space<vmem>>, vector<1x256x256xbf16>
    %14 = vector.shape_cast %13 : vector<1x256x256xbf16> to vector<256x256xbf16>
    %cst_19 = arith.constant dense<0.000000e+00> : vector<16x256xf32>
    %15 = tpu.matmul %12, %14, %cst_19 {dimension_numbers = #tpu.dot_dimension_numbers<[1], [0], [0], [1], [0, 0, 1, 1], [], []>} : vector<16x256xbf16>, vector<256x256xbf16>, vector<16x256xf32> -> vector<16x256xf32>
    %16 = arith.addf %10, %15 : vector<16x256xf32>
    %c0_20 = arith.constant 0 : index
    %c2 = arith.constant 2 : index
    %c0_21 = arith.constant 0 : index
    %17 = vector.load %arg12[%c0_20, %c2, %c0_21] : memref<2x10x256xbf16, #tpu.memory_space<vmem>>, vector<2x8x256xbf16>
    %18 = vector.shape_cast %17 : vector<2x8x256xbf16> to vector<16x256xbf16>
    %c2_22 = arith.constant 2 : index
    %c0_23 = arith.constant 0 : index
    %c0_24 = arith.constant 0 : index
    %19 = vector.load %arg1[%c2_22, %c0_23, %c0_24] : memref<3x256x256xbf16, #tpu.memory_space<vmem>>, vector<1x256x256xbf16>
    %20 = vector.shape_cast %19 : vector<1x256x256xbf16> to vector<256x256xbf16>
    %cst_25 = arith.constant dense<0.000000e+00> : vector<16x256xf32>
    %21 = tpu.matmul %18, %20, %cst_25 {dimension_numbers = #tpu.dot_dimension_numbers<[1], [0], [0], [1], [0, 0, 1, 1], [], []>} : vector<16x256xbf16>, vector<256x256xbf16>, vector<16x256xf32> -> vector<16x256xf32>
    %22 = arith.addf %16, %21 : vector<16x256xf32>
    %cst_26 = arith.constant dense<0.000000e+00> : vector<256xf32>
    %23 = vector.multi_reduction <add>, %22, %cst_26 [0] : vector<16x256xf32> to vector<256xf32>
    %24 = vector.shape_cast %23 : vector<256xf32> to vector<1x256xf32>
    %cst_27 = arith.constant 1.600000e+01 : f32
    %25 = vector.broadcast %cst_27 : f32 to vector<1x256xf32>
    %26 = arith.divf %24, %25 : vector<1x256xf32>
    %27 = vector.extract_strided_slice %26 {offsets = [0, 0], sizes = [1, 32], strides = [1, 1]} : vector<1x256xf32> to vector<1x32xf32>
    %28 = vector.extract_strided_slice %26 {offsets = [0, 32], sizes = [1, 32], strides = [1, 1]} : vector<1x256xf32> to vector<1x32xf32>
    %29 = arith.addf %27, %28 : vector<1x32xf32>
    %30 = vector.extract_strided_slice %26 {offsets = [0, 64], sizes = [1, 32], strides = [1, 1]} : vector<1x256xf32> to vector<1x32xf32>
    %31 = arith.addf %29, %30 : vector<1x32xf32>
    %32 = vector.extract_strided_slice %26 {offsets = [0, 96], sizes = [1, 32], strides = [1, 1]} : vector<1x256xf32> to vector<1x32xf32>
    %33 = arith.addf %31, %32 : vector<1x32xf32>
    %34 = vector.extract_strided_slice %26 {offsets = [0, 128], sizes = [1, 32], strides = [1, 1]} : vector<1x256xf32> to vector<1x32xf32>
    %35 = arith.addf %33, %34 : vector<1x32xf32>
    %36 = vector.extract_strided_slice %26 {offsets = [0, 160], sizes = [1, 32], strides = [1, 1]} : vector<1x256xf32> to vector<1x32xf32>
    %37 = arith.addf %35, %36 : vector<1x32xf32>
    %38 = vector.extract_strided_slice %26 {offsets = [0, 192], sizes = [1, 32], strides = [1, 1]} : vector<1x256xf32> to vector<1x32xf32>
    %39 = arith.addf %37, %38 : vector<1x32xf32>
    %40 = vector.extract_strided_slice %26 {offsets = [0, 224], sizes = [1, 32], strides = [1, 1]} : vector<1x256xf32> to vector<1x32xf32>
    %41 = arith.addf %39, %40 : vector<1x32xf32>
    %cst_28 = arith.constant 1.250000e-01 : f32
    %42 = vector.broadcast %cst_28 : f32 to vector<1x32xf32>
    %43 = arith.mulf %41, %42 : vector<1x32xf32>
    %44 = tpu.concatenate %43, %43, %43, %43, %43, %43, %43, %43 in 1 : vector<1x32xf32>, vector<1x32xf32>, vector<1x32xf32>, vector<1x32xf32>, vector<1x32xf32>, vector<1x32xf32>, vector<1x32xf32>, vector<1x32xf32> -> vector<1x256xf32>
    %45 = vector.broadcast %44 : vector<1x256xf32> to vector<16x256xf32>
    %46 = arith.subf %22, %45 : vector<16x256xf32>
    %47 = arith.mulf %46, %46 : vector<16x256xf32>
    %cst_29 = arith.constant dense<0.000000e+00> : vector<256xf32>
    %48 = vector.multi_reduction <add>, %47, %cst_29 [0] : vector<16x256xf32> to vector<256xf32>
    %49 = vector.shape_cast %48 : vector<256xf32> to vector<1x256xf32>
    %cst_30 = arith.constant 1.600000e+01 : f32
    %50 = vector.broadcast %cst_30 : f32 to vector<1x256xf32>
    %51 = arith.divf %49, %50 : vector<1x256xf32>
    %52 = vector.extract_strided_slice %51 {offsets = [0, 0], sizes = [1, 32], strides = [1, 1]} : vector<1x256xf32> to vector<1x32xf32>
    %53 = vector.extract_strided_slice %51 {offsets = [0, 32], sizes = [1, 32], strides = [1, 1]} : vector<1x256xf32> to vector<1x32xf32>
    %54 = arith.addf %52, %53 : vector<1x32xf32>
    %55 = vector.extract_strided_slice %51 {offsets = [0, 64], sizes = [1, 32], strides = [1, 1]} : vector<1x256xf32> to vector<1x32xf32>
    %56 = arith.addf %54, %55 : vector<1x32xf32>
    %57 = vector.extract_strided_slice %51 {offsets = [0, 96], sizes = [1, 32], strides = [1, 1]} : vector<1x256xf32> to vector<1x32xf32>
    %58 = arith.addf %56, %57 : vector<1x32xf32>
    %59 = vector.extract_strided_slice %51 {offsets = [0, 128], sizes = [1, 32], strides = [1, 1]} : vector<1x256xf32> to vector<1x32xf32>
    %60 = arith.addf %58, %59 : vector<1x32xf32>
    %61 = vector.extract_strided_slice %51 {offsets = [0, 160], sizes = [1, 32], strides = [1, 1]} : vector<1x256xf32> to vector<1x32xf32>
    %62 = arith.addf %60, %61 : vector<1x32xf32>
    %63 = vector.extract_strided_slice %51 {offsets = [0, 192], sizes = [1, 32], strides = [1, 1]} : vector<1x256xf32> to vector<1x32xf32>
    %64 = arith.addf %62, %63 : vector<1x32xf32>
    %65 = vector.extract_strided_slice %51 {offsets = [0, 224], sizes = [1, 32], strides = [1, 1]} : vector<1x256xf32> to vector<1x32xf32>
    %66 = arith.addf %64, %65 : vector<1x32xf32>
    %cst_31 = arith.constant 1.250000e-01 : f32
    %67 = vector.broadcast %cst_31 : f32 to vector<1x32xf32>
    %68 = arith.mulf %66, %67 : vector<1x32xf32>
    %69 = tpu.concatenate %68, %68, %68, %68, %68, %68, %68, %68 in 1 : vector<1x32xf32>, vector<1x32xf32>, vector<1x32xf32>, vector<1x32xf32>, vector<1x32xf32>, vector<1x32xf32>, vector<1x32xf32>, vector<1x32xf32> -> vector<1x256xf32>
    %cst_32 = arith.constant 9.99999974E-6 : f32
    %70 = vector.broadcast %cst_32 : f32 to vector<1x256xf32>
    %71 = arith.addf %69, %70 : vector<1x256xf32>
    %72 = math.rsqrt %71 : vector<1x256xf32>
    %73 = vector.broadcast %72 : vector<1x256xf32> to vector<16x256xf32>
    %74 = arith.mulf %46, %73 : vector<16x256xf32>
    %c0_33 = arith.constant 0 : index
    %c0_34 = arith.constant 0 : index
    %75 = vector.load %arg2[%c0_33, %c0_34] : memref<1x256xf32, #tpu.memory_space<vmem>>, vector<1x256xf32>
    %76 = vector.broadcast %75 : vector<1x256xf32> to vector<16x256xf32>
    %77 = arith.mulf %74, %76 : vector<16x256xf32>
    %c0_35 = arith.constant 0 : index
    %c0_36 = arith.constant 0 : index
    %78 = vector.load %arg3[%c0_35, %c0_36] : memref<1x256xf32, #tpu.memory_space<vmem>>, vector<1x256xf32>
    %79 = vector.broadcast %78 : vector<1x256xf32> to vector<16x256xf32>
    %80 = arith.addf %77, %79 : vector<16x256xf32>
    %cst_37 = arith.constant 0.000000e+00 : f32
    %81 = vector.broadcast %cst_37 : f32 to vector<16x256xf32>
    %82 = arith.maximumf %80, %81 : vector<16x256xf32>
    %83 = vector.shape_cast %82 : vector<16x256xf32> to vector<2x8x256xf32>
    %84 = arith.truncf %83 : vector<2x8x256xf32> to vector<2x8x256xbf16>
    %c0_38 = arith.constant 0 : index
    %c1_39 = arith.constant 1 : index
    %c0_40 = arith.constant 0 : index
    %85 = vector.load %arg12[%c0_38, %c1_39, %c0_40] : memref<2x10x256xbf16, #tpu.memory_space<vmem>>, vector<2x8x256xbf16>
    tpu.vector_store %arg12[%c0_38, %c1_39, %c0_40], %84 {strides = array<i32>} : memref<2x10x256xbf16, #tpu.memory_space<vmem>>, vector<2x8x256xbf16>,
    %c0_41 = arith.constant 0 : index
    %c0_42 = arith.constant 0 : index
    %c0_43 = arith.constant 0 : index
    %86 = vector.load %arg12[%c0_41, %c0_42, %c0_43] : memref<2x10x256xbf16, #tpu.memory_space<vmem>>, vector<2x8x256xbf16>
    %87 = vector.shape_cast %86 : vector<2x8x256xbf16> to vector<16x256xbf16>
    %c0_44 = arith.constant 0 : index
    %c0_45 = arith.constant 0 : index
    %c0_46 = arith.constant 0 : index
    %88 = vector.load %arg4[%c0_44, %c0_45, %c0_46] : memref<3x256x256xbf16, #tpu.memory_space<vmem>>, vector<1x256x256xbf16>
    %89 = vector.shape_cast %88 : vector<1x256x256xbf16> to vector<256x256xbf16>
    %cst_47 = arith.constant dense<0.000000e+00> : vector<16x256xf32>
    %90 = tpu.matmul %87, %89, %cst_47 {dimension_numbers = #tpu.dot_dimension_numbers<[1], [0], [0], [1], [0, 0, 1, 1], [], []>} : vector<16x256xbf16>, vector<256x256xbf16>, vector<16x256xf32> -> vector<16x256xf32>
    %c0_48 = arith.constant 0 : index
    %c1_49 = arith.constant 1 : index
    %c0_50 = arith.constant 0 : index
    %91 = vector.load %arg12[%c0_48, %c1_49, %c0_50] : memref<2x10x256xbf16, #tpu.memory_space<vmem>>, vector<2x8x256xbf16>
    %92 = vector.shape_cast %91 : vector<2x8x256xbf16> to vector<16x256xbf16>
    %c1_51 = arith.constant 1 : index
    %c0_52 = arith.constant 0 : index
    %c0_53 = arith.constant 0 : index
    %93 = vector.load %arg4[%c1_51, %c0_52, %c0_53] : memref<3x256x256xbf16, #tpu.memory_space<vmem>>, vector<1x256x256xbf16>
    %94 = vector.shape_cast %93 : vector<1x256x256xbf16> to vector<256x256xbf16>
    %cst_54 = arith.constant dense<0.000000e+00> : vector<16x256xf32>
    %95 = tpu.matmul %92, %94, %cst_54 {dimension_numbers = #tpu.dot_dimension_numbers<[1], [0], [0], [1], [0, 0, 1, 1], [], []>} : vector<16x256xbf16>, vector<256x256xbf16>, vector<16x256xf32> -> vector<16x256xf32>
    %96 = arith.addf %90, %95 : vector<16x256xf32>
    %c0_55 = arith.constant 0 : index
    %c2_56 = arith.constant 2 : index
    %c0_57 = arith.constant 0 : index
    %97 = vector.load %arg12[%c0_55, %c2_56, %c0_57] : memref<2x10x256xbf16, #tpu.memory_space<vmem>>, vector<2x8x256xbf16>
    %98 = vector.shape_cast %97 : vector<2x8x256xbf16> to vector<16x256xbf16>
    %c2_58 = arith.constant 2 : index
    %c0_59 = arith.constant 0 : index
    %c0_60 = arith.constant 0 : index
    %99 = vector.load %arg4[%c2_58, %c0_59, %c0_60] : memref<3x256x256xbf16, #tpu.memory_space<vmem>>, vector<1x256x256xbf16>
    %100 = vector.shape_cast %99 : vector<1x256x256xbf16> to vector<256x256xbf16>
    %cst_61 = arith.constant dense<0.000000e+00> : vector<16x256xf32>
    %101 = tpu.matmul %98, %100, %cst_61 {dimension_numbers = #tpu.dot_dimension_numbers<[1], [0], [0], [1], [0, 0, 1, 1], [], []>} : vector<16x256xbf16>, vector<256x256xbf16>, vector<16x256xf32> -> vector<16x256xf32>
    %102 = arith.addf %96, %101 : vector<16x256xf32>
    %cst_62 = arith.constant dense<0.000000e+00> : vector<256xf32>
    %103 = vector.multi_reduction <add>, %102, %cst_62 [0] : vector<16x256xf32> to vector<256xf32>
    %104 = vector.shape_cast %103 : vector<256xf32> to vector<1x256xf32>
    %cst_63 = arith.constant 1.600000e+01 : f32
    %105 = vector.broadcast %cst_63 : f32 to vector<1x256xf32>
    %106 = arith.divf %104, %105 : vector<1x256xf32>
    %107 = vector.extract_strided_slice %106 {offsets = [0, 0], sizes = [1, 32], strides = [1, 1]} : vector<1x256xf32> to vector<1x32xf32>
    %108 = vector.extract_strided_slice %106 {offsets = [0, 32], sizes = [1, 32], strides = [1, 1]} : vector<1x256xf32> to vector<1x32xf32>
    %109 = arith.addf %107, %108 : vector<1x32xf32>
    %110 = vector.extract_strided_slice %106 {offsets = [0, 64], sizes = [1, 32], strides = [1, 1]} : vector<1x256xf32> to vector<1x32xf32>
    %111 = arith.addf %109, %110 : vector<1x32xf32>
    %112 = vector.extract_strided_slice %106 {offsets = [0, 96], sizes = [1, 32], strides = [1, 1]} : vector<1x256xf32> to vector<1x32xf32>
    %113 = arith.addf %111, %112 : vector<1x32xf32>
    %114 = vector.extract_strided_slice %106 {offsets = [0, 128], sizes = [1, 32], strides = [1, 1]} : vector<1x256xf32> to vector<1x32xf32>
    %115 = arith.addf %113, %114 : vector<1x32xf32>
    %116 = vector.extract_strided_slice %106 {offsets = [0, 160], sizes = [1, 32], strides = [1, 1]} : vector<1x256xf32> to vector<1x32xf32>
    %117 = arith.addf %115, %116 : vector<1x32xf32>
    %118 = vector.extract_strided_slice %106 {offsets = [0, 192], sizes = [1, 32], strides = [1, 1]} : vector<1x256xf32> to vector<1x32xf32>
    %119 = arith.addf %117, %118 : vector<1x32xf32>
    %120 = vector.extract_strided_slice %106 {offsets = [0, 224], sizes = [1, 32], strides = [1, 1]} : vector<1x256xf32> to vector<1x32xf32>
    %121 = arith.addf %119, %120 : vector<1x32xf32>
    %cst_64 = arith.constant 1.250000e-01 : f32
    %122 = vector.broadcast %cst_64 : f32 to vector<1x32xf32>
    %123 = arith.mulf %121, %122 : vector<1x32xf32>
    %124 = tpu.concatenate %123, %123, %123, %123, %123, %123, %123, %123 in 1 : vector<1x32xf32>, vector<1x32xf32>, vector<1x32xf32>, vector<1x32xf32>, vector<1x32xf32>, vector<1x32xf32>, vector<1x32xf32>, vector<1x32xf32> -> vector<1x256xf32>
    %125 = vector.broadcast %124 : vector<1x256xf32> to vector<16x256xf32>
    %126 = arith.subf %102, %125 : vector<16x256xf32>
    %127 = arith.mulf %126, %126 : vector<16x256xf32>
    %cst_65 = arith.constant dense<0.000000e+00> : vector<256xf32>
    %128 = vector.multi_reduction <add>, %127, %cst_65 [0] : vector<16x256xf32> to vector<256xf32>
    %129 = vector.shape_cast %128 : vector<256xf32> to vector<1x256xf32>
    %cst_66 = arith.constant 1.600000e+01 : f32
    %130 = vector.broadcast %cst_66 : f32 to vector<1x256xf32>
    %131 = arith.divf %129, %130 : vector<1x256xf32>
    %132 = vector.extract_strided_slice %131 {offsets = [0, 0], sizes = [1, 32], strides = [1, 1]} : vector<1x256xf32> to vector<1x32xf32>
    %133 = vector.extract_strided_slice %131 {offsets = [0, 32], sizes = [1, 32], strides = [1, 1]} : vector<1x256xf32> to vector<1x32xf32>
    %134 = arith.addf %132, %133 : vector<1x32xf32>
    %135 = vector.extract_strided_slice %131 {offsets = [0, 64], sizes = [1, 32], strides = [1, 1]} : vector<1x256xf32> to vector<1x32xf32>
    %136 = arith.addf %134, %135 : vector<1x32xf32>
    %137 = vector.extract_strided_slice %131 {offsets = [0, 96], sizes = [1, 32], strides = [1, 1]} : vector<1x256xf32> to vector<1x32xf32>
    %138 = arith.addf %136, %137 : vector<1x32xf32>
    %139 = vector.extract_strided_slice %131 {offsets = [0, 128], sizes = [1, 32], strides = [1, 1]} : vector<1x256xf32> to vector<1x32xf32>
    %140 = arith.addf %138, %139 : vector<1x32xf32>
    %141 = vector.extract_strided_slice %131 {offsets = [0, 160], sizes = [1, 32], strides = [1, 1]} : vector<1x256xf32> to vector<1x32xf32>
    %142 = arith.addf %140, %141 : vector<1x32xf32>
    %143 = vector.extract_strided_slice %131 {offsets = [0, 192], sizes = [1, 32], strides = [1, 1]} : vector<1x256xf32> to vector<1x32xf32>
    %144 = arith.addf %142, %143 : vector<1x32xf32>
    %145 = vector.extract_strided_slice %131 {offsets = [0, 224], sizes = [1, 32], strides = [1, 1]} : vector<1x256xf32> to vector<1x32xf32>
    %146 = arith.addf %144, %145 : vector<1x32xf32>
    %cst_67 = arith.constant 1.250000e-01 : f32
    %147 = vector.broadcast %cst_67 : f32 to vector<1x32xf32>
    %148 = arith.mulf %146, %147 : vector<1x32xf32>
    %149 = tpu.concatenate %148, %148, %148, %148, %148, %148, %148, %148 in 1 : vector<1x32xf32>, vector<1x32xf32>, vector<1x32xf32>, vector<1x32xf32>, vector<1x32xf32>, vector<1x32xf32>, vector<1x32xf32>, vector<1x32xf32> -> vector<1x256xf32>
    %cst_68 = arith.constant 9.99999974E-6 : f32
    %150 = vector.broadcast %cst_68 : f32 to vector<1x256xf32>
    %151 = arith.addf %149, %150 : vector<1x256xf32>
    %152 = math.rsqrt %151 : vector<1x256xf32>
    %153 = vector.broadcast %152 : vector<1x256xf32> to vector<16x256xf32>
    %154 = arith.mulf %126, %153 : vector<16x256xf32>
    %c0_69 = arith.constant 0 : index
    %c0_70 = arith.constant 0 : index
    %155 = vector.load %arg5[%c0_69, %c0_70] : memref<1x256xf32, #tpu.memory_space<vmem>>, vector<1x256xf32>
    %156 = vector.broadcast %155 : vector<1x256xf32> to vector<16x256xf32>
    %157 = arith.mulf %154, %156 : vector<16x256xf32>
    %c0_71 = arith.constant 0 : index
    %c0_72 = arith.constant 0 : index
    %158 = vector.load %arg6[%c0_71, %c0_72] : memref<1x256xf32, #tpu.memory_space<vmem>>, vector<1x256xf32>
    %159 = vector.broadcast %158 : vector<1x256xf32> to vector<16x256xf32>
    %160 = arith.addf %157, %159 : vector<16x256xf32>
    %161 = vector.shape_cast %160 : vector<16x256xf32> to vector<2x8x256xf32>
    %cst_73 = arith.constant dense<0.000000e+00> : vector<2x256xf32>
    %162 = vector.multi_reduction <add>, %161, %cst_73 [1] : vector<2x8x256xf32> to vector<2x256xf32>
    %cst_74 = arith.constant 8.000000e+00 : f32
    %163 = vector.broadcast %cst_74 : f32 to vector<2x256xf32>
    %164 = arith.divf %162, %163 : vector<2x256xf32>
    %165 = vector.extract_strided_slice %164 {offsets = [0, 0], sizes = [2, 32], strides = [1, 1]} : vector<2x256xf32> to vector<2x32xf32>
    %166 = vector.extract_strided_slice %164 {offsets = [0, 32], sizes = [2, 32], strides = [1, 1]} : vector<2x256xf32> to vector<2x32xf32>
    %167 = arith.addf %165, %166 : vector<2x32xf32>
    %168 = vector.extract_strided_slice %164 {offsets = [0, 64], sizes = [2, 32], strides = [1, 1]} : vector<2x256xf32> to vector<2x32xf32>
    %169 = arith.addf %167, %168 : vector<2x32xf32>
    %170 = vector.extract_strided_slice %164 {offsets = [0, 96], sizes = [2, 32], strides = [1, 1]} : vector<2x256xf32> to vector<2x32xf32>
    %171 = arith.addf %169, %170 : vector<2x32xf32>
    %172 = vector.extract_strided_slice %164 {offsets = [0, 128], sizes = [2, 32], strides = [1, 1]} : vector<2x256xf32> to vector<2x32xf32>
    %173 = arith.addf %171, %172 : vector<2x32xf32>
    %174 = vector.extract_strided_slice %164 {offsets = [0, 160], sizes = [2, 32], strides = [1, 1]} : vector<2x256xf32> to vector<2x32xf32>
    %175 = arith.addf %173, %174 : vector<2x32xf32>
    %176 = vector.extract_strided_slice %164 {offsets = [0, 192], sizes = [2, 32], strides = [1, 1]} : vector<2x256xf32> to vector<2x32xf32>
    %177 = arith.addf %175, %176 : vector<2x32xf32>
    %178 = vector.extract_strided_slice %164 {offsets = [0, 224], sizes = [2, 32], strides = [1, 1]} : vector<2x256xf32> to vector<2x32xf32>
    %179 = arith.addf %177, %178 : vector<2x32xf32>
    %cst_75 = arith.constant 1.250000e-01 : f32
    %180 = vector.broadcast %cst_75 : f32 to vector<2x32xf32>
    %181 = arith.mulf %179, %180 : vector<2x32xf32>
    %cst_76 = arith.constant dense<0xFF800000> : vector<2x256xf32>
    %182 = vector.multi_reduction <maximumf>, %161, %cst_76 [1] : vector<2x8x256xf32> to vector<2x256xf32>
    %183 = vector.extract_strided_slice %182 {offsets = [0, 0], sizes = [2, 32], strides = [1, 1]} : vector<2x256xf32> to vector<2x32xf32>
    %184 = vector.extract_strided_slice %182 {offsets = [0, 32], sizes = [2, 32], strides = [1, 1]} : vector<2x256xf32> to vector<2x32xf32>
    %185 = arith.maximumf %183, %184 : vector<2x32xf32>
    %186 = vector.extract_strided_slice %182 {offsets = [0, 64], sizes = [2, 32], strides = [1, 1]} : vector<2x256xf32> to vector<2x32xf32>
    %187 = arith.maximumf %185, %186 : vector<2x32xf32>
    %188 = vector.extract_strided_slice %182 {offsets = [0, 96], sizes = [2, 32], strides = [1, 1]} : vector<2x256xf32> to vector<2x32xf32>
    %189 = arith.maximumf %187, %188 : vector<2x32xf32>
    %190 = vector.extract_strided_slice %182 {offsets = [0, 128], sizes = [2, 32], strides = [1, 1]} : vector<2x256xf32> to vector<2x32xf32>
    %191 = arith.maximumf %189, %190 : vector<2x32xf32>
    %192 = vector.extract_strided_slice %182 {offsets = [0, 160], sizes = [2, 32], strides = [1, 1]} : vector<2x256xf32> to vector<2x32xf32>
    %193 = arith.maximumf %191, %192 : vector<2x32xf32>
    %194 = vector.extract_strided_slice %182 {offsets = [0, 192], sizes = [2, 32], strides = [1, 1]} : vector<2x256xf32> to vector<2x32xf32>
    %195 = arith.maximumf %193, %194 : vector<2x32xf32>
    %196 = vector.extract_strided_slice %182 {offsets = [0, 224], sizes = [2, 32], strides = [1, 1]} : vector<2x256xf32> to vector<2x32xf32>
    %197 = arith.maximumf %195, %196 : vector<2x32xf32>
    %198 = tpu.concatenate %181, %197 in 0 : vector<2x32xf32>, vector<2x32xf32> -> vector<4x32xf32>
    %199 = arith.truncf %198 : vector<4x32xf32> to vector<4x32xbf16>
    %c0_77 = arith.constant 0 : index
    %c0_78 = arith.constant 0 : index
    %200 = vector.load %arg7[%c0_77, %c0_78] : memref<32x2xbf16, #tpu.memory_space<vmem>>, vector<32x2xbf16>
    %cst_79 = arith.constant dense<0.000000e+00> : vector<4x2xf32>
    %201 = tpu.matmul %199, %200, %cst_79 {dimension_numbers = #tpu.dot_dimension_numbers<[1], [0], [0], [1], [0, 0, 1, 1], [], []>} : vector<4x32xbf16>, vector<32x2xbf16>, vector<4x2xf32> -> vector<4x2xf32>
    %cst_80 = arith.constant 0.000000e+00 : f32
    %202 = vector.broadcast %cst_80 : f32 to vector<4x2xf32>
    %203 = arith.maximumf %201, %202 : vector<4x2xf32>
    %204 = arith.truncf %203 : vector<4x2xf32> to vector<4x2xbf16>
    %c0_81 = arith.constant 0 : index
    %c0_82 = arith.constant 0 : index
    %205 = vector.load %arg8[%c0_81, %c0_82] : memref<2x32xbf16, #tpu.memory_space<vmem>>, vector<2x32xbf16>
    %cst_83 = arith.constant dense<0.000000e+00> : vector<4x32xf32>
    %206 = tpu.matmul %204, %205, %cst_83 {dimension_numbers = #tpu.dot_dimension_numbers<[1], [0], [0], [1], [0, 0, 1, 1], [], []>} : vector<4x2xbf16>, vector<2x32xbf16>, vector<4x32xf32> -> vector<4x32xf32>
    %207 = vector.extract_strided_slice %206 {offsets = [0, 0], sizes = [2, 32], strides = [1, 1]} : vector<4x32xf32> to vector<2x32xf32>
    %208 = vector.extract_strided_slice %206 {offsets = [2, 0], sizes = [2, 32], strides = [1, 1]} : vector<4x32xf32> to vector<2x32xf32>
    %209 = arith.addf %207, %208 : vector<2x32xf32>
    %210 = arith.negf %209 : vector<2x32xf32>
    %211 = math.exp %210 : vector<2x32xf32>
    %cst_84 = arith.constant 1.000000e+00 : f32
    %212 = vector.broadcast %cst_84 : f32 to vector<2x32xf32>
    %213 = arith.addf %212, %211 : vector<2x32xf32>
    %214 = arith.divf %212, %213 : vector<2x32xf32>
    %215 = tpu.concatenate %214, %214, %214, %214, %214, %214, %214, %214 in 1 : vector<2x32xf32>, vector<2x32xf32>, vector<2x32xf32>, vector<2x32xf32>, vector<2x32xf32>, vector<2x32xf32>, vector<2x32xf32>, vector<2x32xf32> -> vector<2x256xf32>
    %216 = vector.shape_cast %215 : vector<2x256xf32> to vector<2x1x256xf32>
    %217 = vector.broadcast %216 : vector<2x1x256xf32> to vector<2x8x256xf32>
    %218 = arith.mulf %161, %217 : vector<2x8x256xf32>
    %219 = vector.shape_cast %218 : vector<2x8x256xf32> to vector<16x256xf32>
    %220 = vector.extract_strided_slice %219 {offsets = [0, 0], sizes = [16, 32], strides = [1, 1]} : vector<16x256xf32> to vector<16x32xf32>
    %cst_85 = arith.constant dense<0.000000e+00> : vector<16xf32>
    %221 = vector.multi_reduction <add>, %220, %cst_85 [1] : vector<16x32xf32> to vector<16xf32>
    %222 = vector.shape_cast %221 : vector<16xf32> to vector<16x1xf32>
    %cst_86 = arith.constant 3.200000e+01 : f32
    %223 = vector.broadcast %cst_86 : f32 to vector<16x1xf32>
    %224 = arith.divf %222, %223 : vector<16x1xf32>
    %cst_87 = arith.constant dense<0xFF800000> : vector<16xf32>
    %225 = vector.multi_reduction <maximumf>, %220, %cst_87 [1] : vector<16x32xf32> to vector<16xf32>
    %226 = vector.shape_cast %225 : vector<16xf32> to vector<16x1xf32>
    %227 = vector.extract_strided_slice %219 {offsets = [0, 32], sizes = [16, 32], strides = [1, 1]} : vector<16x256xf32> to vector<16x32xf32>
    %cst_88 = arith.constant dense<0.000000e+00> : vector<16xf32>
    %228 = vector.multi_reduction <add>, %227, %cst_88 [1] : vector<16x32xf32> to vector<16xf32>
    %229 = vector.shape_cast %228 : vector<16xf32> to vector<16x1xf32>
    %cst_89 = arith.constant 3.200000e+01 : f32
    %230 = vector.broadcast %cst_89 : f32 to vector<16x1xf32>
    %231 = arith.divf %229, %230 : vector<16x1xf32>
    %cst_90 = arith.constant dense<0xFF800000> : vector<16xf32>
    %232 = vector.multi_reduction <maximumf>, %227, %cst_90 [1] : vector<16x32xf32> to vector<16xf32>
    %233 = vector.shape_cast %232 : vector<16xf32> to vector<16x1xf32>
    %234 = vector.extract_strided_slice %219 {offsets = [0, 64], sizes = [16, 32], strides = [1, 1]} : vector<16x256xf32> to vector<16x32xf32>
    %cst_91 = arith.constant dense<0.000000e+00> : vector<16xf32>
    %235 = vector.multi_reduction <add>, %234, %cst_91 [1] : vector<16x32xf32> to vector<16xf32>
    %236 = vector.shape_cast %235 : vector<16xf32> to vector<16x1xf32>
    %cst_92 = arith.constant 3.200000e+01 : f32
    %237 = vector.broadcast %cst_92 : f32 to vector<16x1xf32>
    %238 = arith.divf %236, %237 : vector<16x1xf32>
    %cst_93 = arith.constant dense<0xFF800000> : vector<16xf32>
    %239 = vector.multi_reduction <maximumf>, %234, %cst_93 [1] : vector<16x32xf32> to vector<16xf32>
    %240 = vector.shape_cast %239 : vector<16xf32> to vector<16x1xf32>
    %241 = vector.extract_strided_slice %219 {offsets = [0, 96], sizes = [16, 32], strides = [1, 1]} : vector<16x256xf32> to vector<16x32xf32>
    %cst_94 = arith.constant dense<0.000000e+00> : vector<16xf32>
    %242 = vector.multi_reduction <add>, %241, %cst_94 [1] : vector<16x32xf32> to vector<16xf32>
    %243 = vector.shape_cast %242 : vector<16xf32> to vector<16x1xf32>
    %cst_95 = arith.constant 3.200000e+01 : f32
    %244 = vector.broadcast %cst_95 : f32 to vector<16x1xf32>
    %245 = arith.divf %243, %244 : vector<16x1xf32>
    %cst_96 = arith.constant dense<0xFF800000> : vector<16xf32>
    %246 = vector.multi_reduction <maximumf>, %241, %cst_96 [1] : vector<16x32xf32> to vector<16xf32>
    %247 = vector.shape_cast %246 : vector<16xf32> to vector<16x1xf32>
    %248 = vector.extract_strided_slice %219 {offsets = [0, 128], sizes = [16, 32], strides = [1, 1]} : vector<16x256xf32> to vector<16x32xf32>
    %cst_97 = arith.constant dense<0.000000e+00> : vector<16xf32>
    %249 = vector.multi_reduction <add>, %248, %cst_97 [1] : vector<16x32xf32> to vector<16xf32>
    %250 = vector.shape_cast %249 : vector<16xf32> to vector<16x1xf32>
    %cst_98 = arith.constant 3.200000e+01 : f32
    %251 = vector.broadcast %cst_98 : f32 to vector<16x1xf32>
    %252 = arith.divf %250, %251 : vector<16x1xf32>
    %cst_99 = arith.constant dense<0xFF800000> : vector<16xf32>
    %253 = vector.multi_reduction <maximumf>, %248, %cst_99 [1] : vector<16x32xf32> to vector<16xf32>
    %254 = vector.shape_cast %253 : vector<16xf32> to vector<16x1xf32>
    %255 = vector.extract_strided_slice %219 {offsets = [0, 160], sizes = [16, 32], strides = [1, 1]} : vector<16x256xf32> to vector<16x32xf32>
    %cst_100 = arith.constant dense<0.000000e+00> : vector<16xf32>
    %256 = vector.multi_reduction <add>, %255, %cst_100 [1] : vector<16x32xf32> to vector<16xf32>
    %257 = vector.shape_cast %256 : vector<16xf32> to vector<16x1xf32>
    %cst_101 = arith.constant 3.200000e+01 : f32
    %258 = vector.broadcast %cst_101 : f32 to vector<16x1xf32>
    %259 = arith.divf %257, %258 : vector<16x1xf32>
    %cst_102 = arith.constant dense<0xFF800000> : vector<16xf32>
    %260 = vector.multi_reduction <maximumf>, %255, %cst_102 [1] : vector<16x32xf32> to vector<16xf32>
    %261 = vector.shape_cast %260 : vector<16xf32> to vector<16x1xf32>
    %262 = vector.extract_strided_slice %219 {offsets = [0, 192], sizes = [16, 32], strides = [1, 1]} : vector<16x256xf32> to vector<16x32xf32>
    %cst_103 = arith.constant dense<0.000000e+00> : vector<16xf32>
    %263 = vector.multi_reduction <add>, %262, %cst_103 [1] : vector<16x32xf32> to vector<16xf32>
    %264 = vector.shape_cast %263 : vector<16xf32> to vector<16x1xf32>
    %cst_104 = arith.constant 3.200000e+01 : f32
    %265 = vector.broadcast %cst_104 : f32 to vector<16x1xf32>
    %266 = arith.divf %264, %265 : vector<16x1xf32>
    %cst_105 = arith.constant dense<0xFF800000> : vector<16xf32>
    %267 = vector.multi_reduction <maximumf>, %262, %cst_105 [1] : vector<16x32xf32> to vector<16xf32>
    %268 = vector.shape_cast %267 : vector<16xf32> to vector<16x1xf32>
    %269 = vector.extract_strided_slice %219 {offsets = [0, 224], sizes = [16, 32], strides = [1, 1]} : vector<16x256xf32> to vector<16x32xf32>
    %cst_106 = arith.constant dense<0.000000e+00> : vector<16xf32>
    %270 = vector.multi_reduction <add>, %269, %cst_106 [1] : vector<16x32xf32> to vector<16xf32>
    %271 = vector.shape_cast %270 : vector<16xf32> to vector<16x1xf32>
    %cst_107 = arith.constant 3.200000e+01 : f32
    %272 = vector.broadcast %cst_107 : f32 to vector<16x1xf32>
    %273 = arith.divf %271, %272 : vector<16x1xf32>
    %cst_108 = arith.constant dense<0xFF800000> : vector<16xf32>
    %274 = vector.multi_reduction <maximumf>, %269, %cst_108 [1] : vector<16x32xf32> to vector<16xf32>
    %275 = vector.shape_cast %274 : vector<16xf32> to vector<16x1xf32>
    %276 = tpu.concatenate %224, %231, %238, %245, %252, %259, %266, %273, %226, %233, %240, %247, %254, %261, %268, %275 in 1 : vector<16x1xf32>, vector<16x1xf32>, vector<16x1xf32>, vector<16x1xf32>, vector<16x1xf32>, vector<16x1xf32>, vector<16x1xf32>, vector<16x1xf32>, vector<16x1xf32>, vector<16x1xf32>, vector<16x1xf32>, vector<16x1xf32>, vector<16x1xf32>, vector<16x1xf32>, vector<16x1xf32>, vector<16x1xf32> -> vector<16x16xf32>
    %cst_109 = arith.constant 0.000000e+00 : bf16
    %277 = vector.broadcast %cst_109 : bf16 to vector<2x14x16xbf16>
    %c0_110 = arith.constant 0 : index
    %c0_111 = arith.constant 0 : index
    %c0_112 = arith.constant 0 : index
    %278 = vector.load %arg13[%c0_110, %c0_111, %c0_112] : memref<2x14x16xbf16, #tpu.memory_space<vmem>>, vector<2x14x16xbf16>
    tpu.vector_store %arg13[%c0_110, %c0_111, %c0_112], %277 {strides = array<i32>} : memref<2x14x16xbf16, #tpu.memory_space<vmem>>, vector<2x14x16xbf16>,
    %279 = vector.shape_cast %276 : vector<16x16xf32> to vector<2x8x16xf32>
    %280 = arith.truncf %279 : vector<2x8x16xf32> to vector<2x8x16xbf16>
    %c0_113 = arith.constant 0 : index
    %c3 = arith.constant 3 : index
    %c0_114 = arith.constant 0 : index
    %281 = vector.load %arg13[%c0_113, %c3, %c0_114] : memref<2x14x16xbf16, #tpu.memory_space<vmem>>, vector<2x8x16xbf16>
    tpu.vector_store %arg13[%c0_113, %c3, %c0_114], %280 {strides = array<i32>} : memref<2x14x16xbf16, #tpu.memory_space<vmem>>, vector<2x8x16xbf16>,
    %c0_115 = arith.constant 0 : index
    %c0_116 = arith.constant 0 : index
    %c0_117 = arith.constant 0 : index
    %282 = vector.load %arg13[%c0_115, %c0_116, %c0_117] : memref<2x14x16xbf16, #tpu.memory_space<vmem>>, vector<2x8x16xbf16>
    %283 = vector.shape_cast %282 : vector<2x8x16xbf16> to vector<16x16xbf16>
    %c0_118 = arith.constant 0 : index
    %c0_119 = arith.constant 0 : index
    %c0_120 = arith.constant 0 : index
    %284 = vector.load %arg9[%c0_118, %c0_119, %c0_120] : memref<7x16x8xbf16, #tpu.memory_space<vmem>>, vector<1x16x8xbf16>
    %285 = vector.shape_cast %284 : vector<1x16x8xbf16> to vector<16x8xbf16>
    %cst_121 = arith.constant dense<0.000000e+00> : vector<16x8xf32>
    %286 = tpu.matmul %283, %285, %cst_121 {dimension_numbers = #tpu.dot_dimension_numbers<[1], [0], [0], [1], [0, 0, 1, 1], [], []>} : vector<16x16xbf16>, vector<16x8xbf16>, vector<16x8xf32> -> vector<16x8xf32>
    %c0_122 = arith.constant 0 : index
    %c1_123 = arith.constant 1 : index
    %c0_124 = arith.constant 0 : index
    %287 = vector.load %arg13[%c0_122, %c1_123, %c0_124] : memref<2x14x16xbf16, #tpu.memory_space<vmem>>, vector<2x8x16xbf16>
    %288 = vector.shape_cast %287 : vector<2x8x16xbf16> to vector<16x16xbf16>
    %c1_125 = arith.constant 1 : index
    %c0_126 = arith.constant 0 : index
    %c0_127 = arith.constant 0 : index
    %289 = vector.load %arg9[%c1_125, %c0_126, %c0_127] : memref<7x16x8xbf16, #tpu.memory_space<vmem>>, vector<1x16x8xbf16>
    %290 = vector.shape_cast %289 : vector<1x16x8xbf16> to vector<16x8xbf16>
    %cst_128 = arith.constant dense<0.000000e+00> : vector<16x8xf32>
    %291 = tpu.matmul %288, %290, %cst_128 {dimension_numbers = #tpu.dot_dimension_numbers<[1], [0], [0], [1], [0, 0, 1, 1], [], []>} : vector<16x16xbf16>, vector<16x8xbf16>, vector<16x8xf32> -> vector<16x8xf32>
    %292 = arith.addf %286, %291 : vector<16x8xf32>
    %c0_129 = arith.constant 0 : index
    %c2_130 = arith.constant 2 : index
    %c0_131 = arith.constant 0 : index
    %293 = vector.load %arg13[%c0_129, %c2_130, %c0_131] : memref<2x14x16xbf16, #tpu.memory_space<vmem>>, vector<2x8x16xbf16>
    %294 = vector.shape_cast %293 : vector<2x8x16xbf16> to vector<16x16xbf16>
    %c2_132 = arith.constant 2 : index
    %c0_133 = arith.constant 0 : index
    %c0_134 = arith.constant 0 : index
    %295 = vector.load %arg9[%c2_132, %c0_133, %c0_134] : memref<7x16x8xbf16, #tpu.memory_space<vmem>>, vector<1x16x8xbf16>
    %296 = vector.shape_cast %295 : vector<1x16x8xbf16> to vector<16x8xbf16>
    %cst_135 = arith.constant dense<0.000000e+00> : vector<16x8xf32>
    %297 = tpu.matmul %294, %296, %cst_135 {dimension_numbers = #tpu.dot_dimension_numbers<[1], [0], [0], [1], [0, 0, 1, 1], [], []>} : vector<16x16xbf16>, vector<16x8xbf16>, vector<16x8xf32> -> vector<16x8xf32>
    %298 = arith.addf %292, %297 : vector<16x8xf32>
    %c0_136 = arith.constant 0 : index
    %c3_137 = arith.constant 3 : index
    %c0_138 = arith.constant 0 : index
    %299 = vector.load %arg13[%c0_136, %c3_137, %c0_138] : memref<2x14x16xbf16, #tpu.memory_space<vmem>>, vector<2x8x16xbf16>
    %300 = vector.shape_cast %299 : vector<2x8x16xbf16> to vector<16x16xbf16>
    %c3_139 = arith.constant 3 : index
    %c0_140 = arith.constant 0 : index
    %c0_141 = arith.constant 0 : index
    %301 = vector.load %arg9[%c3_139, %c0_140, %c0_141] : memref<7x16x8xbf16, #tpu.memory_space<vmem>>, vector<1x16x8xbf16>
    %302 = vector.shape_cast %301 : vector<1x16x8xbf16> to vector<16x8xbf16>
    %cst_142 = arith.constant dense<0.000000e+00> : vector<16x8xf32>
    %303 = tpu.matmul %300, %302, %cst_142 {dimension_numbers = #tpu.dot_dimension_numbers<[1], [0], [0], [1], [0, 0, 1, 1], [], []>} : vector<16x16xbf16>, vector<16x8xbf16>, vector<16x8xf32> -> vector<16x8xf32>
    %304 = arith.addf %298, %303 : vector<16x8xf32>
    %c0_143 = arith.constant 0 : index
    %c4 = arith.constant 4 : index
    %c0_144 = arith.constant 0 : index
    %305 = vector.load %arg13[%c0_143, %c4, %c0_144] : memref<2x14x16xbf16, #tpu.memory_space<vmem>>, vector<2x8x16xbf16>
    %306 = vector.shape_cast %305 : vector<2x8x16xbf16> to vector<16x16xbf16>
    %c4_145 = arith.constant 4 : index
    %c0_146 = arith.constant 0 : index
    %c0_147 = arith.constant 0 : index
    %307 = vector.load %arg9[%c4_145, %c0_146, %c0_147] : memref<7x16x8xbf16, #tpu.memory_space<vmem>>, vector<1x16x8xbf16>
    %308 = vector.shape_cast %307 : vector<1x16x8xbf16> to vector<16x8xbf16>
    %cst_148 = arith.constant dense<0.000000e+00> : vector<16x8xf32>
    %309 = tpu.matmul %306, %308, %cst_148 {dimension_numbers = #tpu.dot_dimension_numbers<[1], [0], [0], [1], [0, 0, 1, 1], [], []>} : vector<16x16xbf16>, vector<16x8xbf16>, vector<16x8xf32> -> vector<16x8xf32>
    %310 = arith.addf %304, %309 : vector<16x8xf32>
    %c0_149 = arith.constant 0 : index
    %c5 = arith.constant 5 : index
    %c0_150 = arith.constant 0 : index
    %311 = vector.load %arg13[%c0_149, %c5, %c0_150] : memref<2x14x16xbf16, #tpu.memory_space<vmem>>, vector<2x8x16xbf16>
    %312 = vector.shape_cast %311 : vector<2x8x16xbf16> to vector<16x16xbf16>
    %c5_151 = arith.constant 5 : index
    %c0_152 = arith.constant 0 : index
    %c0_153 = arith.constant 0 : index
    %313 = vector.load %arg9[%c5_151, %c0_152, %c0_153] : memref<7x16x8xbf16, #tpu.memory_space<vmem>>, vector<1x16x8xbf16>
    %314 = vector.shape_cast %313 : vector<1x16x8xbf16> to vector<16x8xbf16>
    %cst_154 = arith.constant dense<0.000000e+00> : vector<16x8xf32>
    %315 = tpu.matmul %312, %314, %cst_154 {dimension_numbers = #tpu.dot_dimension_numbers<[1], [0], [0], [1], [0, 0, 1, 1], [], []>} : vector<16x16xbf16>, vector<16x8xbf16>, vector<16x8xf32> -> vector<16x8xf32>
    %316 = arith.addf %310, %315 : vector<16x8xf32>
    %c0_155 = arith.constant 0 : index
    %c6 = arith.constant 6 : index
    %c0_156 = arith.constant 0 : index
    %317 = vector.load %arg13[%c0_155, %c6, %c0_156] : memref<2x14x16xbf16, #tpu.memory_space<vmem>>, vector<2x8x16xbf16>
    %318 = vector.shape_cast %317 : vector<2x8x16xbf16> to vector<16x16xbf16>
    %c6_157 = arith.constant 6 : index
    %c0_158 = arith.constant 0 : index
    %c0_159 = arith.constant 0 : index
    %319 = vector.load %arg9[%c6_157, %c0_158, %c0_159] : memref<7x16x8xbf16, #tpu.memory_space<vmem>>, vector<1x16x8xbf16>
    %320 = vector.shape_cast %319 : vector<1x16x8xbf16> to vector<16x8xbf16>
    %cst_160 = arith.constant dense<0.000000e+00> : vector<16x8xf32>
    %321 = tpu.matmul %318, %320, %cst_160 {dimension_numbers = #tpu.dot_dimension_numbers<[1], [0], [0], [1], [0, 0, 1, 1], [], []>} : vector<16x16xbf16>, vector<16x8xbf16>, vector<16x8xf32> -> vector<16x8xf32>
    %322 = arith.addf %316, %321 : vector<16x8xf32>
    %c0_161 = arith.constant 0 : index
    %323 = memref.load %arg10[%c0_161] : memref<1xf32, #tpu.memory_space<smem>>
    %324 = vector.broadcast %323 : f32 to vector<16x8xf32>
    %325 = arith.addf %322, %324 : vector<16x8xf32>
    %326 = arith.negf %325 : vector<16x8xf32>
    %327 = math.exp %326 : vector<16x8xf32>
    %cst_162 = arith.constant 1.000000e+00 : f32
    %328 = vector.broadcast %cst_162 : f32 to vector<16x8xf32>
    %329 = arith.addf %328, %327 : vector<16x8xf32>
    %330 = arith.divf %328, %329 : vector<16x8xf32>
    %331 = vector.extract_strided_slice %330 {offsets = [0, 0], sizes = [16, 1], strides = [1, 1]} : vector<16x8xf32> to vector<16x1xf32>
    %332 = vector.shape_cast %331 : vector<16x1xf32> to vector<16x1xf32>
    %333 = vector.broadcast %332 : vector<16x1xf32> to vector<16x32xf32>
    %334 = vector.extract_strided_slice %330 {offsets = [0, 1], sizes = [16, 1], strides = [1, 1]} : vector<16x8xf32> to vector<16x1xf32>
    %335 = vector.shape_cast %334 : vector<16x1xf32> to vector<16x1xf32>
    %336 = vector.broadcast %335 : vector<16x1xf32> to vector<16x32xf32>
    %337 = vector.extract_strided_slice %330 {offsets = [0, 2], sizes = [16, 1], strides = [1, 1]} : vector<16x8xf32> to vector<16x1xf32>
    %338 = vector.shape_cast %337 : vector<16x1xf32> to vector<16x1xf32>
    %339 = vector.broadcast %338 : vector<16x1xf32> to vector<16x32xf32>
    %340 = vector.extract_strided_slice %330 {offsets = [0, 3], sizes = [16, 1], strides = [1, 1]} : vector<16x8xf32> to vector<16x1xf32>
    %341 = vector.shape_cast %340 : vector<16x1xf32> to vector<16x1xf32>
    %342 = vector.broadcast %341 : vector<16x1xf32> to vector<16x32xf32>
    %343 = vector.extract_strided_slice %330 {offsets = [0, 4], sizes = [16, 1], strides = [1, 1]} : vector<16x8xf32> to vector<16x1xf32>
    %344 = vector.shape_cast %343 : vector<16x1xf32> to vector<16x1xf32>
    %345 = vector.broadcast %344 : vector<16x1xf32> to vector<16x32xf32>
    %346 = vector.extract_strided_slice %330 {offsets = [0, 5], sizes = [16, 1], strides = [1, 1]} : vector<16x8xf32> to vector<16x1xf32>
    %347 = vector.shape_cast %346 : vector<16x1xf32> to vector<16x1xf32>
    %348 = vector.broadcast %347 : vector<16x1xf32> to vector<16x32xf32>
    %349 = vector.extract_strided_slice %330 {offsets = [0, 6], sizes = [16, 1], strides = [1, 1]} : vector<16x8xf32> to vector<16x1xf32>
    %350 = vector.shape_cast %349 : vector<16x1xf32> to vector<16x1xf32>
    %351 = vector.broadcast %350 : vector<16x1xf32> to vector<16x32xf32>
    %352 = vector.extract_strided_slice %330 {offsets = [0, 7], sizes = [16, 1], strides = [1, 1]} : vector<16x8xf32> to vector<16x1xf32>
    %353 = vector.shape_cast %352 : vector<16x1xf32> to vector<16x1xf32>
    %354 = vector.broadcast %353 : vector<16x1xf32> to vector<16x32xf32>
    %355 = tpu.concatenate %333, %336, %339, %342, %345, %348, %351, %354 in 1 : vector<16x32xf32>, vector<16x32xf32>, vector<16x32xf32>, vector<16x32xf32>, vector<16x32xf32>, vector<16x32xf32>, vector<16x32xf32>, vector<16x32xf32> -> vector<16x256xf32>
    %356 = arith.mulf %219, %355 : vector<16x256xf32>
    %357 = arith.addf %356, %0 : vector<16x256xf32>
    %cst_163 = arith.constant 0.000000e+00 : f32
    %358 = vector.broadcast %cst_163 : f32 to vector<16x256xf32>
    %359 = arith.maximumf %357, %358 : vector<16x256xf32>
    %c0_164 = arith.constant 0 : index
    %c0_165 = arith.constant 0 : index
    %360 = vector.load %arg11[%c0_164, %c0_165] : memref<16x256xf32, #tpu.memory_space<vmem>>, vector<16x256xf32>
    tpu.vector_store %arg11[%c0_164, %c0_165], %359 {strides = array<i32>} : memref<16x256xf32, #tpu.memory_space<vmem>>, vector<16x256xf32>,
    return
  }
}

</mosaic_0001>

<llo_original>
// kernel: tile.23
$region0: #{tile.23}
  #allocation0 [shape = 's32[1]{0}', space=sflag, size = 0x4, scoped, tag = 'scoped memory for tile.23']
  %s0 = inlined_call_operand.vmem [shape: f32[32], index: 0, kind: input, shape index: {}]
  %s1 = inlined_call_operand.vmem [shape: f32[8,32], index: 1, kind: output, shape index: {}]
  // Predicated region
  $region2: #{tile.23} parent=0 // pred_check
    _
  $region3: #{tile.23} parent=0 // pred_check_branch
    %3 = sbr.rel (0) target = $region5
  $region4: #{tile.23} parent=0 // pred_region
    _
  $region5: #{tile.23} parent=0 // pred_fallthru
    _
  %v4 = vld [vmem:[%s0] ss:$0 sm:$0xff]
  %5 = vst [vmem:[%s1] sm:$0xff] %v4

// kernel: tile.24
$region0: #{tile.24}
  %s0 = inlined_call_operand.vmem [shape: f32[8,32], index: 0, kind: input, shape index: {}]
  %s1 = inlined_call_operand.vmem [shape: f32[1,256], index: 1, kind: output, shape index: {}]
  $region1: #{tile.24} parent=0
    #allocation0 [shape = 'u8[8192]{0}', space=vmem, size = 0x2000, scoped, tag = 'scoped mem for output reshape']
    %s2 = smov 3
    %v3 = vld [vmem:[%s0] ss:$4 sm:%s2]
    %vm4 = vcmask 261120
    %5 = vst.msk [vmem:[#allocation0] ss:$8 sm:$0x3] %vm4, %v3
    %s6 = scalar_lea.vmem %s0, 3
    %s7 = smov 3
    %v8 = vld [vmem:[%s6] ss:$4 sm:%s7]
    %9 = vrot.lane.b32.xlu0 %v8, 96
    %v10 = vpop.permute.xlu0 %9
    %vm11 = vcmask 1048320
    %12 = vst.msk [vmem:[#allocation0] ss:$8 sm:$0x3] %vm11, %v10
    %s13 = scalar_lea.vmem %s0, 2
    %s14 = smov 3
    %v15 = vld [vmem:[%s13] ss:$4 sm:%s14]
    %16 = vrot.lane.b32.xlu0 %v15, 64
    %v17 = vpop.permute.xlu0 %16
    %vm18 = vcmask 785920
    %19 = vst.msk [vmem:[#allocation0] ss:$8 sm:$0x3] %vm18, %v17
    %s20 = scalar_lea.vmem %s0, 1
    %s21 = smov 3
    %v22 = vld [vmem:[%s20] ss:$4 sm:%s21]
    %23 = vrot.lane.b32.xlu0 %v22, 32
    %v24 = vpop.permute.xlu0 %23
    %vm25 = vcmask 523520
    %26 = vst.msk [vmem:[#allocation0] ss:$8 sm:$0x3] %vm25, %v24
    %s28 = ssub.s32 2, 1
    %v29 = vld [vmem:[#allocation0] sm:%s28]
    %s31 = ssub.s32 2, 1
    %32 = vst [vmem:[%s1] sm:%s31] %v29
    %s33 = scalar_lea.vmem [#allocation0], 8
    %v34 = vld [vmem:[%s33] sm:%s28]
    %s36 = ssub.s32 2, 1
    %s37 = scalar_lea.vmem %s1, 1
    %38 = vst [vmem:[%s37] sm:%s36] %v34

// kernel: basic_block_forward.1
$region0: #{basic_block_forward.1}
  #allocation0 [shape = 'u32[]', space=smem, size = 0x4, offset = 0x4, fixed_abs, tag = 'smem constant byte address 0x4 - core index']
  #allocation1 [shape = 'u32[72,128]{1,0:T(1,128)}', space=vmem, size = 0x9000, scoped, tag = 'internal scratch']
  #allocation2 [shape = 'bf16[2,10,256]{2,1,0:T(8,128)(2,1)}', space=vmem, size = 0x4000, scoped, tag = 'scratch operand']
  #allocation3 [shape = 'bf16[2,14,16]{2,1,0:T(8,128)(2,1)}', space=vmem, size = 0x2000, scoped, tag = 'scratch operand']
  #allocation4 [shape = 'f32[1]{0:T(128)S(6)}', space=smem, size = 0x200, scoped, tag = 'scoped memory for basic_block_forward.1']
  %s0 = inlined_call_operand.vmem [shape: f32[16,256], index: 0, kind: input, shape index: {}]
  %s1 = inlined_call_operand.vmem [shape: bf16[3,256,256], index: 1, kind: input, shape index: {}]
  %s2 = inlined_call_operand.vmem [shape: f32[1,256], index: 2, kind: input, shape index: {}]
  %s3 = inlined_call_operand.vmem [shape: f32[1,256], index: 3, kind: input, shape index: {}]
  %s4 = inlined_call_operand.vmem [shape: bf16[3,256,256], index: 4, kind: input, shape index: {}]
  %s5 = inlined_call_operand.vmem [shape: f32[1,256], index: 5, kind: input, shape index: {}]
  %s6 = inlined_call_operand.vmem [shape: f32[1,256], index: 6, kind: input, shape index: {}]
  %s7 = inlined_call_operand.vmem [shape: bf16[32,2], index: 7, kind: input, shape index: {}]
  %s8 = inlined_call_operand.vmem [shape: bf16[2,32], index: 8, kind: input, shape index: {}]
  %s9 = inlined_call_operand.vmem [shape: bf16[7,16,8], index: 9, kind: input, shape index: {}]
  %s10 = inlined_call_operand.<no memory space> [shape: f32[1], index: 10, kind: input, shape index: {}]
  %s11 = inlined_call_operand.vmem [shape: f32[16,256], index: 11, kind: output, shape index: {}]
  %s12 = sld [smem:[#allocation0]]
  $region54: #{basic_block_forward.1} parent=0
    _
  %s14 = ssub.s32 1, %s12
  %s15 = scalar_select 0, %s14, %s12
  %16 = sst [smem:[#allocation4]] %s10
  // Predicated region
  $region2: #{basic_block_forward.1} parent=0 // pred_check
    _
  $region3: #{basic_block_forward.1} parent=0 // pred_check_branch
    %18 = sbr.rel (0) target = $region5
  $region4: #{basic_block_forward.1} parent=0 // pred_region
    _
  $region5: #{basic_block_forward.1} parent=0 // pred_fallthru
    _
  // Predicated region
  $region6: #{basic_block_forward.1} parent=0 // pred_check
    _
  $region7: #{basic_block_forward.1} parent=0 // pred_check_branch
    %20 = sbr.rel (0) target = $region9
  $region8: #{basic_block_forward.1} parent=0 // pred_region
    _
  $region9: #{basic_block_forward.1} parent=0 // pred_fallthru
    _
  // Predicated region
  $region10: #{basic_block_forward.1} parent=0 // pred_check
    _
  $region11: #{basic_block_forward.1} parent=0 // pred_check_branch
    %22 = sbr.rel (0) target = $region13
  $region12: #{basic_block_forward.1} parent=0 // pred_region
    _
  $region13: #{basic_block_forward.1} parent=0 // pred_fallthru
    _
  // Predicated region
  $region14: #{basic_block_forward.1} parent=0 // pred_check
    _
  $region15: #{basic_block_forward.1} parent=0 // pred_check_branch
    %24 = sbr.rel (0) target = $region17
  $region16: #{basic_block_forward.1} parent=0 // pred_region
    _
  $region17: #{basic_block_forward.1} parent=0 // pred_fallthru
    _
  // Predicated region
  $region18: #{basic_block_forward.1} parent=0 // pred_check
    _
  $region19: #{basic_block_forward.1} parent=0 // pred_check_branch
    %26 = sbr.rel (0) target = $region21
  $region20: #{basic_block_forward.1} parent=0 // pred_region
    _
  $region21: #{basic_block_forward.1} parent=0 // pred_fallthru
    _
  // Predicated region
  $region22: #{basic_block_forward.1} parent=0 // pred_check
    _
  $region23: #{basic_block_forward.1} parent=0 // pred_check_branch
    %28 = sbr.rel (0) target = $region25
  $region24: #{basic_block_forward.1} parent=0 // pred_region
    _
  $region25: #{basic_block_forward.1} parent=0 // pred_fallthru
    _
  // Predicated region
  $region26: #{basic_block_forward.1} parent=0 // pred_check
    _
  $region27: #{basic_block_forward.1} parent=0 // pred_check_branch
    %30 = sbr.rel (0) target = $region29
  $region28: #{basic_block_forward.1} parent=0 // pred_region
    _
  $region29: #{basic_block_forward.1} parent=0 // pred_fallthru
    _
  // Predicated region
  $region30: #{basic_block_forward.1} parent=0 // pred_check
    _
  $region31: #{basic_block_forward.1} parent=0 // pred_check_branch
    %32 = sbr.rel (0) target = $region33
  $region32: #{basic_block_forward.1} parent=0 // pred_region
    _
  $region33: #{basic_block_forward.1} parent=0 // pred_fallthru
    _
  // Predicated region
  $region34: #{basic_block_forward.1} parent=0 // pred_check
    _
  $region35: #{basic_block_forward.1} parent=0 // pred_check_branch
    %34 = sbr.rel (0) target = $region37
  $region36: #{basic_block_forward.1} parent=0 // pred_region
    _
  $region37: #{basic_block_forward.1} parent=0 // pred_fallthru
    _
  // Predicated region
  $region38: #{basic_block_forward.1} parent=0 // pred_check
    _
  $region39: #{basic_block_forward.1} parent=0 // pred_check_branch
    %36 = sbr.rel (0) target = $region41
  $region40: #{basic_block_forward.1} parent=0 // pred_region
    _
  $region41: #{basic_block_forward.1} parent=0 // pred_fallthru
    _
  // Predicated region
  $region42: #{basic_block_forward.1} parent=0 // pred_check
    _
  $region43: #{basic_block_forward.1} parent=0 // pred_check_branch
    %38 = sbr.rel (0) target = $region45
  $region44: #{basic_block_forward.1} parent=0 // pred_region
    _
  $region45: #{basic_block_forward.1} parent=0 // pred_fallthru
    _
  %v40 = vld [vmem:[%s0] sm:$0xff]
  %v41 = vld [vmem:[%s0 + $0x8] sm:$0xff]
  %v42 = vld [vmem:[%s0 + $0x10] sm:$0xff]
  %v43 = vld [vmem:[%s0 + $0x18] sm:$0xff]
  %44 = vst [vmem:[#allocation2] sm:$0xff] 0
  %45 = vst [vmem:[#allocation2 + $0x8] sm:$0x11] 0
  %46 = vst [vmem:[#allocation2 + $0x10] sm:$0xff] 0
  %47 = vst [vmem:[#allocation2 + $0x18] sm:$0x11] 0
  %v48 = vpack.c.bf16 %v41, %v40
  %v49 = vpack.c.bf16 %v43, %v42
  %v51 = vshrl.u32 %v48, 16
  %v53 = vrot.slane %v51, 7
  %v54 = vshll.u32 %v48, 16
  %v56 = vor.u32 %v53, %v54
  %v57 = vrot.slane %v53, 4
  %v59 = vshrl.u32 %v49, 16
  %v61 = vrot.slane %v59, 7
  %v62 = vshll.u32 %v49, 16
  %v64 = vor.u32 %v61, %v62
  %v65 = vrot.slane %v61, 4
  %vm70 = vcmask 1043456
  %vm71 = vsmask.f32 7938
  %vm72 = vmand %vm70, %vm71
  %vm73 = vcmask 1047556
  %vm74 = vsmask.f32 7954
  %vm75 = vmand %vm73, %vm74
  %vm76 = vmor %vm75, %vm72
  %v77 = vld [vmem:[#allocation2] sm:$0xff]
  %v78 = vsel %vm76, %v56, %v77
  %79 = vst [vmem:[#allocation2] sm:$0xff] %v78
  %vm80 = vcmask 1040384
  %vm81 = vsmask.f32 256
  %vm82 = vmand %vm80, %vm81
  %vm83 = vcmask 1044484
  %vm84 = vsmask.f32 4352
  %vm85 = vmand %vm83, %vm84
  %vm86 = vmor %vm85, %vm82
  %v87 = vld [vmem:[#allocation2 + $0x8] sm:$0x11]
  %v88 = vsel %vm86, %v57, %v87
  %89 = vst [vmem:[#allocation2 + $0x8] sm:$0x11] %v88
  %v90 = vld [vmem:[#allocation2 + $0x10] sm:$0xff]
  %v91 = vsel %vm76, %v64, %v90
  %92 = vst [vmem:[#allocation2 + $0x10] sm:$0xff] %v91
  %v93 = vld [vmem:[#allocation2 + $0x18] sm:$0x11]
  %v94 = vsel %vm86, %v65, %v93
  %95 = vst [vmem:[#allocation2 + $0x18] sm:$0x11] %v94
  %v96 = vld [vmem:[#allocation2] sm:$0xff]
  %v97 = vld [vmem:[#allocation2 + $0x10] sm:$0xff]
  %v98 = vld [vmem:[%s1] sm:$0xff]
  %v99 = vld [vmem:[%s1 + $0x8] sm:$0xff]
  %v100 = vld [vmem:[%s1 + $0x10] sm:$0xff]
  %v101 = vld [vmem:[%s1 + $0x18] sm:$0xff]
  %v102 = vld [vmem:[%s1 + $0x20] sm:$0xff]
  %v103 = vld [vmem:[%s1 + $0x28] sm:$0xff]
  %v104 = vld [vmem:[%s1 + $0x30] sm:$0xff]
  %v105 = vld [vmem:[%s1 + $0x38] sm:$0xff]
  %v106 = vld [vmem:[%s1 + $0x40] sm:$0xff]
  %v107 = vld [vmem:[%s1 + $0x48] sm:$0xff]
  %v108 = vld [vmem:[%s1 + $0x50] sm:$0xff]
  %v109 = vld [vmem:[%s1 + $0x58] sm:$0xff]
  %v110 = vld [vmem:[%s1 + $0x60] sm:$0xff]
  %v111 = vld [vmem:[%s1 + $0x68] sm:$0xff]
  %v112 = vld [vmem:[%s1 + $0x70] sm:$0xff]
  %v113 = vld [vmem:[%s1 + $0x78] sm:$0xff]
  %v114 = vld [vmem:[%s1 + $0x80] sm:$0xff]
  %v115 = vld [vmem:[%s1 + $0x88] sm:$0xff]
  %v116 = vld [vmem:[%s1 + $0x90] sm:$0xff]
  %v117 = vld [vmem:[%s1 + $0x98] sm:$0xff]
  %v118 = vld [vmem:[%s1 + $0xa0] sm:$0xff]
  %v119 = vld [vmem:[%s1 + $0xa8] sm:$0xff]
  %v120 = vld [vmem:[%s1 + $0xb0] sm:$0xff]
  %v121 = vld [vmem:[%s1 + $0xb8] sm:$0xff]
  %v122 = vld [vmem:[%s1 + $0xc0] sm:$0xff]
  %v123 = vld [vmem:[%s1 + $0xc8] sm:$0xff]
  %v124 = vld [vmem:[%s1 + $0xd0] sm:$0xff]
  %v125 = vld [vmem:[%s1 + $0xd8] sm:$0xff]
  %v126 = vld [vmem:[%s1 + $0xe0] sm:$0xff]
  %v127 = vld [vmem:[%s1 + $0xe8] sm:$0xff]
  %v128 = vld [vmem:[%s1 + $0xf0] sm:$0xff]
  %v129 = vld [vmem:[%s1 + $0xf8] sm:$0xff]
  %v130 = vld [vmem:[#allocation2 + $0x8] sm:$0x11]
  %v131 = vld [vmem:[#allocation2 + $0x18] sm:$0x11]
  %vm132 = vsmask.f32 3328
  %vm133 = vsmask.f32 7440
  %vm134 = vmor %vm132, %vm133
  %v136 = vshrl.u32 %v96, 16
  %v138 = vrot.slane %v136, 4
  %v139 = vshll.u32 %v96, 16
  %v141 = vrot.slane %v139, 5
  %v142 = vor.u32 %v138, %v141
  %v143 = vrot.slane %v142, 4
  %v145 = vshll.u32 %v130, 16
  %v147 = vrot.slane %v145, 5
  %v148 = vsel %vm134, %v143, %v147
  %v150 = vshrl.u32 %v97, 16
  %v152 = vrot.slane %v150, 4
  %v153 = vshll.u32 %v97, 16
  %v155 = vrot.slane %v153, 5
  %v156 = vor.u32 %v152, %v155
  %v157 = vrot.slane %v156, 4
  %v159 = vshll.u32 %v131, 16
  %v161 = vrot.slane %v159, 5
  %v162 = vsel %vm134, %v157, %v161
  %s163 = scalar_lea.vmem %s1, 256
  %v164 = vld [vmem:[%s163] sm:$0xff]
  %v165 = vld [vmem:[%s163 + $0x8] sm:$0xff]
  %v166 = vld [vmem:[%s163 + $0x10] sm:$0xff]
  %v167 = vld [vmem:[%s163 + $0x18] sm:$0xff]
  %v168 = vld [vmem:[%s163 + $0x20] sm:$0xff]
  %v169 = vld [vmem:[%s163 + $0x28] sm:$0xff]
  %v170 = vld [vmem:[%s163 + $0x30] sm:$0xff]
  %v171 = vld [vmem:[%s163 + $0x38] sm:$0xff]
  %v172 = vld [vmem:[%s163 + $0x40] sm:$0xff]
  %v173 = vld [vmem:[%s163 + $0x48] sm:$0xff]
  %v174 = vld [vmem:[%s163 + $0x50] sm:$0xff]
  %v175 = vld [vmem:[%s163 + $0x58] sm:$0xff]
  %v176 = vld [vmem:[%s163 + $0x60] sm:$0xff]
  %v177 = vld [vmem:[%s163 + $0x68] sm:$0xff]
  %v178 = vld [vmem:[%s163 + $0x70] sm:$0xff]
  %v179 = vld [vmem:[%s163 + $0x78] sm:$0xff]
  %v180 = vld [vmem:[%s163 + $0x80] sm:$0xff]
  %v181 = vld [vmem:[%s163 + $0x88] sm:$0xff]
  %v182 = vld [vmem:[%s163 + $0x90] sm:$0xff]
  %v183 = vld [vmem:[%s163 + $0x98] sm:$0xff]
  %v184 = vld [vmem:[%s163 + $0xa0] sm:$0xff]
  %v185 = vld [vmem:[%s163 + $0xa8] sm:$0xff]
  %v186 = vld [vmem:[%s163 + $0xb0] sm:$0xff]
  %v187 = vld [vmem:[%s163 + $0xb8] sm:$0xff]
  %v188 = vld [vmem:[%s163 + $0xc0] sm:$0xff]
  %v189 = vld [vmem:[%s163 + $0xc8] sm:$0xff]
  %v190 = vld [vmem:[%s163 + $0xd0] sm:$0xff]
  %v191 = vld [vmem:[%s163 + $0xd8] sm:$0xff]
  %v192 = vld [vmem:[%s163 + $0xe0] sm:$0xff]
  %v193 = vld [vmem:[%s163 + $0xe8] sm:$0xff]
  %v194 = vld [vmem:[%s163 + $0xf0] sm:$0xff]
  %v195 = vld [vmem:[%s163 + $0xf8] sm:$0xff]
  %v196 = vunpack.c.l.b16 %v148
  %v197 = vunpack.c.h.b16 %v148
  %v198 = vunpack.c.l.b16 %v162
  %v199 = vunpack.c.h.b16 %v162
  %v200 = vpack.c.b16 %v198, %v196
  %v201 = vpack.c.b16 %v199, %v197
  %v236 = vunpack.c.l.b16 %v164
  %v237 = vunpack.c.h.b16 %v164
  %v238 = vunpack.c.l.b16 %v165
  %v239 = vunpack.c.h.b16 %v165
  %v240 = vunpack.c.l.b16 %v166
  %v241 = vunpack.c.h.b16 %v166
  %v242 = vunpack.c.l.b16 %v167
  %v243 = vunpack.c.h.b16 %v167
  %v244 = vunpack.c.l.b16 %v168
  %v245 = vunpack.c.h.b16 %v168
  %v246 = vunpack.c.l.b16 %v169
  %v247 = vunpack.c.h.b16 %v169
  %v248 = vunpack.c.l.b16 %v170
  %v249 = vunpack.c.h.b16 %v170
  %v250 = vunpack.c.l.b16 %v171
  %v251 = vunpack.c.h.b16 %v171
  %v252 = vunpack.c.l.b16 %v172
  %v253 = vunpack.c.h.b16 %v172
  %v254 = vunpack.c.l.b16 %v173
  %v255 = vunpack.c.h.b16 %v173
  %v256 = vunpack.c.l.b16 %v174
  %v257 = vunpack.c.h.b16 %v174
  %v258 = vunpack.c.l.b16 %v175
  %v259 = vunpack.c.h.b16 %v175
  %v260 = vunpack.c.l.b16 %v176
  %v261 = vunpack.c.h.b16 %v176
  %v262 = vunpack.c.l.b16 %v177
  %v263 = vunpack.c.h.b16 %v177
  %v264 = vunpack.c.l.b16 %v178
  %v265 = vunpack.c.h.b16 %v178
  %v266 = vunpack.c.l.b16 %v179
  %v267 = vunpack.c.h.b16 %v179
  %v268 = vunpack.c.l.b16 %v180
  %v269 = vunpack.c.h.b16 %v180
  %v270 = vunpack.c.l.b16 %v181
  %v271 = vunpack.c.h.b16 %v181
  %v272 = vunpack.c.l.b16 %v182
  %v273 = vunpack.c.h.b16 %v182
  %v274 = vunpack.c.l.b16 %v183
  %v275 = vunpack.c.h.b16 %v183
  %v276 = vunpack.c.l.b16 %v184
  %v277 = vunpack.c.h.b16 %v184
  %v278 = vunpack.c.l.b16 %v185
  %v279 = vunpack.c.h.b16 %v185
  %v280 = vunpack.c.l.b16 %v186
  %v281 = vunpack.c.h.b16 %v186
  %v282 = vunpack.c.l.b16 %v187
  %v283 = vunpack.c.h.b16 %v187
  %v284 = vunpack.c.l.b16 %v188
  %v285 = vunpack.c.h.b16 %v188
  %v286 = vunpack.c.l.b16 %v189
  %v287 = vunpack.c.h.b16 %v189
  %v288 = vunpack.c.l.b16 %v190
  %v289 = vunpack.c.h.b16 %v190
  %v290 = vunpack.c.l.b16 %v191
  %v291 = vunpack.c.h.b16 %v191
  %v292 = vunpack.c.l.b16 %v192
  %v293 = vunpack.c.h.b16 %v192
  %v294 = vunpack.c.l.b16 %v193
  %v295 = vunpack.c.h.b16 %v193
  %v296 = vunpack.c.l.b16 %v194
  %v297 = vunpack.c.h.b16 %v194
  %v298 = vunpack.c.l.b16 %v195
  %v299 = vunpack.c.h.b16 %v195
  %v300 = vpack.c.b16 %v238, %v236
  %v301 = vpack.c.b16 %v239, %v237
  %v302 = vpack.c.b16 %v242, %v240
  %v303 = vpack.c.b16 %v243, %v241
  %v304 = vpack.c.b16 %v246, %v244
  %v305 = vpack.c.b16 %v247, %v245
  %v306 = vpack.c.b16 %v250, %v248
  %v307 = vpack.c.b16 %v251, %v249
  %v308 = vpack.c.b16 %v254, %v252
  %v309 = vpack.c.b16 %v255, %v253
  %v310 = vpack.c.b16 %v258, %v256
  %v311 = vpack.c.b16 %v259, %v257
  %v312 = vpack.c.b16 %v262, %v260
  %v313 = vpack.c.b16 %v263, %v261
  %v314 = vpack.c.b16 %v266, %v264
  %v315 = vpack.c.b16 %v267, %v265
  %v316 = vpack.c.b16 %v270, %v268
  %v317 = vpack.c.b16 %v271, %v269
  %v318 = vpack.c.b16 %v274, %v272
  %v319 = vpack.c.b16 %v275, %v273
  %v320 = vpack.c.b16 %v278, %v276
  %v321 = vpack.c.b16 %v279, %v277
  %v322 = vpack.c.b16 %v282, %v280
  %v323 = vpack.c.b16 %v283, %v281
  %v324 = vpack.c.b16 %v286, %v284
  %v325 = vpack.c.b16 %v287, %v285
  %v326 = vpack.c.b16 %v290, %v288
  %v327 = vpack.c.b16 %v291, %v289
  %v328 = vpack.c.b16 %v294, %v292
  %v329 = vpack.c.b16 %v295, %v293
  %v330 = vpack.c.b16 %v298, %v296
  %v331 = vpack.c.b16 %v299, %v297
  %364 = vmatpush.bf16.msra.mxu0 %v314
  %365 = vmatpush.bf16.msra.mxu0 %v312
  %366 = vmatpush.bf16.msra.mxu0 %v310
  %367 = vmatpush.bf16.msra.mxu0 %v308
  %368 = vmatpush.bf16.msra.mxu0 %v306
  %369 = vmatpush.bf16.msra.mxu0 %v304
  %370 = vmatpush.bf16.msra.mxu0 %v302
  %371 = vmatpush.bf16.msra.mxu0 %v300
  %372 = vmatmul.bf16.gmra.mxu0 %v200
  %v373 = vpop.f32.mrf.mxu0
  %v374 = vadd.f32 0.0, %v373
  %v375 = vpop.f32.mrf.mxu0
  %v376 = vadd.f32 0.0, %v375
  %377 = vdwg.mxu0
  %378 = vmatpush.bf16.msra.mxu0 %v330
  %379 = vmatpush.bf16.msra.mxu0 %v328
  %380 = vmatpush.bf16.msra.mxu0 %v326
  %381 = vmatpush.bf16.msra.mxu0 %v324
  %382 = vmatpush.bf16.msra.mxu0 %v322
  %383 = vmatpush.bf16.msra.mxu0 %v320
  %384 = vmatpush.bf16.msra.mxu0 %v318
  %385 = vmatpush.bf16.msra.mxu0 %v316
  %386 = vmatmul.bf16.gmra.mxu0 %v201
  %v387 = vpop.f32.mrf.mxu0
  %v388 = vadd.f32 %v374, %v387
  %v389 = vpop.f32.mrf.mxu0
  %v390 = vadd.f32 %v376, %v389
  %391 = vdwg.mxu0
  %392 = vmatpush.bf16.msra.mxu0 %v315
  %393 = vmatpush.bf16.msra.mxu0 %v313
  %394 = vmatpush.bf16.msra.mxu0 %v311
  %395 = vmatpush.bf16.msra.mxu0 %v309
  %396 = vmatpush.bf16.msra.mxu0 %v307
  %397 = vmatpush.bf16.msra.mxu0 %v305
  %398 = vmatpush.bf16.msra.mxu0 %v303
  %399 = vmatpush.bf16.msra.mxu0 %v301
  %400 = vmatmul.bf16.gmra.mxu0 %v200
  %v401 = vpop.f32.mrf.mxu0
  %v402 = vadd.f32 0.0, %v401
  %v403 = vpop.f32.mrf.mxu0
  %v404 = vadd.f32 0.0, %v403
  %405 = vdwg.mxu0
  %406 = vmatpush.bf16.msra.mxu0 %v331
  %407 = vmatpush.bf16.msra.mxu0 %v329
  %408 = vmatpush.bf16.msra.mxu0 %v327
  %409 = vmatpush.bf16.msra.mxu0 %v325
  %410 = vmatpush.bf16.msra.mxu0 %v323
  %411 = vmatpush.bf16.msra.mxu0 %v321
  %412 = vmatpush.bf16.msra.mxu0 %v319
  %413 = vmatpush.bf16.msra.mxu0 %v317
  %414 = vmatmul.bf16.gmra.mxu0 %v201
  %v415 = vpop.f32.mrf.mxu0
  %v416 = vadd.f32 %v402, %v415
  %v417 = vpop.f32.mrf.mxu0
  %v418 = vadd.f32 %v404, %v417
  %419 = vdwg.mxu0
  %v422 = vunpack.c.l.b16 %v96
  %v423 = vunpack.c.h.b16 %v96
  %v424 = vunpack.c.l.b16 %v97
  %v425 = vunpack.c.h.b16 %v97
  %v426 = vpack.c.b16 %v424, %v422
  %v427 = vpack.c.b16 %v425, %v423
  %v462 = vunpack.c.l.b16 %v98
  %v463 = vunpack.c.h.b16 %v98
  %v464 = vunpack.c.l.b16 %v99
  %v465 = vunpack.c.h.b16 %v99
  %v466 = vunpack.c.l.b16 %v100
  %v467 = vunpack.c.h.b16 %v100
  %v468 = vunpack.c.l.b16 %v101
  %v469 = vunpack.c.h.b16 %v101
  %v470 = vunpack.c.l.b16 %v102
  %v471 = vunpack.c.h.b16 %v102
  %v472 = vunpack.c.l.b16 %v103
  %v473 = vunpack.c.h.b16 %v103
  %v474 = vunpack.c.l.b16 %v104
  %v475 = vunpack.c.h.b16 %v104
  %v476 = vunpack.c.l.b16 %v105
  %v477 = vunpack.c.h.b16 %v105
  %v478 = vunpack.c.l.b16 %v106
  %v479 = vunpack.c.h.b16 %v106
  %v480 = vunpack.c.l.b16 %v107
  %v481 = vunpack.c.h.b16 %v107
  %v482 = vunpack.c.l.b16 %v108
  %v483 = vunpack.c.h.b16 %v108
  %v484 = vunpack.c.l.b16 %v109
  %v485 = vunpack.c.h.b16 %v109
  %v486 = vunpack.c.l.b16 %v110
  %v487 = vunpack.c.h.b16 %v110
  %v488 = vunpack.c.l.b16 %v111
  %v489 = vunpack.c.h.b16 %v111
  %v490 = vunpack.c.l.b16 %v112
  %v491 = vunpack.c.h.b16 %v112
  %v492 = vunpack.c.l.b16 %v113
  %v493 = vunpack.c.h.b16 %v113
  %v494 = vunpack.c.l.b16 %v114
  %v495 = vunpack.c.h.b16 %v114
  %v496 = vunpack.c.l.b16 %v115
  %v497 = vunpack.c.h.b16 %v115
  %v498 = vunpack.c.l.b16 %v116
  %v499 = vunpack.c.h.b16 %v116
  %v500 = vunpack.c.l.b16 %v117
  %v501 = vunpack.c.h.b16 %v117
  %v502 = vunpack.c.l.b16 %v118
  %v503 = vunpack.c.h.b16 %v118
  %v504 = vunpack.c.l.b16 %v119
  %v505 = vunpack.c.h.b16 %v119
  %v506 = vunpack.c.l.b16 %v120
  %v507 = vunpack.c.h.b16 %v120
  %v508 = vunpack.c.l.b16 %v121
  %v509 = vunpack.c.h.b16 %v121
  %v510 = vunpack.c.l.b16 %v122
  %v511 = vunpack.c.h.b16 %v122
  %v512 = vunpack.c.l.b16 %v123
  %v513 = vunpack.c.h.b16 %v123
  %v514 = vunpack.c.l.b16 %v124
  %v515 = vunpack.c.h.b16 %v124
  %v516 = vunpack.c.l.b16 %v125
  %v517 = vunpack.c.h.b16 %v125
  %v518 = vunpack.c.l.b16 %v126
  %v519 = vunpack.c.h.b16 %v126
  %v520 = vunpack.c.l.b16 %v127
  %v521 = vunpack.c.h.b16 %v127
  %v522 = vunpack.c.l.b16 %v128
  %v523 = vunpack.c.h.b16 %v128
  %v524 = vunpack.c.l.b16 %v129
  %v525 = vunpack.c.h.b16 %v129
  %v526 = vpack.c.b16 %v464, %v462
  %v527 = vpack.c.b16 %v465, %v463
  %v528 = vpack.c.b16 %v468, %v466
  %v529 = vpack.c.b16 %v469, %v467
  %v530 = vpack.c.b16 %v472, %v470
  %v531 = vpack.c.b16 %v473, %v471
  %v532 = vpack.c.b16 %v476, %v474
  %v533 = vpack.c.b16 %v477, %v475
  %v534 = vpack.c.b16 %v480, %v478
  %v535 = vpack.c.b16 %v481, %v479
  %v536 = vpack.c.b16 %v484, %v482
  %v537 = vpack.c.b16 %v485, %v483
  %v538 = vpack.c.b16 %v488, %v486
  %v539 = vpack.c.b16 %v489, %v487
  %v540 = vpack.c.b16 %v492, %v490
  %v541 = vpack.c.b16 %v493, %v491
  %v542 = vpack.c.b16 %v496, %v494
  %v543 = vpack.c.b16 %v497, %v495
  %v544 = vpack.c.b16 %v500, %v498
  %v545 = vpack.c.b16 %v501, %v499
  %v546 = vpack.c.b16 %v504, %v502
  %v547 = vpack.c.b16 %v505, %v503
  %v548 = vpack.c.b16 %v508, %v506
  %v549 = vpack.c.b16 %v509, %v507
  %v550 = vpack.c.b16 %v512, %v510
  %v551 = vpack.c.b16 %v513, %v511
  %v552 = vpack.c.b16 %v516, %v514
  %v553 = vpack.c.b16 %v517, %v515
  %v554 = vpack.c.b16 %v520, %v518
  %v555 = vpack.c.b16 %v521, %v519
  %v556 = vpack.c.b16 %v524, %v522
  %v557 = vpack.c.b16 %v525, %v523
  %590 = vmatpush.bf16.msra.mxu0 %v540
  %591 = vmatpush.bf16.msra.mxu0 %v538
  %592 = vmatpush.bf16.msra.mxu0 %v536
  %593 = vmatpush.bf16.msra.mxu0 %v534
  %594 = vmatpush.bf16.msra.mxu0 %v532
  %595 = vmatpush.bf16.msra.mxu0 %v530
  %596 = vmatpush.bf16.msra.mxu0 %v528
  %597 = vmatpush.bf16.msra.mxu0 %v526
  %598 = vmatmul.bf16.gmra.mxu0 %v426
  %v599 = vpop.f32.mrf.mxu0
  %v600 = vadd.f32 %v388, %v599
  %v601 = vpop.f32.mrf.mxu0
  %v602 = vadd.f32 %v390, %v601
  %603 = vdwg.mxu0
  %604 = vmatpush.bf16.msra.mxu0 %v556
  %605 = vmatpush.bf16.msra.mxu0 %v554
  %606 = vmatpush.bf16.msra.mxu0 %v552
  %607 = vmatpush.bf16.msra.mxu0 %v550
  %608 = vmatpush.bf16.msra.mxu0 %v548
  %609 = vmatpush.bf16.msra.mxu0 %v546
  %610 = vmatpush.bf16.msra.mxu0 %v544
  %611 = vmatpush.bf16.msra.mxu0 %v542
  %612 = vmatmul.bf16.gmra.mxu0 %v427
  %v613 = vpop.f32.mrf.mxu0
  %v614 = vadd.f32 %v600, %v613
  %v615 = vpop.f32.mrf.mxu0
  %v616 = vadd.f32 %v602, %v615
  %617 = vdwg.mxu0
  %618 = vmatpush.bf16.msra.mxu0 %v541
  %619 = vmatpush.bf16.msra.mxu0 %v539
  %620 = vmatpush.bf16.msra.mxu0 %v537
  %621 = vmatpush.bf16.msra.mxu0 %v535
  %622 = vmatpush.bf16.msra.mxu0 %v533
  %623 = vmatpush.bf16.msra.mxu0 %v531
  %624 = vmatpush.bf16.msra.mxu0 %v529
  %625 = vmatpush.bf16.msra.mxu0 %v527
  %626 = vmatmul.bf16.gmra.mxu0 %v426
  %v627 = vpop.f32.mrf.mxu0
  %v628 = vadd.f32 %v416, %v627
  %v629 = vpop.f32.mrf.mxu0
  %v630 = vadd.f32 %v418, %v629
  %631 = vdwg.mxu0
  %632 = vmatpush.bf16.msra.mxu0 %v557
  %633 = vmatpush.bf16.msra.mxu0 %v555
  %634 = vmatpush.bf16.msra.mxu0 %v553
  %635 = vmatpush.bf16.msra.mxu0 %v551
  %636 = vmatpush.bf16.msra.mxu0 %v549
  %637 = vmatpush.bf16.msra.mxu0 %v547
  %638 = vmatpush.bf16.msra.mxu0 %v545
  %639 = vmatpush.bf16.msra.mxu0 %v543
  %640 = vmatmul.bf16.gmra.mxu0 %v427
  %v641 = vpop.f32.mrf.mxu0
  %v642 = vadd.f32 %v628, %v641
  %v643 = vpop.f32.mrf.mxu0
  %v644 = vadd.f32 %v630, %v643
  %645 = vdwg.mxu0
  %v646 = vld [vmem:[#allocation2] sm:$0xee]
  %v647 = vld [vmem:[#allocation2 + $0x10] sm:$0xee]
  %vm652 = vcmask 1042432
  %vm653 = vcmask 1046532
  %vm654 = vmor %vm652, %vm653
  %v655 = vrot.slane %v646, 5
  %v656 = vrot.slane %v655, 4
  %v657 = vrot.slane %v130, 5
  %v658 = vsel %vm654, %v656, %v657
  %v659 = vrot.slane %v647, 5
  %v660 = vrot.slane %v659, 4
  %v661 = vrot.slane %v131, 5
  %v662 = vsel %vm654, %v660, %v661
  %s663 = scalar_lea.vmem %s1, 512
  %v664 = vld [vmem:[%s663] sm:$0xff]
  %v665 = vld [vmem:[%s663 + $0x8] sm:$0xff]
  %v666 = vld [vmem:[%s663 + $0x10] sm:$0xff]
  %v667 = vld [vmem:[%s663 + $0x18] sm:$0xff]
  %v668 = vld [vmem:[%s663 + $0x20] sm:$0xff]
  %v669 = vld [vmem:[%s663 + $0x28] sm:$0xff]
  %v670 = vld [vmem:[%s663 + $0x30] sm:$0xff]
  %v671 = vld [vmem:[%s663 + $0x38] sm:$0xff]
  %v672 = vld [vmem:[%s663 + $0x40] sm:$0xff]
  %v673 = vld [vmem:[%s663 + $0x48] sm:$0xff]
  %v674 = vld [vmem:[%s663 + $0x50] sm:$0xff]
  %v675 = vld [vmem:[%s663 + $0x58] sm:$0xff]
  %v676 = vld [vmem:[%s663 + $0x60] sm:$0xff]
  %v677 = vld [vmem:[%s663 + $0x68] sm:$0xff]
  %v678 = vld [vmem:[%s663 + $0x70] sm:$0xff]
  %v679 = vld [vmem:[%s663 + $0x78] sm:$0xff]
  %v680 = vld [vmem:[%s663 + $0x80] sm:$0xff]
  %v681 = vld [vmem:[%s663 + $0x88] sm:$0xff]
  %v682 = vld [vmem:[%s663 + $0x90] sm:$0xff]
  %v683 = vld [vmem:[%s663 + $0x98] sm:$0xff]
  %v684 = vld [vmem:[%s663 + $0xa0] sm:$0xff]
  %v685 = vld [vmem:[%s663 + $0xa8] sm:$0xff]
  %v686 = vld [vmem:[%s663 + $0xb0] sm:$0xff]
  %v687 = vld [vmem:[%s663 + $0xb8] sm:$0xff]
  %v688 = vld [vmem:[%s663 + $0xc0] sm:$0xff]
  %v689 = vld [vmem:[%s663 + $0xc8] sm:$0xff]
  %v690 = vld [vmem:[%s663 + $0xd0] sm:$0xff]
  %v691 = vld [vmem:[%s663 + $0xd8] sm:$0xff]
  %v692 = vld [vmem:[%s663 + $0xe0] sm:$0xff]
  %v693 = vld [vmem:[%s663 + $0xe8] sm:$0xff]
  %v694 = vld [vmem:[%s663 + $0xf0] sm:$0xff]
  %v695 = vld [vmem:[%s663 + $0xf8] sm:$0xff]
  %v696 = vunpack.c.l.b16 %v658
  %v697 = vunpack.c.h.b16 %v658
  %v698 = vunpack.c.l.b16 %v662
  %v699 = vunpack.c.h.b16 %v662
  %v700 = vpack.c.b16 %v698, %v696
  %v701 = vpack.c.b16 %v699, %v697
  %v736 = vunpack.c.l.b16 %v664
  %v737 = vunpack.c.h.b16 %v664
  %v738 = vunpack.c.l.b16 %v665
  %v739 = vunpack.c.h.b16 %v665
  %v740 = vunpack.c.l.b16 %v666
  %v741 = vunpack.c.h.b16 %v666
  %v742 = vunpack.c.l.b16 %v667
  %v743 = vunpack.c.h.b16 %v667
  %v744 = vunpack.c.l.b16 %v668
  %v745 = vunpack.c.h.b16 %v668
  %v746 = vunpack.c.l.b16 %v669
  %v747 = vunpack.c.h.b16 %v669
  %v748 = vunpack.c.l.b16 %v670
  %v749 = vunpack.c.h.b16 %v670
  %v750 = vunpack.c.l.b16 %v671
  %v751 = vunpack.c.h.b16 %v671
  %v752 = vunpack.c.l.b16 %v672
  %v753 = vunpack.c.h.b16 %v672
  %v754 = vunpack.c.l.b16 %v673
  %v755 = vunpack.c.h.b16 %v673
  %v756 = vunpack.c.l.b16 %v674
  %v757 = vunpack.c.h.b16 %v674
  %v758 = vunpack.c.l.b16 %v675
  %v759 = vunpack.c.h.b16 %v675
  %v760 = vunpack.c.l.b16 %v676
  %v761 = vunpack.c.h.b16 %v676
  %v762 = vunpack.c.l.b16 %v677
  %v763 = vunpack.c.h.b16 %v677
  %v764 = vunpack.c.l.b16 %v678
  %v765 = vunpack.c.h.b16 %v678
  %v766 = vunpack.c.l.b16 %v679
  %v767 = vunpack.c.h.b16 %v679
  %v768 = vunpack.c.l.b16 %v680
  %v769 = vunpack.c.h.b16 %v680
  %v770 = vunpack.c.l.b16 %v681
  %v771 = vunpack.c.h.b16 %v681
  %v772 = vunpack.c.l.b16 %v682
  %v773 = vunpack.c.h.b16 %v682
  %v774 = vunpack.c.l.b16 %v683
  %v775 = vunpack.c.h.b16 %v683
  %v776 = vunpack.c.l.b16 %v684
  %v777 = vunpack.c.h.b16 %v684
  %v778 = vunpack.c.l.b16 %v685
  %v779 = vunpack.c.h.b16 %v685
  %v780 = vunpack.c.l.b16 %v686
  %v781 = vunpack.c.h.b16 %v686
  %v782 = vunpack.c.l.b16 %v687
  %v783 = vunpack.c.h.b16 %v687
  %v784 = vunpack.c.l.b16 %v688
  %v785 = vunpack.c.h.b16 %v688
  %v786 = vunpack.c.l.b16 %v689
  %v787 = vunpack.c.h.b16 %v689
  %v788 = vunpack.c.l.b16 %v690
  %v789 = vunpack.c.h.b16 %v690
  %v790 = vunpack.c.l.b16 %v691
  %v791 = vunpack.c.h.b16 %v691
  %v792 = vunpack.c.l.b16 %v692
  %v793 = vunpack.c.h.b16 %v692
  %v794 = vunpack.c.l.b16 %v693
  %v795 = vunpack.c.h.b16 %v693
  %v796 = vunpack.c.l.b16 %v694
  %v797 = vunpack.c.h.b16 %v694
  %v798 = vunpack.c.l.b16 %v695
  %v799 = vunpack.c.h.b16 %v695
  %v800 = vpack.c.b16 %v738, %v736
  %v801 = vpack.c.b16 %v739, %v737
  %v802 = vpack.c.b16 %v742, %v740
  %v803 = vpack.c.b16 %v743, %v741
  %v804 = vpack.c.b16 %v746, %v744
  %v805 = vpack.c.b16 %v747, %v745
  %v806 = vpack.c.b16 %v750, %v748
  %v807 = vpack.c.b16 %v751, %v749
  %v808 = vpack.c.b16 %v754, %v752
  %v809 = vpack.c.b16 %v755, %v753
  %v810 = vpack.c.b16 %v758, %v756
  %v811 = vpack.c.b16 %v759, %v757
  %v812 = vpack.c.b16 %v762, %v760
  %v813 = vpack.c.b16 %v763, %v761
  %v814 = vpack.c.b16 %v766, %v764
  %v815 = vpack.c.b16 %v767, %v765
  %v816 = vpack.c.b16 %v770, %v768
  %v817 = vpack.c.b16 %v771, %v769
  %v818 = vpack.c.b16 %v774, %v772
  %v819 = vpack.c.b16 %v775, %v773
  %v820 = vpack.c.b16 %v778, %v776
  %v821 = vpack.c.b16 %v779, %v777
  %v822 = vpack.c.b16 %v782, %v780
  %v823 = vpack.c.b16 %v783, %v781
  %v824 = vpack.c.b16 %v786, %v784
  %v825 = vpack.c.b16 %v787, %v785
  %v826 = vpack.c.b16 %v790, %v788
  %v827 = vpack.c.b16 %v791, %v789
  %v828 = vpack.c.b16 %v794, %v792
  %v829 = vpack.c.b16 %v795, %v793
  %v830 = vpack.c.b16 %v798, %v796
  %v831 = vpack.c.b16 %v799, %v797
  %864 = vmatpush.bf16.msra.mxu0 %v814
  %865 = vmatpush.bf16.msra.mxu0 %v812
  %866 = vmatpush.bf16.msra.mxu0 %v810
  %867 = vmatpush.bf16.msra.mxu0 %v808
  %868 = vmatpush.bf16.msra.mxu0 %v806
  %869 = vmatpush.bf16.msra.mxu0 %v804
  %870 = vmatpush.bf16.msra.mxu0 %v802
  %871 = vmatpush.bf16.msra.mxu0 %v800
  %872 = vmatmul.bf16.gmra.mxu0 %v700
  %v873 = vpop.f32.mrf.mxu0
  %v874 = vadd.f32 0.0, %v873
  %v875 = vpop.f32.mrf.mxu0
  %v876 = vadd.f32 0.0, %v875
  %877 = vdwg.mxu0
  %878 = vmatpush.bf16.msra.mxu0 %v830
  %879 = vmatpush.bf16.msra.mxu0 %v828
  %880 = vmatpush.bf16.msra.mxu0 %v826
  %881 = vmatpush.bf16.msra.mxu0 %v824
  %882 = vmatpush.bf16.msra.mxu0 %v822
  %883 = vmatpush.bf16.msra.mxu0 %v820
  %884 = vmatpush.bf16.msra.mxu0 %v818
  %885 = vmatpush.bf16.msra.mxu0 %v816
  %886 = vmatmul.bf16.gmra.mxu0 %v701
  %v887 = vpop.f32.mrf.mxu0
  %v888 = vadd.f32 %v874, %v887
  %v889 = vpop.f32.mrf.mxu0
  %v890 = vadd.f32 %v876, %v889
  %891 = vdwg.mxu0
  %892 = vmatpush.bf16.msra.mxu0 %v815
  %893 = vmatpush.bf16.msra.mxu0 %v813
  %894 = vmatpush.bf16.msra.mxu0 %v811
  %895 = vmatpush.bf16.msra.mxu0 %v809
  %896 = vmatpush.bf16.msra.mxu0 %v807
  %897 = vmatpush.bf16.msra.mxu0 %v805
  %898 = vmatpush.bf16.msra.mxu0 %v803
  %899 = vmatpush.bf16.msra.mxu0 %v801
  %900 = vmatmul.bf16.gmra.mxu0 %v700
  %v901 = vpop.f32.mrf.mxu0
  %v902 = vadd.f32 0.0, %v901
  %v903 = vpop.f32.mrf.mxu0
  %v904 = vadd.f32 0.0, %v903
  %905 = vdwg.mxu0
  %906 = vmatpush.bf16.msra.mxu0 %v831
  %907 = vmatpush.bf16.msra.mxu0 %v829
  %908 = vmatpush.bf16.msra.mxu0 %v827
  %909 = vmatpush.bf16.msra.mxu0 %v825
  %910 = vmatpush.bf16.msra.mxu0 %v823
  %911 = vmatpush.bf16.msra.mxu0 %v821
  %912 = vmatpush.bf16.msra.mxu0 %v819
  %913 = vmatpush.bf16.msra.mxu0 %v817
  %914 = vmatmul.bf16.gmra.mxu0 %v701
  %v915 = vpop.f32.mrf.mxu0
  %v916 = vadd.f32 %v902, %v915
  %v917 = vpop.f32.mrf.mxu0
  %v918 = vadd.f32 %v904, %v917
  %919 = vdwg.mxu0
  %v920 = vadd.f32 %v614, %v888
  %v921 = vadd.f32 %v642, %v916
  %v922 = vadd.f32 %v616, %v890
  %v923 = vadd.f32 %v644, %v918
  %v924 = vadd.f32 %v920, %v922
  %v925 = vrot.slane %v924, 4
  %v926 = vadd.f32 %v924, %v925
  %v927 = vrot.slane %v926, 2
  %v928 = vadd.f32 %v926, %v927
  %v929 = vrot.slane %v928, 1
  %v930 = vadd.f32 %v928, %v929
  %v931 = vadd.f32 %v921, %v923
  %v932 = vrot.slane %v931, 4
  %v933 = vadd.f32 %v931, %v932
  %v934 = vrot.slane %v933, 2
  %v935 = vadd.f32 %v933, %v934
  %v936 = vrot.slane %v935, 1
  %v937 = vadd.f32 %v935, %v936
  %v938 = vrcp.pop 16.0
  %v939 = vmul.f32 16.0, %v938
  %v940 = vsub.f32 1.0, %v939
  %v941 = vmul.f32 %v938, %v940
  %v942 = vadd.f32 %v938, %v941
  %vm943 = vweird.f32 %v938
  %v944 = vsel %vm943, %v938, %v942
  %v945 = vmul.f32 %v930, %v944
  %v946 = vmul.f32 %v937, %v944
  %948 = vrot.lane.b32.xlu0 %v945, 96
  %v949 = vpop.permute.xlu0 %948
  %v951 = vadd.f32 %v945, %v949
  %952 = vrot.lane.b32.xlu0 %v945, 64
  %v953 = vpop.permute.xlu0 %952
  %v955 = vadd.f32 %v951, %v953
  %956 = vrot.lane.b32.xlu0 %v945, 32
  %v957 = vpop.permute.xlu0 %956
  %v959 = vadd.f32 %v955, %v957
  %v960 = vadd.f32 %v959, %v946
  %962 = vrot.lane.b32.xlu0 %v946, 96
  %v963 = vpop.permute.xlu0 %962
  %v965 = vadd.f32 %v960, %v963
  %966 = vrot.lane.b32.xlu0 %v946, 64
  %v967 = vpop.permute.xlu0 %966
  %v969 = vadd.f32 %v965, %v967
  %970 = vrot.lane.b32.xlu0 %v946, 32
  %v971 = vpop.permute.xlu0 %970
  %v973 = vadd.f32 %v969, %v971
  %v974 = vmul.f32 %v973, 0.125
  %976 = vrot.lane.b32.xlu0 %v974, 32
  %v977 = vpop.permute.xlu0 %976
  %979 = vrot.lane.b32.xlu0 %v974, 64
  %v980 = vpop.permute.xlu0 %979
  %982 = vrot.lane.b32.xlu0 %v974, 96
  %v983 = vpop.permute.xlu0 %982
  %vm985 = vcmask 261120
  %v986 = vsel %vm985, %v974, %v977
  %vm987 = vcmask 523264
  %v988 = vsel %vm987, %v986, %v980
  %vm989 = vcmask 785408
  %v990 = vsel %vm989, %v988, %v983
  %v991 = vperm.slane %v990, 0
  %v992 = vsub.f32 %v920, %v991
  %v993 = vsub.f32 %v921, %v991
  %v994 = vsub.f32 %v922, %v991
  %v995 = vsub.f32 %v923, %v991
  %v996 = vmul.f32 %v992, %v992
  %v997 = vmul.f32 %v993, %v993
  %v998 = vmul.f32 %v994, %v994
  %v999 = vmul.f32 %v995, %v995
  %v1000 = vadd.f32 %v996, %v998
  %v1001 = vrot.slane %v1000, 4
  %v1002 = vadd.f32 %v1000, %v1001
  %v1003 = vrot.slane %v1002, 2
  %v1004 = vadd.f32 %v1002, %v1003
  %v1005 = vrot.slane %v1004, 1
  %v1006 = vadd.f32 %v1004, %v1005
  %v1007 = vadd.f32 %v997, %v999
  %v1008 = vrot.slane %v1007, 4
  %v1009 = vadd.f32 %v1007, %v1008
  %v1010 = vrot.slane %v1009, 2
  %v1011 = vadd.f32 %v1009, %v1010
  %v1012 = vrot.slane %v1011, 1
  %v1013 = vadd.f32 %v1011, %v1012
  %v1014 = vmul.f32 %v1006, %v944
  %v1015 = vmul.f32 %v1013, %v944
  %1017 = vrot.lane.b32.xlu0 %v1014, 96
  %v1018 = vpop.permute.xlu0 %1017
  %v1020 = vadd.f32 %v1014, %v1018
  %1021 = vrot.lane.b32.xlu0 %v1014, 64
  %v1022 = vpop.permute.xlu0 %1021
  %v1024 = vadd.f32 %v1020, %v1022
  %1025 = vrot.lane.b32.xlu0 %v1014, 32
  %v1026 = vpop.permute.xlu0 %1025
  %v1028 = vadd.f32 %v1024, %v1026
  %v1029 = vadd.f32 %v1028, %v1015
  %1031 = vrot.lane.b32.xlu0 %v1015, 96
  %v1032 = vpop.permute.xlu0 %1031
  %v1034 = vadd.f32 %v1029, %v1032
  %1035 = vrot.lane.b32.xlu0 %v1015, 64
  %v1036 = vpop.permute.xlu0 %1035
  %v1038 = vadd.f32 %v1034, %v1036
  %1039 = vrot.lane.b32.xlu0 %v1015, 32
  %v1040 = vpop.permute.xlu0 %1039
  %v1042 = vadd.f32 %v1038, %v1040
  %v1043 = vmul.f32 %v1042, 0.125
  %1045 = vrot.lane.b32.xlu0 %v1043, 32
  %v1046 = vpop.permute.xlu0 %1045
  %1048 = vrot.lane.b32.xlu0 %v1043, 64
  %v1049 = vpop.permute.xlu0 %1048
  %1051 = vrot.lane.b32.xlu0 %v1043, 96
  %v1052 = vpop.permute.xlu0 %1051
  %v1054 = vsel %vm985, %v1043, %v1046
  %v1055 = vsel %vm987, %v1054, %v1049
  %v1056 = vsel %vm989, %v1055, %v1052
  %v1057 = vadd.f32 %v1056, 1e-05
  %v1058 = vrsqrt.pop %v1057
  %v1059 = vmul.f32 %v1058, %v1057
  %v1060 = vmul.f32 %v1059, %v1058
  %v1061 = vmul.f32 0.5, %v1060
  %v1062 = vsub.f32 1.5, %v1061
  %v1063 = vmul.f32 %v1058, %v1062
  %vm1064 = vweird.f32 %v1057
  %vm1065 = vweird.f32 %v1058
  %vm1066 = vmor %vm1064, %vm1065
  %v1067 = vsel %vm1066, %v1058, %v1063
  %v1068 = vperm.slane %v1067, 0
  %v1069 = vmul.f32 %v992, %v1068
  %v1070 = vmul.f32 %v993, %v1068
  %v1071 = vmul.f32 %v994, %v1068
  %v1072 = vmul.f32 %v995, %v1068
  %v1073 = vld [vmem:[%s2] sm:$0x3]
  %v1075 = vperm.slane %v1073, 0
  %v1076 = vperm.slane %v1073, 1
  %v1079 = vmul.f32 %v1069, %v1075
  %v1080 = vmul.f32 %v1070, %v1076
  %v1081 = vmul.f32 %v1071, %v1075
  %v1082 = vmul.f32 %v1072, %v1076
  %v1083 = vld [vmem:[%s3] sm:$0x3]
  %v1085 = vperm.slane %v1083, 0
  %v1086 = vperm.slane %v1083, 1
  %v1089 = vadd.f32 %v1079, %v1085
  %v1090 = vadd.f32 %v1080, %v1086
  %v1091 = vadd.f32 %v1081, %v1085
  %v1092 = vadd.f32 %v1082, %v1086
  %v1093 = vmax.f32 %v1089, 0.0
  %v1094 = vmax.f32 %v1090, 0.0
  %v1095 = vmax.f32 %v1091, 0.0
  %v1096 = vmax.f32 %v1092, 0.0
  %v1097 = vpack.c.bf16 %v1094, %v1093
  %v1098 = vpack.c.bf16 %v1096, %v1095
  %v1100 = vshrl.u32 %v1097, 16
  %v1102 = vrot.slane %v1100, 7
  %v1103 = vshll.u32 %v1097, 16
  %v1105 = vor.u32 %v1102, %v1103
  %v1106 = vrot.slane %v1102, 4
  %v1108 = vshrl.u32 %v1098, 16
  %v1110 = vrot.slane %v1108, 7
  %v1111 = vshll.u32 %v1098, 16
  %v1113 = vor.u32 %v1110, %v1111
  %v1114 = vrot.slane %v1110, 4
  %v1119 = vsel %vm76, %v1105, %v96
  %1120 = vst [vmem:[#allocation2] sm:$0xff] %v1119
  %v1121 = vld [vmem:[#allocation2 + $0x8] sm:$0x11]
  %v1122 = vsel %vm86, %v1106, %v1121
  %1123 = vst [vmem:[#allocation2 + $0x8] sm:$0x11] %v1122
  %v1124 = vld [vmem:[#allocation2 + $0x10] sm:$0xff]
  %v1125 = vsel %vm76, %v1113, %v1124
  %1126 = vst [vmem:[#allocation2 + $0x10] sm:$0xff] %v1125
  %v1127 = vld [vmem:[#allocation2 + $0x18] sm:$0x11]
  %v1128 = vsel %vm86, %v1114, %v1127
  %1129 = vst [vmem:[#allocation2 + $0x18] sm:$0x11] %v1128
  %v1130 = vld [vmem:[#allocation2] sm:$0xff]
  %v1131 = vld [vmem:[#allocation2 + $0x10] sm:$0xff]
  %v1132 = vld [vmem:[%s4] sm:$0xff]
  %v1133 = vld [vmem:[%s4 + $0x8] sm:$0xff]
  %v1134 = vld [vmem:[%s4 + $0x10] sm:$0xff]
  %v1135 = vld [vmem:[%s4 + $0x18] sm:$0xff]
  %v1136 = vld [vmem:[%s4 + $0x20] sm:$0xff]
  %v1137 = vld [vmem:[%s4 + $0x28] sm:$0xff]
  %v1138 = vld [vmem:[%s4 + $0x30] sm:$0xff]
  %v1139 = vld [vmem:[%s4 + $0x38] sm:$0xff]
  %v1140 = vld [vmem:[%s4 + $0x40] sm:$0xff]
  %v1141 = vld [vmem:[%s4 + $0x48] sm:$0xff]
  %v1142 = vld [vmem:[%s4 + $0x50] sm:$0xff]
  %v1143 = vld [vmem:[%s4 + $0x58] sm:$0xff]
  %v1144 = vld [vmem:[%s4 + $0x60] sm:$0xff]
  %v1145 = vld [vmem:[%s4 + $0x68] sm:$0xff]
  %v1146 = vld [vmem:[%s4 + $0x70] sm:$0xff]
  %v1147 = vld [vmem:[%s4 + $0x78] sm:$0xff]
  %v1148 = vld [vmem:[%s4 + $0x80] sm:$0xff]
  %v1149 = vld [vmem:[%s4 + $0x88] sm:$0xff]
  %v1150 = vld [vmem:[%s4 + $0x90] sm:$0xff]
  %v1151 = vld [vmem:[%s4 + $0x98] sm:$0xff]
  %v1152 = vld [vmem:[%s4 + $0xa0] sm:$0xff]
  %v1153 = vld [vmem:[%s4 + $0xa8] sm:$0xff]
  %v1154 = vld [vmem:[%s4 + $0xb0] sm:$0xff]
  %v1155 = vld [vmem:[%s4 + $0xb8] sm:$0xff]
  %v1156 = vld [vmem:[%s4 + $0xc0] sm:$0xff]
  %v1157 = vld [vmem:[%s4 + $0xc8] sm:$0xff]
  %v1158 = vld [vmem:[%s4 + $0xd0] sm:$0xff]
  %v1159 = vld [vmem:[%s4 + $0xd8] sm:$0xff]
  %v1160 = vld [vmem:[%s4 + $0xe0] sm:$0xff]
  %v1161 = vld [vmem:[%s4 + $0xe8] sm:$0xff]
  %v1162 = vld [vmem:[%s4 + $0xf0] sm:$0xff]
  %v1163 = vld [vmem:[%s4 + $0xf8] sm:$0xff]
  %v1164 = vld [vmem:[#allocation2 + $0x8] sm:$0x11]
  %v1165 = vld [vmem:[#allocation2 + $0x18] sm:$0x11]
  %v1167 = vshrl.u32 %v1130, 16
  %v1169 = vrot.slane %v1167, 4
  %v1170 = vshll.u32 %v1130, 16
  %v1172 = vrot.slane %v1170, 5
  %v1173 = vor.u32 %v1169, %v1172
  %v1174 = vrot.slane %v1173, 4
  %v1176 = vshll.u32 %v1164, 16
  %v1178 = vrot.slane %v1176, 5
  %v1179 = vsel %vm134, %v1174, %v1178
  %v1181 = vshrl.u32 %v1131, 16
  %v1183 = vrot.slane %v1181, 4
  %v1184 = vshll.u32 %v1131, 16
  %v1186 = vrot.slane %v1184, 5
  %v1187 = vor.u32 %v1183, %v1186
  %v1188 = vrot.slane %v1187, 4
  %v1190 = vshll.u32 %v1165, 16
  %v1192 = vrot.slane %v1190, 5
  %v1193 = vsel %vm134, %v1188, %v1192
  %s1194 = scalar_lea.vmem %s4, 256
  %v1195 = vld [vmem:[%s1194] sm:$0xff]
  %v1196 = vld [vmem:[%s1194 + $0x8] sm:$0xff]
  %v1197 = vld [vmem:[%s1194 + $0x10] sm:$0xff]
  %v1198 = vld [vmem:[%s1194 + $0x18] sm:$0xff]
  %v1199 = vld [vmem:[%s1194 + $0x20] sm:$0xff]
  %v1200 = vld [vmem:[%s1194 + $0x28] sm:$0xff]
  %v1201 = vld [vmem:[%s1194 + $0x30] sm:$0xff]
  %v1202 = vld [vmem:[%s1194 + $0x38] sm:$0xff]
  %v1203 = vld [vmem:[%s1194 + $0x40] sm:$0xff]
  %v1204 = vld [vmem:[%s1194 + $0x48] sm:$0xff]
  %v1205 = vld [vmem:[%s1194 + $0x50] sm:$0xff]
  %v1206 = vld [vmem:[%s1194 + $0x58] sm:$0xff]
  %v1207 = vld [vmem:[%s1194 + $0x60] sm:$0xff]
  %v1208 = vld [vmem:[%s1194 + $0x68] sm:$0xff]
  %v1209 = vld [vmem:[%s1194 + $0x70] sm:$0xff]
  %v1210 = vld [vmem:[%s1194 + $0x78] sm:$0xff]
  %v1211 = vld [vmem:[%s1194 + $0x80] sm:$0xff]
  %v1212 = vld [vmem:[%s1194 + $0x88] sm:$0xff]
  %v1213 = vld [vmem:[%s1194 + $0x90] sm:$0xff]
  %v1214 = vld [vmem:[%s1194 + $0x98] sm:$0xff]
  %v1215 = vld [vmem:[%s1194 + $0xa0] sm:$0xff]
  %v1216 = vld [vmem:[%s1194 + $0xa8] sm:$0xff]
  %v1217 = vld [vmem:[%s1194 + $0xb0] sm:$0xff]
  %v1218 = vld [vmem:[%s1194 + $0xb8] sm:$0xff]
  %v1219 = vld [vmem:[%s1194 + $0xc0] sm:$0xff]
  %v1220 = vld [vmem:[%s1194 + $0xc8] sm:$0xff]
  %v1221 = vld [vmem:[%s1194 + $0xd0] sm:$0xff]
  %v1222 = vld [vmem:[%s1194 + $0xd8] sm:$0xff]
  %v1223 = vld [vmem:[%s1194 + $0xe0] sm:$0xff]
  %v1224 = vld [vmem:[%s1194 + $0xe8] sm:$0xff]
  %v1225 = vld [vmem:[%s1194 + $0xf0] sm:$0xff]
  %v1226 = vld [vmem:[%s1194 + $0xf8] sm:$0xff]
  %v1227 = vunpack.c.l.b16 %v1179
  %v1228 = vunpack.c.h.b16 %v1179
  %v1229 = vunpack.c.l.b16 %v1193
  %v1230 = vunpack.c.h.b16 %v1193
  %v1231 = vpack.c.b16 %v1229, %v1227
  %v1232 = vpack.c.b16 %v1230, %v1228
  %v1267 = vunpack.c.l.b16 %v1195
  %v1268 = vunpack.c.h.b16 %v1195
  %v1269 = vunpack.c.l.b16 %v1196
  %v1270 = vunpack.c.h.b16 %v1196
  %v1271 = vunpack.c.l.b16 %v1197
  %v1272 = vunpack.c.h.b16 %v1197
  %v1273 = vunpack.c.l.b16 %v1198
  %v1274 = vunpack.c.h.b16 %v1198
  %v1275 = vunpack.c.l.b16 %v1199
  %v1276 = vunpack.c.h.b16 %v1199
  %v1277 = vunpack.c.l.b16 %v1200
  %v1278 = vunpack.c.h.b16 %v1200
  %v1279 = vunpack.c.l.b16 %v1201
  %v1280 = vunpack.c.h.b16 %v1201
  %v1281 = vunpack.c.l.b16 %v1202
  %v1282 = vunpack.c.h.b16 %v1202
  %v1283 = vunpack.c.l.b16 %v1203
  %v1284 = vunpack.c.h.b16 %v1203
  %v1285 = vunpack.c.l.b16 %v1204
  %v1286 = vunpack.c.h.b16 %v1204
  %v1287 = vunpack.c.l.b16 %v1205
  %v1288 = vunpack.c.h.b16 %v1205
  %v1289 = vunpack.c.l.b16 %v1206
  %v1290 = vunpack.c.h.b16 %v1206
  %v1291 = vunpack.c.l.b16 %v1207
  %v1292 = vunpack.c.h.b16 %v1207
  %v1293 = vunpack.c.l.b16 %v1208
  %v1294 = vunpack.c.h.b16 %v1208
  %v1295 = vunpack.c.l.b16 %v1209
  %v1296 = vunpack.c.h.b16 %v1209
  %v1297 = vunpack.c.l.b16 %v1210
  %v1298 = vunpack.c.h.b16 %v1210
  %v1299 = vunpack.c.l.b16 %v1211
  %v1300 = vunpack.c.h.b16 %v1211
  %v1301 = vunpack.c.l.b16 %v1212
  %v1302 = vunpack.c.h.b16 %v1212
  %v1303 = vunpack.c.l.b16 %v1213
  %v1304 = vunpack.c.h.b16 %v1213
  %v1305 = vunpack.c.l.b16 %v1214
  %v1306 = vunpack.c.h.b16 %v1214
  %v1307 = vunpack.c.l.b16 %v1215
  %v1308 = vunpack.c.h.b16 %v1215
  %v1309 = vunpack.c.l.b16 %v1216
  %v1310 = vunpack.c.h.b16 %v1216
  %v1311 = vunpack.c.l.b16 %v1217
  %v1312 = vunpack.c.h.b16 %v1217
  %v1313 = vunpack.c.l.b16 %v1218
  %v1314 = vunpack.c.h.b16 %v1218
  %v1315 = vunpack.c.l.b16 %v1219
  %v1316 = vunpack.c.h.b16 %v1219
  %v1317 = vunpack.c.l.b16 %v1220
  %v1318 = vunpack.c.h.b16 %v1220
  %v1319 = vunpack.c.l.b16 %v1221
  %v1320 = vunpack.c.h.b16 %v1221
  %v1321 = vunpack.c.l.b16 %v1222
  %v1322 = vunpack.c.h.b16 %v1222
  %v1323 = vunpack.c.l.b16 %v1223
  %v1324 = vunpack.c.h.b16 %v1223
  %v1325 = vunpack.c.l.b16 %v1224
  %v1326 = vunpack.c.h.b16 %v1224
  %v1327 = vunpack.c.l.b16 %v1225
  %v1328 = vunpack.c.h.b16 %v1225
  %v1329 = vunpack.c.l.b16 %v1226
  %v1330 = vunpack.c.h.b16 %v1226
  %v1331 = vpack.c.b16 %v1269, %v1267
  %v1332 = vpack.c.b16 %v1270, %v1268
  %v1333 = vpack.c.b16 %v1273, %v1271
  %v1334 = vpack.c.b16 %v1274, %v1272
  %v1335 = vpack.c.b16 %v1277, %v1275
  %v1336 = vpack.c.b16 %v1278, %v1276
  %v1337 = vpack.c.b16 %v1281, %v1279
  %v1338 = vpack.c.b16 %v1282, %v1280
  %v1339 = vpack.c.b16 %v1285, %v1283
  %v1340 = vpack.c.b16 %v1286, %v1284
  %v1341 = vpack.c.b16 %v1289, %v1287
  %v1342 = vpack.c.b16 %v1290, %v1288
  %v1343 = vpack.c.b16 %v1293, %v1291
  %v1344 = vpack.c.b16 %v1294, %v1292
  %v1345 = vpack.c.b16 %v1297, %v1295
  %v1346 = vpack.c.b16 %v1298, %v1296
  %v1347 = vpack.c.b16 %v1301, %v1299
  %v1348 = vpack.c.b16 %v1302, %v1300
  %v1349 = vpack.c.b16 %v1305, %v1303
  %v1350 = vpack.c.b16 %v1306, %v1304
  %v1351 = vpack.c.b16 %v1309, %v1307
  %v1352 = vpack.c.b16 %v1310, %v1308
  %v1353 = vpack.c.b16 %v1313, %v1311
  %v1354 = vpack.c.b16 %v1314, %v1312
  %v1355 = vpack.c.b16 %v1317, %v1315
  %v1356 = vpack.c.b16 %v1318, %v1316
  %v1357 = vpack.c.b16 %v1321, %v1319
  %v1358 = vpack.c.b16 %v1322, %v1320
  %v1359 = vpack.c.b16 %v1325, %v1323
  %v1360 = vpack.c.b16 %v1326, %v1324
  %v1361 = vpack.c.b16 %v1329, %v1327
  %v1362 = vpack.c.b16 %v1330, %v1328
  %1395 = vmatpush.bf16.msra.mxu0 %v1345
  %1396 = vmatpush.bf16.msra.mxu0 %v1343
  %1397 = vmatpush.bf16.msra.mxu0 %v1341
  %1398 = vmatpush.bf16.msra.mxu0 %v1339
  %1399 = vmatpush.bf16.msra.mxu0 %v1337
  %1400 = vmatpush.bf16.msra.mxu0 %v1335
  %1401 = vmatpush.bf16.msra.mxu0 %v1333
  %1402 = vmatpush.bf16.msra.mxu0 %v1331
  %1403 = vmatmul.bf16.gmra.mxu0 %v1231
  %v1404 = vpop.f32.mrf.mxu0
  %v1405 = vadd.f32 0.0, %v1404
  %v1406 = vpop.f32.mrf.mxu0
  %v1407 = vadd.f32 0.0, %v1406
  %1408 = vdwg.mxu0
  %1409 = vmatpush.bf16.msra.mxu0 %v1361
  %1410 = vmatpush.bf16.msra.mxu0 %v1359
  %1411 = vmatpush.bf16.msra.mxu0 %v1357
  %1412 = vmatpush.bf16.msra.mxu0 %v1355
  %1413 = vmatpush.bf16.msra.mxu0 %v1353
  %1414 = vmatpush.bf16.msra.mxu0 %v1351
  %1415 = vmatpush.bf16.msra.mxu0 %v1349
  %1416 = vmatpush.bf16.msra.mxu0 %v1347
  %1417 = vmatmul.bf16.gmra.mxu0 %v1232
  %v1418 = vpop.f32.mrf.mxu0
  %v1419 = vadd.f32 %v1405, %v1418
  %v1420 = vpop.f32.mrf.mxu0
  %v1421 = vadd.f32 %v1407, %v1420
  %1422 = vdwg.mxu0
  %1423 = vmatpush.bf16.msra.mxu0 %v1346
  %1424 = vmatpush.bf16.msra.mxu0 %v1344
  %1425 = vmatpush.bf16.msra.mxu0 %v1342
  %1426 = vmatpush.bf16.msra.mxu0 %v1340
  %1427 = vmatpush.bf16.msra.mxu0 %v1338
  %1428 = vmatpush.bf16.msra.mxu0 %v1336
  %1429 = vmatpush.bf16.msra.mxu0 %v1334
  %1430 = vmatpush.bf16.msra.mxu0 %v1332
  %1431 = vmatmul.bf16.gmra.mxu0 %v1231
  %v1432 = vpop.f32.mrf.mxu0
  %v1433 = vadd.f32 0.0, %v1432
  %v1434 = vpop.f32.mrf.mxu0
  %v1435 = vadd.f32 0.0, %v1434
  %1436 = vdwg.mxu0
  %1437 = vmatpush.bf16.msra.mxu0 %v1362
  %1438 = vmatpush.bf16.msra.mxu0 %v1360
  %1439 = vmatpush.bf16.msra.mxu0 %v1358
  %1440 = vmatpush.bf16.msra.mxu0 %v1356
  %1441 = vmatpush.bf16.msra.mxu0 %v1354
  %1442 = vmatpush.bf16.msra.mxu0 %v1352
  %1443 = vmatpush.bf16.msra.mxu0 %v1350
  %1444 = vmatpush.bf16.msra.mxu0 %v1348
  %1445 = vmatmul.bf16.gmra.mxu0 %v1232
  %v1446 = vpop.f32.mrf.mxu0
  %v1447 = vadd.f32 %v1433, %v1446
  %v1448 = vpop.f32.mrf.mxu0
  %v1449 = vadd.f32 %v1435, %v1448
  %1450 = vdwg.mxu0
  %v1453 = vunpack.c.l.b16 %v1130
  %v1454 = vunpack.c.h.b16 %v1130
  %v1455 = vunpack.c.l.b16 %v1131
  %v1456 = vunpack.c.h.b16 %v1131
  %v1457 = vpack.c.b16 %v1455, %v1453
  %v1458 = vpack.c.b16 %v1456, %v1454
  %v1493 = vunpack.c.l.b16 %v1132
  %v1494 = vunpack.c.h.b16 %v1132
  %v1495 = vunpack.c.l.b16 %v1133
  %v1496 = vunpack.c.h.b16 %v1133
  %v1497 = vunpack.c.l.b16 %v1134
  %v1498 = vunpack.c.h.b16 %v1134
  %v1499 = vunpack.c.l.b16 %v1135
  %v1500 = vunpack.c.h.b16 %v1135
  %v1501 = vunpack.c.l.b16 %v1136
  %v1502 = vunpack.c.h.b16 %v1136
  %v1503 = vunpack.c.l.b16 %v1137
  %v1504 = vunpack.c.h.b16 %v1137
  %v1505 = vunpack.c.l.b16 %v1138
  %v1506 = vunpack.c.h.b16 %v1138
  %v1507 = vunpack.c.l.b16 %v1139
  %v1508 = vunpack.c.h.b16 %v1139
  %v1509 = vunpack.c.l.b16 %v1140
  %v1510 = vunpack.c.h.b16 %v1140
  %v1511 = vunpack.c.l.b16 %v1141
  %v1512 = vunpack.c.h.b16 %v1141
  %v1513 = vunpack.c.l.b16 %v1142
  %v1514 = vunpack.c.h.b16 %v1142
  %v1515 = vunpack.c.l.b16 %v1143
  %v1516 = vunpack.c.h.b16 %v1143
  %v1517 = vunpack.c.l.b16 %v1144
  %v1518 = vunpack.c.h.b16 %v1144
  %v1519 = vunpack.c.l.b16 %v1145
  %v1520 = vunpack.c.h.b16 %v1145
  %v1521 = vunpack.c.l.b16 %v1146
  %v1522 = vunpack.c.h.b16 %v1146
  %v1523 = vunpack.c.l.b16 %v1147
  %v1524 = vunpack.c.h.b16 %v1147
  %v1525 = vunpack.c.l.b16 %v1148
  %v1526 = vunpack.c.h.b16 %v1148
  %v1527 = vunpack.c.l.b16 %v1149
  %v1528 = vunpack.c.h.b16 %v1149
  %v1529 = vunpack.c.l.b16 %v1150
  %v1530 = vunpack.c.h.b16 %v1150
  %v1531 = vunpack.c.l.b16 %v1151
  %v1532 = vunpack.c.h.b16 %v1151
  %v1533 = vunpack.c.l.b16 %v1152
  %v1534 = vunpack.c.h.b16 %v1152
  %v1535 = vunpack.c.l.b16 %v1153
  %v1536 = vunpack.c.h.b16 %v1153
  %v1537 = vunpack.c.l.b16 %v1154
  %v1538 = vunpack.c.h.b16 %v1154
  %v1539 = vunpack.c.l.b16 %v1155
  %v1540 = vunpack.c.h.b16 %v1155
  %v1541 = vunpack.c.l.b16 %v1156
  %v1542 = vunpack.c.h.b16 %v1156
  %v1543 = vunpack.c.l.b16 %v1157
  %v1544 = vunpack.c.h.b16 %v1157
  %v1545 = vunpack.c.l.b16 %v1158
  %v1546 = vunpack.c.h.b16 %v1158
  %v1547 = vunpack.c.l.b16 %v1159
  %v1548 = vunpack.c.h.b16 %v1159
  %v1549 = vunpack.c.l.b16 %v1160
  %v1550 = vunpack.c.h.b16 %v1160
  %v1551 = vunpack.c.l.b16 %v1161
  %v1552 = vunpack.c.h.b16 %v1161
  %v1553 = vunpack.c.l.b16 %v1162
  %v1554 = vunpack.c.h.b16 %v1162
  %v1555 = vunpack.c.l.b16 %v1163
  %v1556 = vunpack.c.h.b16 %v1163
  %v1557 = vpack.c.b16 %v1495, %v1493
  %v1558 = vpack.c.b16 %v1496, %v1494
  %v1559 = vpack.c.b16 %v1499, %v1497
  %v1560 = vpack.c.b16 %v1500, %v1498
  %v1561 = vpack.c.b16 %v1503, %v1501
  %v1562 = vpack.c.b16 %v1504, %v1502
  %v1563 = vpack.c.b16 %v1507, %v1505
  %v1564 = vpack.c.b16 %v1508, %v1506
  %v1565 = vpack.c.b16 %v1511, %v1509
  %v1566 = vpack.c.b16 %v1512, %v1510
  %v1567 = vpack.c.b16 %v1515, %v1513
  %v1568 = vpack.c.b16 %v1516, %v1514
  %v1569 = vpack.c.b16 %v1519, %v1517
  %v1570 = vpack.c.b16 %v1520, %v1518
  %v1571 = vpack.c.b16 %v1523, %v1521
  %v1572 = vpack.c.b16 %v1524, %v1522
  %v1573 = vpack.c.b16 %v1527, %v1525
  %v1574 = vpack.c.b16 %v1528, %v1526
  %v1575 = vpack.c.b16 %v1531, %v1529
  %v1576 = vpack.c.b16 %v1532, %v1530
  %v1577 = vpack.c.b16 %v1535, %v1533
  %v1578 = vpack.c.b16 %v1536, %v1534
  %v1579 = vpack.c.b16 %v1539, %v1537
  %v1580 = vpack.c.b16 %v1540, %v1538
  %v1581 = vpack.c.b16 %v1543, %v1541
  %v1582 = vpack.c.b16 %v1544, %v1542
  %v1583 = vpack.c.b16 %v1547, %v1545
  %v1584 = vpack.c.b16 %v1548, %v1546
  %v1585 = vpack.c.b16 %v1551, %v1549
  %v1586 = vpack.c.b16 %v1552, %v1550
  %v1587 = vpack.c.b16 %v1555, %v1553
  %v1588 = vpack.c.b16 %v1556, %v1554
  %1621 = vmatpush.bf16.msra.mxu0 %v1571
  %1622 = vmatpush.bf16.msra.mxu0 %v1569
  %1623 = vmatpush.bf16.msra.mxu0 %v1567
  %1624 = vmatpush.bf16.msra.mxu0 %v1565
  %1625 = vmatpush.bf16.msra.mxu0 %v1563
  %1626 = vmatpush.bf16.msra.mxu0 %v1561
  %1627 = vmatpush.bf16.msra.mxu0 %v1559
  %1628 = vmatpush.bf16.msra.mxu0 %v1557
  %1629 = vmatmul.bf16.gmra.mxu0 %v1457
  %v1630 = vpop.f32.mrf.mxu0
  %v1631 = vadd.f32 %v1419, %v1630
  %v1632 = vpop.f32.mrf.mxu0
  %v1633 = vadd.f32 %v1421, %v1632
  %1634 = vdwg.mxu0
  %1635 = vmatpush.bf16.msra.mxu0 %v1587
  %1636 = vmatpush.bf16.msra.mxu0 %v1585
  %1637 = vmatpush.bf16.msra.mxu0 %v1583
  %1638 = vmatpush.bf16.msra.mxu0 %v1581
  %1639 = vmatpush.bf16.msra.mxu0 %v1579
  %1640 = vmatpush.bf16.msra.mxu0 %v1577
  %1641 = vmatpush.bf16.msra.mxu0 %v1575
  %1642 = vmatpush.bf16.msra.mxu0 %v1573
  %1643 = vmatmul.bf16.gmra.mxu0 %v1458
  %v1644 = vpop.f32.mrf.mxu0
  %v1645 = vadd.f32 %v1631, %v1644
  %v1646 = vpop.f32.mrf.mxu0
  %v1647 = vadd.f32 %v1633, %v1646
  %1648 = vdwg.mxu0
  %1649 = vmatpush.bf16.msra.mxu0 %v1572
  %1650 = vmatpush.bf16.msra.mxu0 %v1570
  %1651 = vmatpush.bf16.msra.mxu0 %v1568
  %1652 = vmatpush.bf16.msra.mxu0 %v1566
  %1653 = vmatpush.bf16.msra.mxu0 %v1564
  %1654 = vmatpush.bf16.msra.mxu0 %v1562
  %1655 = vmatpush.bf16.msra.mxu0 %v1560
  %1656 = vmatpush.bf16.msra.mxu0 %v1558
  %1657 = vmatmul.bf16.gmra.mxu0 %v1457
  %v1658 = vpop.f32.mrf.mxu0
  %v1659 = vadd.f32 %v1447, %v1658
  %v1660 = vpop.f32.mrf.mxu0
  %v1661 = vadd.f32 %v1449, %v1660
  %1662 = vdwg.mxu0
  %1663 = vmatpush.bf16.msra.mxu0 %v1588
  %1664 = vmatpush.bf16.msra.mxu0 %v1586
  %1665 = vmatpush.bf16.msra.mxu0 %v1584
  %1666 = vmatpush.bf16.msra.mxu0 %v1582
  %1667 = vmatpush.bf16.msra.mxu0 %v1580
  %1668 = vmatpush.bf16.msra.mxu0 %v1578
  %1669 = vmatpush.bf16.msra.mxu0 %v1576
  %1670 = vmatpush.bf16.msra.mxu0 %v1574
  %1671 = vmatmul.bf16.gmra.mxu0 %v1458
  %v1672 = vpop.f32.mrf.mxu0
  %v1673 = vadd.f32 %v1659, %v1672
  %v1674 = vpop.f32.mrf.mxu0
  %v1675 = vadd.f32 %v1661, %v1674
  %1676 = vdwg.mxu0
  %v1677 = vld [vmem:[#allocation2] sm:$0xee]
  %v1678 = vld [vmem:[#allocation2 + $0x10] sm:$0xee]
  %v1683 = vrot.slane %v1677, 5
  %v1684 = vrot.slane %v1683, 4
  %v1685 = vrot.slane %v1164, 5
  %v1686 = vsel %vm654, %v1684, %v1685
  %v1687 = vrot.slane %v1678, 5
  %v1688 = vrot.slane %v1687, 4
  %v1689 = vrot.slane %v1165, 5
  %v1690 = vsel %vm654, %v1688, %v1689
  %s1691 = scalar_lea.vmem %s4, 512
  %v1692 = vld [vmem:[%s1691] sm:$0xff]
  %v1693 = vld [vmem:[%s1691 + $0x8] sm:$0xff]
  %v1694 = vld [vmem:[%s1691 + $0x10] sm:$0xff]
  %v1695 = vld [vmem:[%s1691 + $0x18] sm:$0xff]
  %v1696 = vld [vmem:[%s1691 + $0x20] sm:$0xff]
  %v1697 = vld [vmem:[%s1691 + $0x28] sm:$0xff]
  %v1698 = vld [vmem:[%s1691 + $0x30] sm:$0xff]
  %v1699 = vld [vmem:[%s1691 + $0x38] sm:$0xff]
  %v1700 = vld [vmem:[%s1691 + $0x40] sm:$0xff]
  %v1701 = vld [vmem:[%s1691 + $0x48] sm:$0xff]
  %v1702 = vld [vmem:[%s1691 + $0x50] sm:$0xff]
  %v1703 = vld [vmem:[%s1691 + $0x58] sm:$0xff]
  %v1704 = vld [vmem:[%s1691 + $0x60] sm:$0xff]
  %v1705 = vld [vmem:[%s1691 + $0x68] sm:$0xff]
  %v1706 = vld [vmem:[%s1691 + $0x70] sm:$0xff]
  %v1707 = vld [vmem:[%s1691 + $0x78] sm:$0xff]
  %v1708 = vld [vmem:[%s1691 + $0x80] sm:$0xff]
  %v1709 = vld [vmem:[%s1691 + $0x88] sm:$0xff]
  %v1710 = vld [vmem:[%s1691 + $0x90] sm:$0xff]
  %v1711 = vld [vmem:[%s1691 + $0x98] sm:$0xff]
  %v1712 = vld [vmem:[%s1691 + $0xa0] sm:$0xff]
  %v1713 = vld [vmem:[%s1691 + $0xa8] sm:$0xff]
  %v1714 = vld [vmem:[%s1691 + $0xb0] sm:$0xff]
  %v1715 = vld [vmem:[%s1691 + $0xb8] sm:$0xff]
  %v1716 = vld [vmem:[%s1691 + $0xc0] sm:$0xff]
  %v1717 = vld [vmem:[%s1691 + $0xc8] sm:$0xff]
  %v1718 = vld [vmem:[%s1691 + $0xd0] sm:$0xff]
  %v1719 = vld [vmem:[%s1691 + $0xd8] sm:$0xff]
  %v1720 = vld [vmem:[%s1691 + $0xe0] sm:$0xff]
  %v1721 = vld [vmem:[%s1691 + $0xe8] sm:$0xff]
  %v1722 = vld [vmem:[%s1691 + $0xf0] sm:$0xff]
  %v1723 = vld [vmem:[%s1691 + $0xf8] sm:$0xff]
  %v1724 = vunpack.c.l.b16 %v1686
  %v1725 = vunpack.c.h.b16 %v1686
  %v1726 = vunpack.c.l.b16 %v1690
  %v1727 = vunpack.c.h.b16 %v1690
  %v1728 = vpack.c.b16 %v1726, %v1724
  %v1729 = vpack.c.b16 %v1727, %v1725
  %v1764 = vunpack.c.l.b16 %v1692
  %v1765 = vunpack.c.h.b16 %v1692
  %v1766 = vunpack.c.l.b16 %v1693
  %v1767 = vunpack.c.h.b16 %v1693
  %v1768 = vunpack.c.l.b16 %v1694
  %v1769 = vunpack.c.h.b16 %v1694
  %v1770 = vunpack.c.l.b16 %v1695
  %v1771 = vunpack.c.h.b16 %v1695
  %v1772 = vunpack.c.l.b16 %v1696
  %v1773 = vunpack.c.h.b16 %v1696
  %v1774 = vunpack.c.l.b16 %v1697
  %v1775 = vunpack.c.h.b16 %v1697
  %v1776 = vunpack.c.l.b16 %v1698
  %v1777 = vunpack.c.h.b16 %v1698
  %v1778 = vunpack.c.l.b16 %v1699
  %v1779 = vunpack.c.h.b16 %v1699
  %v1780 = vunpack.c.l.b16 %v1700
  %v1781 = vunpack.c.h.b16 %v1700
  %v1782 = vunpack.c.l.b16 %v1701
  %v1783 = vunpack.c.h.b16 %v1701
  %v1784 = vunpack.c.l.b16 %v1702
  %v1785 = vunpack.c.h.b16 %v1702
  %v1786 = vunpack.c.l.b16 %v1703
  %v1787 = vunpack.c.h.b16 %v1703
  %v1788 = vunpack.c.l.b16 %v1704
  %v1789 = vunpack.c.h.b16 %v1704
  %v1790 = vunpack.c.l.b16 %v1705
  %v1791 = vunpack.c.h.b16 %v1705
  %v1792 = vunpack.c.l.b16 %v1706
  %v1793 = vunpack.c.h.b16 %v1706
  %v1794 = vunpack.c.l.b16 %v1707
  %v1795 = vunpack.c.h.b16 %v1707
  %v1796 = vunpack.c.l.b16 %v1708
  %v1797 = vunpack.c.h.b16 %v1708
  %v1798 = vunpack.c.l.b16 %v1709
  %v1799 = vunpack.c.h.b16 %v1709
  %v1800 = vunpack.c.l.b16 %v1710
  %v1801 = vunpack.c.h.b16 %v1710
  %v1802 = vunpack.c.l.b16 %v1711
  %v1803 = vunpack.c.h.b16 %v1711
  %v1804 = vunpack.c.l.b16 %v1712
  %v1805 = vunpack.c.h.b16 %v1712
  %v1806 = vunpack.c.l.b16 %v1713
  %v1807 = vunpack.c.h.b16 %v1713
  %v1808 = vunpack.c.l.b16 %v1714
  %v1809 = vunpack.c.h.b16 %v1714
  %v1810 = vunpack.c.l.b16 %v1715
  %v1811 = vunpack.c.h.b16 %v1715
  %v1812 = vunpack.c.l.b16 %v1716
  %v1813 = vunpack.c.h.b16 %v1716
  %v1814 = vunpack.c.l.b16 %v1717
  %v1815 = vunpack.c.h.b16 %v1717
  %v1816 = vunpack.c.l.b16 %v1718
  %v1817 = vunpack.c.h.b16 %v1718
  %v1818 = vunpack.c.l.b16 %v1719
  %v1819 = vunpack.c.h.b16 %v1719
  %v1820 = vunpack.c.l.b16 %v1720
  %v1821 = vunpack.c.h.b16 %v1720
  %v1822 = vunpack.c.l.b16 %v1721
  %v1823 = vunpack.c.h.b16 %v1721
  %v1824 = vunpack.c.l.b16 %v1722
  %v1825 = vunpack.c.h.b16 %v1722
  %v1826 = vunpack.c.l.b16 %v1723
  %v1827 = vunpack.c.h.b16 %v1723
  %v1828 = vpack.c.b16 %v1766, %v1764
  %v1829 = vpack.c.b16 %v1767, %v1765
  %v1830 = vpack.c.b16 %v1770, %v1768
  %v1831 = vpack.c.b16 %v1771, %v1769
  %v1832 = vpack.c.b16 %v1774, %v1772
  %v1833 = vpack.c.b16 %v1775, %v1773
  %v1834 = vpack.c.b16 %v1778, %v1776
  %v1835 = vpack.c.b16 %v1779, %v1777
  %v1836 = vpack.c.b16 %v1782, %v1780
  %v1837 = vpack.c.b16 %v1783, %v1781
  %v1838 = vpack.c.b16 %v1786, %v1784
  %v1839 = vpack.c.b16 %v1787, %v1785
  %v1840 = vpack.c.b16 %v1790, %v1788
  %v1841 = vpack.c.b16 %v1791, %v1789
  %v1842 = vpack.c.b16 %v1794, %v1792
  %v1843 = vpack.c.b16 %v1795, %v1793
  %v1844 = vpack.c.b16 %v1798, %v1796
  %v1845 = vpack.c.b16 %v1799, %v1797
  %v1846 = vpack.c.b16 %v1802, %v1800
  %v1847 = vpack.c.b16 %v1803, %v1801
  %v1848 = vpack.c.b16 %v1806, %v1804
  %v1849 = vpack.c.b16 %v1807, %v1805
  %v1850 = vpack.c.b16 %v1810, %v1808
  %v1851 = vpack.c.b16 %v1811, %v1809
  %v1852 = vpack.c.b16 %v1814, %v1812
  %v1853 = vpack.c.b16 %v1815, %v1813
  %v1854 = vpack.c.b16 %v1818, %v1816
  %v1855 = vpack.c.b16 %v1819, %v1817
  %v1856 = vpack.c.b16 %v1822, %v1820
  %v1857 = vpack.c.b16 %v1823, %v1821
  %v1858 = vpack.c.b16 %v1826, %v1824
  %v1859 = vpack.c.b16 %v1827, %v1825
  %1892 = vmatpush.bf16.msra.mxu0 %v1842
  %1893 = vmatpush.bf16.msra.mxu0 %v1840
  %1894 = vmatpush.bf16.msra.mxu0 %v1838
  %1895 = vmatpush.bf16.msra.mxu0 %v1836
  %1896 = vmatpush.bf16.msra.mxu0 %v1834
  %1897 = vmatpush.bf16.msra.mxu0 %v1832
  %1898 = vmatpush.bf16.msra.mxu0 %v1830
  %1899 = vmatpush.bf16.msra.mxu0 %v1828
  %1900 = vmatmul.bf16.gmra.mxu0 %v1728
  %v1901 = vpop.f32.mrf.mxu0
  %v1902 = vadd.f32 0.0, %v1901
  %v1903 = vpop.f32.mrf.mxu0
  %v1904 = vadd.f32 0.0, %v1903
  %1905 = vdwg.mxu0
  %1906 = vmatpush.bf16.msra.mxu0 %v1858
  %1907 = vmatpush.bf16.msra.mxu0 %v1856
  %1908 = vmatpush.bf16.msra.mxu0 %v1854
  %1909 = vmatpush.bf16.msra.mxu0 %v1852
  %1910 = vmatpush.bf16.msra.mxu0 %v1850
  %1911 = vmatpush.bf16.msra.mxu0 %v1848
  %1912 = vmatpush.bf16.msra.mxu0 %v1846
  %1913 = vmatpush.bf16.msra.mxu0 %v1844
  %1914 = vmatmul.bf16.gmra.mxu0 %v1729
  %v1915 = vpop.f32.mrf.mxu0
  %v1916 = vadd.f32 %v1902, %v1915
  %v1917 = vpop.f32.mrf.mxu0
  %v1918 = vadd.f32 %v1904, %v1917
  %1919 = vdwg.mxu0
  %1920 = vmatpush.bf16.msra.mxu0 %v1843
  %1921 = vmatpush.bf16.msra.mxu0 %v1841
  %1922 = vmatpush.bf16.msra.mxu0 %v1839
  %1923 = vmatpush.bf16.msra.mxu0 %v1837
  %1924 = vmatpush.bf16.msra.mxu0 %v1835
  %1925 = vmatpush.bf16.msra.mxu0 %v1833
  %1926 = vmatpush.bf16.msra.mxu0 %v1831
  %1927 = vmatpush.bf16.msra.mxu0 %v1829
  %1928 = vmatmul.bf16.gmra.mxu0 %v1728
  %v1929 = vpop.f32.mrf.mxu0
  %v1930 = vadd.f32 0.0, %v1929
  %v1931 = vpop.f32.mrf.mxu0
  %v1932 = vadd.f32 0.0, %v1931
  %1933 = vdwg.mxu0
  %1934 = vmatpush.bf16.msra.mxu0 %v1859
  %1935 = vmatpush.bf16.msra.mxu0 %v1857
  %1936 = vmatpush.bf16.msra.mxu0 %v1855
  %1937 = vmatpush.bf16.msra.mxu0 %v1853
  %1938 = vmatpush.bf16.msra.mxu0 %v1851
  %1939 = vmatpush.bf16.msra.mxu0 %v1849
  %1940 = vmatpush.bf16.msra.mxu0 %v1847
  %1941 = vmatpush.bf16.msra.mxu0 %v1845
  %1942 = vmatmul.bf16.gmra.mxu0 %v1729
  %v1943 = vpop.f32.mrf.mxu0
  %v1944 = vadd.f32 %v1930, %v1943
  %v1945 = vpop.f32.mrf.mxu0
  %v1946 = vadd.f32 %v1932, %v1945
  %1947 = vdwg.mxu0
  %v1948 = vadd.f32 %v1645, %v1916
  %v1949 = vadd.f32 %v1673, %v1944
  %v1950 = vadd.f32 %v1647, %v1918
  %v1951 = vadd.f32 %v1675, %v1946
  %v1952 = vadd.f32 %v1948, %v1950
  %v1953 = vrot.slane %v1952, 4
  %v1954 = vadd.f32 %v1952, %v1953
  %v1955 = vrot.slane %v1954, 2
  %v1956 = vadd.f32 %v1954, %v1955
  %v1957 = vrot.slane %v1956, 1
  %v1958 = vadd.f32 %v1956, %v1957
  %v1959 = vadd.f32 %v1949, %v1951
  %v1960 = vrot.slane %v1959, 4
  %v1961 = vadd.f32 %v1959, %v1960
  %v1962 = vrot.slane %v1961, 2
  %v1963 = vadd.f32 %v1961, %v1962
  %v1964 = vrot.slane %v1963, 1
  %v1965 = vadd.f32 %v1963, %v1964
  %v1966 = vmul.f32 %v1958, %v944
  %v1967 = vmul.f32 %v1965, %v944
  %1969 = vrot.lane.b32.xlu0 %v1966, 96
  %v1970 = vpop.permute.xlu0 %1969
  %v1972 = vadd.f32 %v1966, %v1970
  %1973 = vrot.lane.b32.xlu0 %v1966, 64
  %v1974 = vpop.permute.xlu0 %1973
  %v1976 = vadd.f32 %v1972, %v1974
  %1977 = vrot.lane.b32.xlu0 %v1966, 32
  %v1978 = vpop.permute.xlu0 %1977
  %v1980 = vadd.f32 %v1976, %v1978
  %v1981 = vadd.f32 %v1980, %v1967
  %1983 = vrot.lane.b32.xlu0 %v1967, 96
  %v1984 = vpop.permute.xlu0 %1983
  %v1986 = vadd.f32 %v1981, %v1984
  %1987 = vrot.lane.b32.xlu0 %v1967, 64
  %v1988 = vpop.permute.xlu0 %1987
  %v1990 = vadd.f32 %v1986, %v1988
  %1991 = vrot.lane.b32.xlu0 %v1967, 32
  %v1992 = vpop.permute.xlu0 %1991
  %v1994 = vadd.f32 %v1990, %v1992
  %v1995 = vmul.f32 %v1994, 0.125
  %1997 = vrot.lane.b32.xlu0 %v1995, 32
  %v1998 = vpop.permute.xlu0 %1997
  %2000 = vrot.lane.b32.xlu0 %v1995, 64
  %v2001 = vpop.permute.xlu0 %2000
  %2003 = vrot.lane.b32.xlu0 %v1995, 96
  %v2004 = vpop.permute.xlu0 %2003
  %v2006 = vsel %vm985, %v1995, %v1998
  %v2007 = vsel %vm987, %v2006, %v2001
  %v2008 = vsel %vm989, %v2007, %v2004
  %v2009 = vperm.slane %v2008, 0
  %v2010 = vsub.f32 %v1948, %v2009
  %v2011 = vsub.f32 %v1949, %v2009
  %v2012 = vsub.f32 %v1950, %v2009
  %v2013 = vsub.f32 %v1951, %v2009
  %v2014 = vmul.f32 %v2010, %v2010
  %v2015 = vmul.f32 %v2011, %v2011
  %v2016 = vmul.f32 %v2012, %v2012
  %v2017 = vmul.f32 %v2013, %v2013
  %v2018 = vadd.f32 %v2014, %v2016
  %v2019 = vrot.slane %v2018, 4
  %v2020 = vadd.f32 %v2018, %v2019
  %v2021 = vrot.slane %v2020, 2
  %v2022 = vadd.f32 %v2020, %v2021
  %v2023 = vrot.slane %v2022, 1
  %v2024 = vadd.f32 %v2022, %v2023
  %v2025 = vadd.f32 %v2015, %v2017
  %v2026 = vrot.slane %v2025, 4
  %v2027 = vadd.f32 %v2025, %v2026
  %v2028 = vrot.slane %v2027, 2
  %v2029 = vadd.f32 %v2027, %v2028
  %v2030 = vrot.slane %v2029, 1
  %v2031 = vadd.f32 %v2029, %v2030
  %v2032 = vmul.f32 %v2024, %v944
  %v2033 = vmul.f32 %v2031, %v944
  %2035 = vrot.lane.b32.xlu0 %v2032, 96
  %v2036 = vpop.permute.xlu0 %2035
  %v2038 = vadd.f32 %v2032, %v2036
  %2039 = vrot.lane.b32.xlu0 %v2032, 64
  %v2040 = vpop.permute.xlu0 %2039
  %v2042 = vadd.f32 %v2038, %v2040
  %2043 = vrot.lane.b32.xlu0 %v2032, 32
  %v2044 = vpop.permute.xlu0 %2043
  %v2046 = vadd.f32 %v2042, %v2044
  %v2047 = vadd.f32 %v2046, %v2033
  %2049 = vrot.lane.b32.xlu0 %v2033, 96
  %v2050 = vpop.permute.xlu0 %2049
  %v2052 = vadd.f32 %v2047, %v2050
  %2053 = vrot.lane.b32.xlu0 %v2033, 64
  %v2054 = vpop.permute.xlu0 %2053
  %v2056 = vadd.f32 %v2052, %v2054
  %2057 = vrot.lane.b32.xlu0 %v2033, 32
  %v2058 = vpop.permute.xlu0 %2057
  %v2060 = vadd.f32 %v2056, %v2058
  %v2061 = vmul.f32 %v2060, 0.125
  %2063 = vrot.lane.b32.xlu0 %v2061, 32
  %v2064 = vpop.permute.xlu0 %2063
  %2066 = vrot.lane.b32.xlu0 %v2061, 64
  %v2067 = vpop.permute.xlu0 %2066
  %2069 = vrot.lane.b32.xlu0 %v2061, 96
  %v2070 = vpop.permute.xlu0 %2069
  %v2072 = vsel %vm985, %v2061, %v2064
  %v2073 = vsel %vm987, %v2072, %v2067
  %v2074 = vsel %vm989, %v2073, %v2070
  %v2075 = vadd.f32 %v2074, 1e-05
  %v2076 = vrsqrt.pop %v2075
  %v2077 = vmul.f32 %v2076, %v2075
  %v2078 = vmul.f32 %v2077, %v2076
  %v2079 = vmul.f32 0.5, %v2078
  %v2080 = vsub.f32 1.5, %v2079
  %v2081 = vmul.f32 %v2076, %v2080
  %vm2082 = vweird.f32 %v2075
  %vm2083 = vweird.f32 %v2076
  %vm2084 = vmor %vm2082, %vm2083
  %v2085 = vsel %vm2084, %v2076, %v2081
  %v2086 = vperm.slane %v2085, 0
  %v2087 = vmul.f32 %v2010, %v2086
  %v2088 = vmul.f32 %v2011, %v2086
  %v2089 = vmul.f32 %v2012, %v2086
  %v2090 = vmul.f32 %v2013, %v2086
  %v2091 = vld [vmem:[%s5] sm:$0x3]
  %v2093 = vperm.slane %v2091, 0
  %v2094 = vperm.slane %v2091, 1
  %v2097 = vmul.f32 %v2087, %v2093
  %v2098 = vmul.f32 %v2088, %v2094
  %v2099 = vmul.f32 %v2089, %v2093
  %v2100 = vmul.f32 %v2090, %v2094
  %v2101 = vld [vmem:[%s6] sm:$0x3]
  %v2103 = vperm.slane %v2101, 0
  %v2104 = vperm.slane %v2101, 1
  %v2107 = vadd.f32 %v2097, %v2103
  %v2108 = vadd.f32 %v2098, %v2104
  %v2109 = vadd.f32 %v2099, %v2103
  %v2110 = vadd.f32 %v2100, %v2104
  %v2111 = vrot.slane %v2107, 4
  %v2112 = vadd.f32 %v2107, %v2111
  %v2113 = vrot.slane %v2112, 2
  %v2114 = vadd.f32 %v2112, %v2113
  %v2115 = vrot.slane %v2114, 1
  %v2116 = vadd.f32 %v2114, %v2115
  %v2117 = vrot.slane %v2108, 4
  %v2118 = vadd.f32 %v2108, %v2117
  %v2119 = vrot.slane %v2118, 2
  %v2120 = vadd.f32 %v2118, %v2119
  %v2121 = vrot.slane %v2120, 1
  %v2122 = vadd.f32 %v2120, %v2121
  %v2123 = vrot.slane %v2109, 4
  %v2124 = vadd.f32 %v2109, %v2123
  %v2125 = vrot.slane %v2124, 2
  %v2126 = vadd.f32 %v2124, %v2125
  %v2127 = vrot.slane %v2126, 1
  %v2128 = vadd.f32 %v2126, %v2127
  %v2129 = vrot.slane %v2110, 4
  %v2130 = vadd.f32 %v2110, %v2129
  %v2131 = vrot.slane %v2130, 2
  %v2132 = vadd.f32 %v2130, %v2131
  %v2133 = vrot.slane %v2132, 1
  %v2134 = vadd.f32 %v2132, %v2133
  %v2135 = vrcp.pop 8.0
  %v2136 = vmul.f32 8.0, %v2135
  %v2137 = vsub.f32 1.0, %v2136
  %v2138 = vmul.f32 %v2135, %v2137
  %v2139 = vadd.f32 %v2135, %v2138
  %vm2140 = vweird.f32 %v2135
  %v2141 = vsel %vm2140, %v2135, %v2139
  %v2142 = vmul.f32 %v2116, %v2141
  %v2143 = vmul.f32 %v2122, %v2141
  %v2144 = vmul.f32 %v2128, %v2141
  %v2145 = vmul.f32 %v2134, %v2141
  %2148 = vrot.lane.b32.xlu0 %v2142, 96
  %v2149 = vpop.permute.xlu0 %2148
  %2150 = vrot.lane.b32.xlu0 %v2144, 96
  %v2151 = vpop.permute.xlu0 %2150
  %v2154 = vadd.f32 %v2142, %v2149
  %v2155 = vadd.f32 %v2144, %v2151
  %2156 = vrot.lane.b32.xlu0 %v2142, 64
  %v2157 = vpop.permute.xlu0 %2156
  %2158 = vrot.lane.b32.xlu0 %v2144, 64
  %v2159 = vpop.permute.xlu0 %2158
  %v2162 = vadd.f32 %v2154, %v2157
  %v2163 = vadd.f32 %v2155, %v2159
  %2164 = vrot.lane.b32.xlu0 %v2142, 32
  %v2165 = vpop.permute.xlu0 %2164
  %2166 = vrot.lane.b32.xlu0 %v2144, 32
  %v2167 = vpop.permute.xlu0 %2166
  %v2170 = vadd.f32 %v2162, %v2165
  %v2171 = vadd.f32 %v2163, %v2167
  %v2172 = vadd.f32 %v2170, %v2143
  %v2173 = vadd.f32 %v2171, %v2145
  %2176 = vrot.lane.b32.xlu0 %v2143, 96
  %v2177 = vpop.permute.xlu0 %2176
  %2178 = vrot.lane.b32.xlu0 %v2145, 96
  %v2179 = vpop.permute.xlu0 %2178
  %v2182 = vadd.f32 %v2172, %v2177
  %v2183 = vadd.f32 %v2173, %v2179
  %2184 = vrot.lane.b32.xlu0 %v2143, 64
  %v2185 = vpop.permute.xlu0 %2184
  %2186 = vrot.lane.b32.xlu0 %v2145, 64
  %v2187 = vpop.permute.xlu0 %2186
  %v2190 = vadd.f32 %v2182, %v2185
  %v2191 = vadd.f32 %v2183, %v2187
  %2192 = vrot.lane.b32.xlu0 %v2143, 32
  %v2193 = vpop.permute.xlu0 %2192
  %2194 = vrot.lane.b32.xlu0 %v2145, 32
  %v2195 = vpop.permute.xlu0 %2194
  %v2198 = vadd.f32 %v2190, %v2193
  %v2199 = vadd.f32 %v2191, %v2195
  %v2200 = vmul.f32 %v2198, 0.125
  %v2201 = vmul.f32 %v2199, 0.125
  %v2202 = vrot.slane %v2107, 4
  %v2203 = vmax.f32 %v2107, %v2202
  %v2204 = vrot.slane %v2203, 2
  %v2205 = vmax.f32 %v2203, %v2204
  %v2206 = vrot.slane %v2205, 1
  %v2207 = vmax.f32 %v2205, %v2206
  %v2208 = vrot.slane %v2108, 4
  %v2209 = vmax.f32 %v2108, %v2208
  %v2210 = vrot.slane %v2209, 2
  %v2211 = vmax.f32 %v2209, %v2210
  %v2212 = vrot.slane %v2211, 1
  %v2213 = vmax.f32 %v2211, %v2212
  %v2214 = vrot.slane %v2109, 4
  %v2215 = vmax.f32 %v2109, %v2214
  %v2216 = vrot.slane %v2215, 2
  %v2217 = vmax.f32 %v2215, %v2216
  %v2218 = vrot.slane %v2217, 1
  %v2219 = vmax.f32 %v2217, %v2218
  %v2220 = vrot.slane %v2110, 4
  %v2221 = vmax.f32 %v2110, %v2220
  %v2222 = vrot.slane %v2221, 2
  %v2223 = vmax.f32 %v2221, %v2222
  %v2224 = vrot.slane %v2223, 1
  %v2225 = vmax.f32 %v2223, %v2224
  %2228 = vrot.lane.b32.xlu0 %v2207, 96
  %v2229 = vpop.permute.xlu0 %2228
  %2230 = vrot.lane.b32.xlu0 %v2219, 96
  %v2231 = vpop.permute.xlu0 %2230
  %v2234 = vmax.f32 %v2207, %v2229
  %v2235 = vmax.f32 %v2219, %v2231
  %2236 = vrot.lane.b32.xlu0 %v2207, 64
  %v2237 = vpop.permute.xlu0 %2236
  %2238 = vrot.lane.b32.xlu0 %v2219, 64
  %v2239 = vpop.permute.xlu0 %2238
  %v2242 = vmax.f32 %v2234, %v2237
  %v2243 = vmax.f32 %v2235, %v2239
  %2244 = vrot.lane.b32.xlu0 %v2207, 32
  %v2245 = vpop.permute.xlu0 %2244
  %2246 = vrot.lane.b32.xlu0 %v2219, 32
  %v2247 = vpop.permute.xlu0 %2246
  %v2250 = vmax.f32 %v2242, %v2245
  %v2251 = vmax.f32 %v2243, %v2247
  %v2252 = vmax.f32 %v2250, %v2213
  %v2253 = vmax.f32 %v2251, %v2225
  %2256 = vrot.lane.b32.xlu0 %v2213, 96
  %v2257 = vpop.permute.xlu0 %2256
  %2258 = vrot.lane.b32.xlu0 %v2225, 96
  %v2259 = vpop.permute.xlu0 %2258
  %v2262 = vmax.f32 %v2252, %v2257
  %v2263 = vmax.f32 %v2253, %v2259
  %2264 = vrot.lane.b32.xlu0 %v2213, 64
  %v2265 = vpop.permute.xlu0 %2264
  %2266 = vrot.lane.b32.xlu0 %v2225, 64
  %v2267 = vpop.permute.xlu0 %2266
  %v2270 = vmax.f32 %v2262, %v2265
  %v2271 = vmax.f32 %v2263, %v2267
  %2272 = vrot.lane.b32.xlu0 %v2213, 32
  %v2273 = vpop.permute.xlu0 %2272
  %2274 = vrot.lane.b32.xlu0 %v2225, 32
  %v2275 = vpop.permute.xlu0 %2274
  %v2278 = vmax.f32 %v2270, %v2273
  %v2279 = vmax.f32 %v2271, %v2275
  %v2282 = vrot.slane %v2201, 7
  %vm2283 = vcmask 1041409
  %v2284 = vsel %vm2283, %v2282, %v2200
  %v2288 = vrot.slane %v2278, 6
  %v2289 = vrot.slane %v2279, 5
  %vm2290 = vcmask 1043459
  %v2291 = vsel %vm2290, %v2289, %v2288
  %vm2293 = vcmask 1041408
  %v2294 = vsel %vm2293, %v2284, %v2291
  %v2295 = vpack.c.bf16 %v2294, %v2294
  %v2296 = vld [vmem:[%s7] sm:$0xf]
  %v2297 = vld [vmem:[%s7 + $0x4] sm:$0xf]
  %v2298 = vld [vmem:[%s7 + $0x8] sm:$0xf]
  %v2299 = vld [vmem:[%s7 + $0xc] sm:$0xf]
  %v2304 = vunpack.c.l.b16 %v2296
  %v2305 = vunpack.c.l.b16 %v2297
  %v2306 = vunpack.c.l.b16 %v2298
  %v2307 = vunpack.c.l.b16 %v2299
  %v2308 = vpack.c.b16 %v2305, %v2304
  %v2309 = vpack.c.b16 %v2307, %v2306
  %v2313 = vsel %vm985, %v2295, 0
  %2315 = vmatpush.bf16.msra.mxu0 0
  %2316 = vmatpush.bf16.msra.mxu0 0
  %2317 = vmatpush.bf16.msra.mxu0 0
  %2318 = vmatpush.bf16.msra.mxu0 0
  %2319 = vmatpush.bf16.msra.mxu0 0
  %2320 = vmatpush.bf16.msra.mxu0 0
  %2321 = vmatpush.bf16.msra.mxu0 %v2309
  %2322 = vmatpush.bf16.msra.mxu0 %v2308
  %2323 = vmatmul.bf16.gmra.mxu0 %v2313
  %v2324 = vpop.f32.mrf.mxu0
  %v2325 = vadd.f32 0.0, %v2324
  %v2326 = vpop.f32.mrf.mxu0
  %2327 = vdwg.mxu0
  %v2328 = vmax.f32 %v2325, 0.0
  %v2329 = vpack.c.bf16 %v2328, %v2328
  %v2330 = vld [vmem:[%s8] sm:$0x1]
  %vm2331 = vcmask 15360
  %v2333 = vsel %vm2331, %v2329, 0
  %vm2335 = vcmask 1040384
  %v2337 = vsel %vm2335, %v2330, 0
  %2339 = vmatpush.bf16.msra.mxu0 0
  %2340 = vmatpush.bf16.msra.mxu0 0
  %2341 = vmatpush.bf16.msra.mxu0 0
  %2342 = vmatpush.bf16.msra.mxu0 0
  %2343 = vmatpush.bf16.msra.mxu0 0
  %2344 = vmatpush.bf16.msra.mxu0 0
  %2345 = vmatpush.bf16.msra.mxu0 0
  %2346 = vmatpush.bf16.msra.mxu0 %v2337
  %2347 = vmatmul.bf16.gmra.mxu0 %v2333
  %v2348 = vpop.f32.mrf.mxu0
  %v2349 = vadd.f32 0.0, %v2348
  %v2350 = vpop.f32.mrf.mxu0
  %2351 = vdwg.mxu0
  %v2353 = vrot.slane %v2349, 2
  %v2355 = vadd.f32 %v2349, %v2353
  %v2356 = vxor.u32 %v2355, 2147483648
  %v2357 = vmul.f32 %v2356, 1.442695
  %v2358 = vpow.pop %v2357
  %v2359 = vadd.f32 %v2358, 1.0
  %v2360 = vrcp.pop %v2359
  %v2361 = vmul.f32 %v2359, %v2360
  %v2362 = vsub.f32 1.0, %v2361
  %v2363 = vmul.f32 %v2360, %v2362
  %v2364 = vadd.f32 %v2360, %v2363
  %vm2365 = vweird.f32 %v2359
  %vm2366 = vweird.f32 %v2360
  %vm2367 = vmor %vm2365, %vm2366
  %v2368 = vsel %vm2367, %v2360, %v2364
  %v2369 = vand.u32 2147483647, %v2359
  %vm2370 = vcmp.eq.f32.partialorder %v2369, 8.507059e+37
  %v2371 = vand.u32 %v2359, 2147483648
  %v2372 = vor.u32 1.1754944e-38, %v2371
  %v2373 = vsel %vm2370, %v2372, %v2368
  %v2374 = vmul.f32 1.0, %v2373
  %2376 = vrot.lane.b32.xlu0 %v2374, 32
  %v2377 = vpop.permute.xlu0 %2376
  %2379 = vrot.lane.b32.xlu0 %v2374, 64
  %v2380 = vpop.permute.xlu0 %2379
  %2382 = vrot.lane.b32.xlu0 %v2374, 96
  %v2383 = vpop.permute.xlu0 %2382
  %v2385 = vsel %vm985, %v2374, %v2377
  %v2386 = vsel %vm987, %v2385, %v2380
  %v2387 = vsel %vm989, %v2386, %v2383
  %v2389 = vrot.slane %v2387, 7
  %v2390 = vsel %vm2335, %v2387, %v2389
  %v2391 = vsel %vm2283, %v2387, %v2389
  %v2392 = vrot.slane %v2391, 1
  %v2393 = vperm.slane %v2390, 0
  %v2394 = vperm.slane %v2390, 1
  %v2395 = vperm.slane %v2392, 0
  %v2396 = vperm.slane %v2392, 1
  %v2401 = vmul.f32 %v2107, %v2393
  %v2402 = vmul.f32 %v2108, %v2394
  %v2403 = vmul.f32 %v2109, %v2395
  %v2404 = vmul.f32 %v2110, %v2396
  %v2405 = vsel %vm985, %v2401, 0.0
  %2406 = vadd.xlane.f32.xlu0 %v2405
  %v2407 = vpop.xlane.xlu0 %2406
  %v2408 = vsel %vm985, %v2403, 0.0
  %2409 = vadd.xlane.f32.xlu0 %v2408
  %v2410 = vpop.xlane.xlu0 %2409
  %v2411 = vrcp.pop 32.0
  %v2412 = vmul.f32 32.0, %v2411
  %v2413 = vsub.f32 1.0, %v2412
  %v2414 = vmul.f32 %v2411, %v2413
  %v2415 = vadd.f32 %v2411, %v2414
  %vm2416 = vweird.f32 %v2411
  %v2417 = vsel %vm2416, %v2411, %v2415
  %v2418 = vmul.f32 %v2407, %v2417
  %v2419 = vmul.f32 %v2410, %v2417
  %v2420 = vsel %vm985, %v2401, -inf
  %2421 = vmax.xlane.f32.xlu0 %v2420
  %v2422 = vpop.xlane.xlu0 %2421
  %v2423 = vsel %vm985, %v2403, -inf
  %2424 = vmax.xlane.f32.xlu0 %v2423
  %v2425 = vpop.xlane.xlu0 %2424
  %2428 = vrot.lane.b32.xlu0 %v2401, 96
  %v2429 = vpop.permute.xlu0 %2428
  %2430 = vrot.lane.b32.xlu0 %v2403, 96
  %v2431 = vpop.permute.xlu0 %2430
  %v2434 = vsel %vm985, %v2429, 0.0
  %2435 = vadd.xlane.f32.xlu0 %v2434
  %v2436 = vpop.xlane.xlu0 %2435
  %v2437 = vsel %vm985, %v2431, 0.0
  %2438 = vadd.xlane.f32.xlu0 %v2437
  %v2439 = vpop.xlane.xlu0 %2438
  %v2440 = vmul.f32 %v2436, %v2417
  %v2441 = vmul.f32 %v2439, %v2417
  %vm2442 = vcmask 523520
  %v2443 = vsel %vm2442, %v2401, -inf
  %2444 = vmax.xlane.f32.xlu0 %v2443
  %v2445 = vpop.xlane.xlu0 %2444
  %v2446 = vsel %vm2442, %v2403, -inf
  %2447 = vmax.xlane.f32.xlu0 %v2446
  %v2448 = vpop.xlane.xlu0 %2447
  %2449 = vrot.lane.b32.xlu0 %v2401, 64
  %v2450 = vpop.permute.xlu0 %2449
  %2451 = vrot.lane.b32.xlu0 %v2403, 64
  %v2452 = vpop.permute.xlu0 %2451
  %v2455 = vsel %vm985, %v2450, 0.0
  %2456 = vadd.xlane.f32.xlu0 %v2455
  %v2457 = vpop.xlane.xlu0 %2456
  %v2458 = vsel %vm985, %v2452, 0.0
  %2459 = vadd.xlane.f32.xlu0 %v2458
  %v2460 = vpop.xlane.xlu0 %2459
  %v2461 = vmul.f32 %v2457, %v2417
  %v2462 = vmul.f32 %v2460, %v2417
  %vm2463 = vcmask 785920
  %v2464 = vsel %vm2463, %v2401, -inf
  %2465 = vmax.xlane.f32.xlu0 %v2464
  %v2466 = vpop.xlane.xlu0 %2465
  %v2467 = vsel %vm2463, %v2403, -inf
  %2468 = vmax.xlane.f32.xlu0 %v2467
  %v2469 = vpop.xlane.xlu0 %2468
  %2470 = vrot.lane.b32.xlu0 %v2401, 32
  %v2471 = vpop.permute.xlu0 %2470
  %2472 = vrot.lane.b32.xlu0 %v2403, 32
  %v2473 = vpop.permute.xlu0 %2472
  %v2476 = vsel %vm985, %v2471, 0.0
  %2477 = vadd.xlane.f32.xlu0 %v2476
  %v2478 = vpop.xlane.xlu0 %2477
  %v2479 = vsel %vm985, %v2473, 0.0
  %2480 = vadd.xlane.f32.xlu0 %v2479
  %v2481 = vpop.xlane.xlu0 %2480
  %v2482 = vmul.f32 %v2478, %v2417
  %v2483 = vmul.f32 %v2481, %v2417
  %vm2484 = vcmask 1048320
  %v2485 = vsel %vm2484, %v2401, -inf
  %2486 = vmax.xlane.f32.xlu0 %v2485
  %v2487 = vpop.xlane.xlu0 %2486
  %v2488 = vsel %vm2484, %v2403, -inf
  %2489 = vmax.xlane.f32.xlu0 %v2488
  %v2490 = vpop.xlane.xlu0 %2489
  %v2491 = vsel %vm985, %v2402, 0.0
  %2492 = vadd.xlane.f32.xlu0 %v2491
  %v2493 = vpop.xlane.xlu0 %2492
  %v2494 = vsel %vm985, %v2404, 0.0
  %2495 = vadd.xlane.f32.xlu0 %v2494
  %v2496 = vpop.xlane.xlu0 %2495
  %v2497 = vmul.f32 %v2493, %v2417
  %v2498 = vmul.f32 %v2496, %v2417
  %v2499 = vsel %vm985, %v2402, -inf
  %2500 = vmax.xlane.f32.xlu0 %v2499
  %v2501 = vpop.xlane.xlu0 %2500
  %v2502 = vsel %vm985, %v2404, -inf
  %2503 = vmax.xlane.f32.xlu0 %v2502
  %v2504 = vpop.xlane.xlu0 %2503
  %2507 = vrot.lane.b32.xlu0 %v2402, 96
  %v2508 = vpop.permute.xlu0 %2507
  %2509 = vrot.lane.b32.xlu0 %v2404, 96
  %v2510 = vpop.permute.xlu0 %2509
  %v2513 = vsel %vm985, %v2508, 0.0
  %2514 = vadd.xlane.f32.xlu0 %v2513
  %v2515 = vpop.xlane.xlu0 %2514
  %v2516 = vsel %vm985, %v2510, 0.0
  %2517 = vadd.xlane.f32.xlu0 %v2516
  %v2518 = vpop.xlane.xlu0 %2517
  %v2519 = vmul.f32 %v2515, %v2417
  %v2520 = vmul.f32 %v2518, %v2417
  %v2521 = vsel %vm2442, %v2402, -inf
  %2522 = vmax.xlane.f32.xlu0 %v2521
  %v2523 = vpop.xlane.xlu0 %2522
  %v2524 = vsel %vm2442, %v2404, -inf
  %2525 = vmax.xlane.f32.xlu0 %v2524
  %v2526 = vpop.xlane.xlu0 %2525
  %2527 = vrot.lane.b32.xlu0 %v2402, 64
  %v2528 = vpop.permute.xlu0 %2527
  %2529 = vrot.lane.b32.xlu0 %v2404, 64
  %v2530 = vpop.permute.xlu0 %2529
  %v2533 = vsel %vm985, %v2528, 0.0
  %2534 = vadd.xlane.f32.xlu0 %v2533
  %v2535 = vpop.xlane.xlu0 %2534
  %v2536 = vsel %vm985, %v2530, 0.0
  %2537 = vadd.xlane.f32.xlu0 %v2536
  %v2538 = vpop.xlane.xlu0 %2537
  %v2539 = vmul.f32 %v2535, %v2417
  %v2540 = vmul.f32 %v2538, %v2417
  %v2541 = vsel %vm2463, %v2402, -inf
  %2542 = vmax.xlane.f32.xlu0 %v2541
  %v2543 = vpop.xlane.xlu0 %2542
  %v2544 = vsel %vm2463, %v2404, -inf
  %2545 = vmax.xlane.f32.xlu0 %v2544
  %v2546 = vpop.xlane.xlu0 %2545
  %2547 = vrot.lane.b32.xlu0 %v2402, 32
  %v2548 = vpop.permute.xlu0 %2547
  %2549 = vrot.lane.b32.xlu0 %v2404, 32
  %v2550 = vpop.permute.xlu0 %2549
  %v2553 = vsel %vm985, %v2548, 0.0
  %2554 = vadd.xlane.f32.xlu0 %v2553
  %v2555 = vpop.xlane.xlu0 %2554
  %v2556 = vsel %vm985, %v2550, 0.0
  %2557 = vadd.xlane.f32.xlu0 %v2556
  %v2558 = vpop.xlane.xlu0 %2557
  %v2559 = vmul.f32 %v2555, %v2417
  %v2560 = vmul.f32 %v2558, %v2417
  %v2561 = vsel %vm2484, %v2402, -inf
  %2562 = vmax.xlane.f32.xlu0 %v2561
  %v2563 = vpop.xlane.xlu0 %2562
  %v2564 = vsel %vm2484, %v2404, -inf
  %2565 = vmax.xlane.f32.xlu0 %v2564
  %v2566 = vpop.xlane.xlu0 %2565
  %vm2567 = vcmask 7168
  %v2568 = vsel %vm2567, %v2418, %v2440
  %v2569 = vsel %vm2567, %v2419, %v2441
  %v2570 = vsel %vm2331, %v2568, %v2461
  %v2571 = vsel %vm2331, %v2569, %v2462
  %vm2572 = vcmask 23552
  %v2573 = vsel %vm2572, %v2570, %v2482
  %v2574 = vsel %vm2572, %v2571, %v2483
  %vm2575 = vcmask 31744
  %v2576 = vsel %vm2575, %v2573, %v2497
  %v2577 = vsel %vm2575, %v2574, %v2498
  %vm2578 = vcmask 39936
  %v2579 = vsel %vm2578, %v2576, %v2519
  %v2580 = vsel %vm2578, %v2577, %v2520
  %vm2581 = vcmask 48128
  %v2582 = vsel %vm2581, %v2579, %v2539
  %v2583 = vsel %vm2581, %v2580, %v2540
  %vm2584 = vcmask 56320
  %v2585 = vsel %vm2584, %v2582, %v2559
  %v2586 = vsel %vm2584, %v2583, %v2560
  %vm2587 = vcmask 64512
  %v2588 = vsel %vm2587, %v2585, %v2422
  %v2589 = vsel %vm2587, %v2586, %v2425
  %vm2590 = vcmask 72704
  %v2591 = vsel %vm2590, %v2588, %v2445
  %v2592 = vsel %vm2590, %v2589, %v2448
  %vm2593 = vcmask 80896
  %v2594 = vsel %vm2593, %v2591, %v2466
  %v2595 = vsel %vm2593, %v2592, %v2469
  %vm2596 = vcmask 89088
  %v2597 = vsel %vm2596, %v2594, %v2487
  %v2598 = vsel %vm2596, %v2595, %v2490
  %vm2599 = vcmask 97280
  %v2600 = vsel %vm2599, %v2597, %v2501
  %v2601 = vsel %vm2599, %v2598, %v2504
  %vm2602 = vcmask 105472
  %v2603 = vsel %vm2602, %v2600, %v2523
  %v2604 = vsel %vm2602, %v2601, %v2526
  %vm2605 = vcmask 113664
  %v2606 = vsel %vm2605, %v2603, %v2543
  %v2607 = vsel %vm2605, %v2604, %v2546
  %vm2608 = vcmask 121856
  %v2609 = vsel %vm2608, %v2606, %v2563
  %v2610 = vsel %vm2608, %v2607, %v2566
  %vm2611 = vcmask 125952
  %2612 = vst.msk [vmem:[#allocation3] sm:$0xf] %vm2611, 0
  %vm2613 = vcmask 124928
  %2614 = vst.msk [vmem:[#allocation3 + $0x4] sm:$0x7] %vm2613, 0
  %2615 = vst.msk [vmem:[#allocation3 + $0x8] sm:$0xf] %vm2611, 0
  %2616 = vst.msk [vmem:[#allocation3 + $0xc] sm:$0x7] %vm2613, 0
  %v2617 = vpack.c.bf16 %v2609, %v2609
  %v2618 = vpack.c.bf16 %v2610, %v2610
  %v2620 = vshrl.u32 %v2617, 16
  %v2622 = vrot.slane %v2620, 6
  %v2623 = vshll.u32 %v2617, 16
  %v2625 = vrot.slane %v2623, 7
  %v2626 = vor.u32 %v2622, %v2625
  %v2627 = vrot.slane %v2626, 4
  %v2629 = vshrl.u32 %v2618, 16
  %v2631 = vrot.slane %v2629, 6
  %v2632 = vshll.u32 %v2618, 16
  %v2634 = vrot.slane %v2632, 7
  %v2635 = vor.u32 %v2631, %v2634
  %v2636 = vrot.slane %v2635, 4
  %vm2641 = vcmask 125953
  %vm2642 = vsmask.f32 7942
  %vm2643 = vmand %vm2641, %vm2642
  %v2644 = vld [vmem:[#allocation3] sm:$0xe]
  %v2645 = vsel %vm2643, %v2626, %v2644
  %2646 = vst [vmem:[#allocation3] sm:$0xe] %v2645
  %vm2647 = vcmask 123904
  %vm2648 = vsmask.f32 1280
  %vm2649 = vmand %vm2647, %vm2648
  %v2650 = vld [vmem:[#allocation3 + $0x4] sm:$0x3]
  %v2651 = vsel %vm2649, %v2627, %v2650
  %2652 = vst [vmem:[#allocation3 + $0x4] sm:$0x3] %v2651
  %v2653 = vld [vmem:[#allocation3 + $0x8] sm:$0xe]
  %v2654 = vsel %vm2643, %v2635, %v2653
  %2655 = vst [vmem:[#allocation3 + $0x8] sm:$0xe] %v2654
  %v2656 = vld [vmem:[#allocation3 + $0xc] sm:$0x3]
  %v2657 = vsel %vm2649, %v2636, %v2656
  %2658 = vst [vmem:[#allocation3 + $0xc] sm:$0x3] %v2657
  %v2659 = vld [vmem:[#allocation3] sm:$0xf]
  %v2660 = vld [vmem:[#allocation3 + $0x8] sm:$0xf]
  %v2661 = vld [vmem:[%s9] sm:$0xf]
  %v2662 = vld [vmem:[%s9 + $0x4] sm:$0xf]
  %v2663 = vld [vmem:[#allocation3 + $0x4] sm:$0x1]
  %v2664 = vld [vmem:[#allocation3 + $0xc] sm:$0x1]
  %v2666 = vshrl.u32 %v2659, 16
  %v2668 = vrot.slane %v2666, 4
  %v2669 = vshll.u32 %v2659, 16
  %v2671 = vrot.slane %v2669, 5
  %v2672 = vor.u32 %v2668, %v2671
  %v2673 = vrot.slane %v2672, 4
  %v2675 = vshll.u32 %v2663, 16
  %v2677 = vrot.slane %v2675, 5
  %v2678 = vsel %vm134, %v2673, %v2677
  %v2680 = vshrl.u32 %v2660, 16
  %v2682 = vrot.slane %v2680, 4
  %v2683 = vshll.u32 %v2660, 16
  %v2685 = vrot.slane %v2683, 5
  %v2686 = vor.u32 %v2682, %v2685
  %v2687 = vrot.slane %v2686, 4
  %v2689 = vshll.u32 %v2664, 16
  %v2691 = vrot.slane %v2689, 5
  %v2692 = vsel %vm134, %v2687, %v2691
  %s2693 = scalar_lea.vmem %s9, 8
  %v2694 = vld [vmem:[%s2693] sm:$0xf]
  %v2695 = vld [vmem:[%s2693 + $0x4] sm:$0xf]
  %v2696 = vunpack.c.l.b16 %v2678
  %v2697 = vunpack.c.l.b16 %v2692
  %v2698 = vpack.c.b16 %v2697, %v2696
  %v2701 = vunpack.c.l.b16 %v2694
  %v2702 = vunpack.c.l.b16 %v2695
  %v2703 = vpack.c.b16 %v2702, %v2701
  %vm2705 = vcmask 130048
  %v2707 = vsel %vm2705, %v2698, 0
  %2709 = vmatpush.bf16.msra.mxu0 0
  %2710 = vmatpush.bf16.msra.mxu0 0
  %2711 = vmatpush.bf16.msra.mxu0 0
  %2712 = vmatpush.bf16.msra.mxu0 0
  %2713 = vmatpush.bf16.msra.mxu0 0
  %2714 = vmatpush.bf16.msra.mxu0 0
  %2715 = vmatpush.bf16.msra.mxu0 0
  %2716 = vmatpush.bf16.msra.mxu0 %v2703
  %2717 = vmatmul.bf16.gmra.mxu0 %v2707
  %v2718 = vpop.f32.mrf.mxu0
  %v2719 = vadd.f32 0.0, %v2718
  %v2720 = vpop.f32.mrf.mxu0
  %v2721 = vadd.f32 0.0, %v2720
  %2722 = vdwg.mxu0
  %v2725 = vunpack.c.l.b16 %v2659
  %v2726 = vunpack.c.l.b16 %v2660
  %v2727 = vpack.c.b16 %v2726, %v2725
  %v2730 = vunpack.c.l.b16 %v2661
  %v2731 = vunpack.c.l.b16 %v2662
  %v2732 = vpack.c.b16 %v2731, %v2730
  %v2735 = vsel %vm2705, %v2727, 0
  %2737 = vmatpush.bf16.msra.mxu0 0
  %2738 = vmatpush.bf16.msra.mxu0 0
  %2739 = vmatpush.bf16.msra.mxu0 0
  %2740 = vmatpush.bf16.msra.mxu0 0
  %2741 = vmatpush.bf16.msra.mxu0 0
  %2742 = vmatpush.bf16.msra.mxu0 0
  %2743 = vmatpush.bf16.msra.mxu0 0
  %2744 = vmatpush.bf16.msra.mxu0 %v2732
  %2745 = vmatmul.bf16.gmra.mxu0 %v2735
  %v2746 = vpop.f32.mrf.mxu0
  %v2747 = vadd.f32 %v2719, %v2746
  %v2748 = vpop.f32.mrf.mxu0
  %v2749 = vadd.f32 %v2721, %v2748
  %2750 = vdwg.mxu0
  %v2751 = vld [vmem:[#allocation3] sm:$0xe]
  %v2752 = vld [vmem:[#allocation3 + $0x8] sm:$0xe]
  %v2757 = vrot.slane %v2751, 5
  %v2758 = vrot.slane %v2757, 4
  %v2759 = vrot.slane %v2663, 5
  %v2760 = vsel %vm654, %v2758, %v2759
  %v2761 = vrot.slane %v2752, 5
  %v2762 = vrot.slane %v2761, 4
  %v2763 = vrot.slane %v2664, 5
  %v2764 = vsel %vm654, %v2762, %v2763
  %s2765 = scalar_lea.vmem %s9, 16
  %v2766 = vld [vmem:[%s2765] sm:$0xf]
  %v2767 = vld [vmem:[%s2765 + $0x4] sm:$0xf]
  %v2768 = vunpack.c.l.b16 %v2760
  %v2769 = vunpack.c.l.b16 %v2764
  %v2770 = vpack.c.b16 %v2769, %v2768
  %v2773 = vunpack.c.l.b16 %v2766
  %v2774 = vunpack.c.l.b16 %v2767
  %v2775 = vpack.c.b16 %v2774, %v2773
  %v2778 = vsel %vm2705, %v2770, 0
  %2780 = vmatpush.bf16.msra.mxu0 0
  %2781 = vmatpush.bf16.msra.mxu0 0
  %2782 = vmatpush.bf16.msra.mxu0 0
  %2783 = vmatpush.bf16.msra.mxu0 0
  %2784 = vmatpush.bf16.msra.mxu0 0
  %2785 = vmatpush.bf16.msra.mxu0 0
  %2786 = vmatpush.bf16.msra.mxu0 0
  %2787 = vmatpush.bf16.msra.mxu0 %v2775
  %2788 = vmatmul.bf16.gmra.mxu0 %v2778
  %v2789 = vpop.f32.mrf.mxu0
  %v2790 = vadd.f32 0.0, %v2789
  %v2791 = vpop.f32.mrf.mxu0
  %v2792 = vadd.f32 0.0, %v2791
  %2793 = vdwg.mxu0
  %v2794 = vadd.f32 %v2747, %v2790
  %v2795 = vadd.f32 %v2749, %v2792
  %v2796 = vld [vmem:[#allocation3 + $0x4] sm:$0x3]
  %v2797 = vld [vmem:[#allocation3 + $0xc] sm:$0x3]
  %vm2798 = vsmask.f32 2304
  %vm2799 = vsmask.f32 6416
  %vm2800 = vmor %vm2798, %vm2799
  %v2802 = vshrl.u32 %v2751, 16
  %v2804 = vrot.slane %v2802, 5
  %v2805 = vshll.u32 %v2751, 16
  %v2807 = vrot.slane %v2805, 6
  %v2808 = vor.u32 %v2804, %v2807
  %v2809 = vrot.slane %v2808, 4
  %v2811 = vshrl.u32 %v2796, 16
  %v2813 = vrot.slane %v2811, 5
  %v2814 = vshll.u32 %v2796, 16
  %v2816 = vrot.slane %v2814, 6
  %v2817 = vor.u32 %v2813, %v2816
  %v2818 = vsel %vm2800, %v2809, %v2817
  %v2820 = vshrl.u32 %v2752, 16
  %v2822 = vrot.slane %v2820, 5
  %v2823 = vshll.u32 %v2752, 16
  %v2825 = vrot.slane %v2823, 6
  %v2826 = vor.u32 %v2822, %v2825
  %v2827 = vrot.slane %v2826, 4
  %v2829 = vshrl.u32 %v2797, 16
  %v2831 = vrot.slane %v2829, 5
  %v2832 = vshll.u32 %v2797, 16
  %v2834 = vrot.slane %v2832, 6
  %v2835 = vor.u32 %v2831, %v2834
  %v2836 = vsel %vm2800, %v2827, %v2835
  %s2837 = scalar_lea.vmem %s9, 24
  %v2838 = vld [vmem:[%s2837] sm:$0xf]
  %v2839 = vld [vmem:[%s2837 + $0x4] sm:$0xf]
  %v2840 = vunpack.c.l.b16 %v2818
  %v2841 = vunpack.c.l.b16 %v2836
  %v2842 = vpack.c.b16 %v2841, %v2840
  %v2845 = vunpack.c.l.b16 %v2838
  %v2846 = vunpack.c.l.b16 %v2839
  %v2847 = vpack.c.b16 %v2846, %v2845
  %v2850 = vsel %vm2705, %v2842, 0
  %2852 = vmatpush.bf16.msra.mxu0 0
  %2853 = vmatpush.bf16.msra.mxu0 0
  %2854 = vmatpush.bf16.msra.mxu0 0
  %2855 = vmatpush.bf16.msra.mxu0 0
  %2856 = vmatpush.bf16.msra.mxu0 0
  %2857 = vmatpush.bf16.msra.mxu0 0
  %2858 = vmatpush.bf16.msra.mxu0 0
  %2859 = vmatpush.bf16.msra.mxu0 %v2847
  %2860 = vmatmul.bf16.gmra.mxu0 %v2850
  %v2861 = vpop.f32.mrf.mxu0
  %v2862 = vadd.f32 0.0, %v2861
  %v2863 = vpop.f32.mrf.mxu0
  %v2864 = vadd.f32 0.0, %v2863
  %2865 = vdwg.mxu0
  %v2866 = vadd.f32 %v2794, %v2862
  %v2867 = vadd.f32 %v2795, %v2864
  %v2868 = vld [vmem:[#allocation3] sm:$0xc]
  %v2869 = vld [vmem:[#allocation3 + $0x8] sm:$0xc]
  %vm2874 = vcmask 1041408
  %vm2875 = vcmask 1045508
  %vm2876 = vmor %vm2874, %vm2875
  %v2877 = vrot.slane %v2868, 6
  %v2878 = vrot.slane %v2877, 4
  %v2879 = vrot.slane %v2796, 6
  %v2880 = vsel %vm2876, %v2878, %v2879
  %v2881 = vrot.slane %v2869, 6
  %v2882 = vrot.slane %v2881, 4
  %v2883 = vrot.slane %v2797, 6
  %v2884 = vsel %vm2876, %v2882, %v2883
  %s2885 = scalar_lea.vmem %s9, 32
  %v2886 = vld [vmem:[%s2885] sm:$0xf]
  %v2887 = vld [vmem:[%s2885 + $0x4] sm:$0xf]
  %v2888 = vunpack.c.l.b16 %v2880
  %v2889 = vunpack.c.l.b16 %v2884
  %v2890 = vpack.c.b16 %v2889, %v2888
  %v2893 = vunpack.c.l.b16 %v2886
  %v2894 = vunpack.c.l.b16 %v2887
  %v2895 = vpack.c.b16 %v2894, %v2893
  %v2898 = vsel %vm2705, %v2890, 0
  %2900 = vmatpush.bf16.msra.mxu0 0
  %2901 = vmatpush.bf16.msra.mxu0 0
  %2902 = vmatpush.bf16.msra.mxu0 0
  %2903 = vmatpush.bf16.msra.mxu0 0
  %2904 = vmatpush.bf16.msra.mxu0 0
  %2905 = vmatpush.bf16.msra.mxu0 0
  %2906 = vmatpush.bf16.msra.mxu0 0
  %2907 = vmatpush.bf16.msra.mxu0 %v2895
  %2908 = vmatmul.bf16.gmra.mxu0 %v2898
  %v2909 = vpop.f32.mrf.mxu0
  %v2910 = vadd.f32 0.0, %v2909
  %v2911 = vpop.f32.mrf.mxu0
  %v2912 = vadd.f32 0.0, %v2911
  %2913 = vdwg.mxu0
  %v2914 = vadd.f32 %v2866, %v2910
  %v2915 = vadd.f32 %v2867, %v2912
  %v2916 = vld [vmem:[#allocation3 + $0x4] sm:$0x7]
  %v2917 = vld [vmem:[#allocation3 + $0xc] sm:$0x7]
  %vm2918 = vsmask.f32 5392
  %vm2919 = vmor %vm2648, %vm2918
  %v2921 = vshrl.u32 %v2868, 16
  %v2923 = vrot.slane %v2921, 6
  %v2924 = vshll.u32 %v2868, 16
  %v2926 = vrot.slane %v2924, 7
  %v2927 = vor.u32 %v2923, %v2926
  %v2928 = vrot.slane %v2927, 4
  %v2930 = vshrl.u32 %v2916, 16
  %v2932 = vrot.slane %v2930, 6
  %v2933 = vshll.u32 %v2916, 16
  %v2935 = vrot.slane %v2933, 7
  %v2936 = vor.u32 %v2932, %v2935
  %v2937 = vsel %vm2919, %v2928, %v2936
  %v2939 = vshrl.u32 %v2869, 16
  %v2941 = vrot.slane %v2939, 6
  %v2942 = vshll.u32 %v2869, 16
  %v2944 = vrot.slane %v2942, 7
  %v2945 = vor.u32 %v2941, %v2944
  %v2946 = vrot.slane %v2945, 4
  %v2948 = vshrl.u32 %v2917, 16
  %v2950 = vrot.slane %v2948, 6
  %v2951 = vshll.u32 %v2917, 16
  %v2953 = vrot.slane %v2951, 7
  %v2954 = vor.u32 %v2950, %v2953
  %v2955 = vsel %vm2919, %v2946, %v2954
  %s2956 = scalar_lea.vmem %s9, 40
  %v2957 = vld [vmem:[%s2956] sm:$0xf]
  %v2958 = vld [vmem:[%s2956 + $0x4] sm:$0xf]
  %v2959 = vunpack.c.l.b16 %v2937
  %v2960 = vunpack.c.l.b16 %v2955
  %v2961 = vpack.c.b16 %v2960, %v2959
  %v2964 = vunpack.c.l.b16 %v2957
  %v2965 = vunpack.c.l.b16 %v2958
  %v2966 = vpack.c.b16 %v2965, %v2964
  %v2969 = vsel %vm2705, %v2961, 0
  %2971 = vmatpush.bf16.msra.mxu0 0
  %2972 = vmatpush.bf16.msra.mxu0 0
  %2973 = vmatpush.bf16.msra.mxu0 0
  %2974 = vmatpush.bf16.msra.mxu0 0
  %2975 = vmatpush.bf16.msra.mxu0 0
  %2976 = vmatpush.bf16.msra.mxu0 0
  %2977 = vmatpush.bf16.msra.mxu0 0
  %2978 = vmatpush.bf16.msra.mxu0 %v2966
  %2979 = vmatmul.bf16.gmra.mxu0 %v2969
  %v2980 = vpop.f32.mrf.mxu0
  %v2981 = vadd.f32 0.0, %v2980
  %v2982 = vpop.f32.mrf.mxu0
  %v2983 = vadd.f32 0.0, %v2982
  %2984 = vdwg.mxu0
  %v2985 = vadd.f32 %v2914, %v2981
  %v2986 = vadd.f32 %v2915, %v2983
  %v2987 = vld [vmem:[#allocation3] sm:$0x8]
  %v2988 = vld [vmem:[#allocation3 + $0x8] sm:$0x8]
  %vm2993 = vmor %vm80, %vm83
  %v2994 = vrot.slane %v2987, 7
  %v2995 = vrot.slane %v2994, 4
  %v2996 = vrot.slane %v2916, 7
  %v2997 = vsel %vm2993, %v2995, %v2996
  %v2998 = vrot.slane %v2988, 7
  %v2999 = vrot.slane %v2998, 4
  %v3000 = vrot.slane %v2917, 7
  %v3001 = vsel %vm2993, %v2999, %v3000
  %s3002 = scalar_lea.vmem %s9, 48
  %v3003 = vld [vmem:[%s3002] sm:$0xf]
  %v3004 = vld [vmem:[%s3002 + $0x4] sm:$0xf]
  %v3005 = vunpack.c.l.b16 %v2997
  %v3006 = vunpack.c.l.b16 %v3001
  %v3007 = vpack.c.b16 %v3006, %v3005
  %v3010 = vunpack.c.l.b16 %v3003
  %v3011 = vunpack.c.l.b16 %v3004
  %v3012 = vpack.c.b16 %v3011, %v3010
  %v3015 = vsel %vm2705, %v3007, 0
  %3017 = vmatpush.bf16.msra.mxu0 0
  %3018 = vmatpush.bf16.msra.mxu0 0
  %3019 = vmatpush.bf16.msra.mxu0 0
  %3020 = vmatpush.bf16.msra.mxu0 0
  %3021 = vmatpush.bf16.msra.mxu0 0
  %3022 = vmatpush.bf16.msra.mxu0 0
  %3023 = vmatpush.bf16.msra.mxu0 0
  %3024 = vmatpush.bf16.msra.mxu0 %v3012
  %3025 = vmatmul.bf16.gmra.mxu0 %v3015
  %v3026 = vpop.f32.mrf.mxu0
  %v3027 = vadd.f32 0.0, %v3026
  %v3028 = vpop.f32.mrf.mxu0
  %v3029 = vadd.f32 0.0, %v3028
  %3030 = vdwg.mxu0
  %v3031 = vadd.f32 %v2985, %v3027
  %v3032 = vadd.f32 %v2986, %v3029
  %s3033 = sld [smem:[#allocation4]]
  %v3034 = vstv %s3033
  %v3035 = vadd.f32 %v3031, %v3034
  %v3036 = vadd.f32 %v3032, %v3034
  %v3037 = vxor.u32 %v3035, 2147483648
  %v3038 = vxor.u32 %v3036, 2147483648
  %v3039 = vmul.f32 %v3037, 1.442695
  %v3040 = vpow.pop %v3039
  %v3041 = vmul.f32 %v3038, 1.442695
  %v3042 = vpow.pop %v3041
  %v3043 = vadd.f32 %v3040, 1.0
  %v3044 = vadd.f32 %v3042, 1.0
  %v3045 = vrcp.pop %v3043
  %v3046 = vmul.f32 %v3043, %v3045
  %v3047 = vsub.f32 1.0, %v3046
  %v3048 = vmul.f32 %v3045, %v3047
  %v3049 = vadd.f32 %v3045, %v3048
  %vm3050 = vweird.f32 %v3043
  %vm3051 = vweird.f32 %v3045
  %vm3052 = vmor %vm3050, %vm3051
  %v3053 = vsel %vm3052, %v3045, %v3049
  %v3054 = vand.u32 2147483647, %v3043
  %vm3055 = vcmp.eq.f32.partialorder %v3054, 8.507059e+37
  %v3056 = vand.u32 %v3043, 2147483648
  %v3057 = vor.u32 1.1754944e-38, %v3056
  %v3058 = vsel %vm3055, %v3057, %v3053
  %v3059 = vmul.f32 1.0, %v3058
  %v3060 = vrcp.pop %v3044
  %v3061 = vmul.f32 %v3044, %v3060
  %v3062 = vsub.f32 1.0, %v3061
  %v3063 = vmul.f32 %v3060, %v3062
  %v3064 = vadd.f32 %v3060, %v3063
  %vm3065 = vweird.f32 %v3044
  %vm3066 = vweird.f32 %v3060
  %vm3067 = vmor %vm3065, %vm3066
  %v3068 = vsel %vm3067, %v3060, %v3064
  %v3069 = vand.u32 2147483647, %v3044
  %vm3070 = vcmp.eq.f32.partialorder %v3069, 8.507059e+37
  %v3071 = vand.u32 %v3044, 2147483648
  %v3072 = vor.u32 1.1754944e-38, %v3071
  %v3073 = vsel %vm3070, %v3072, %v3068
  %v3074 = vmul.f32 1.0, %v3073
  %3076 = vset.pattern.permute.xlu0 0
  %3077 = vperm.xlu0 %3076, %v3059
  %v3078 = vpop.permute.xlu0 %3077
  %3081 = vset.pattern.permute.xlu0 0
  %3082 = vperm.xlu0 %3081, %v3074
  %v3083 = vpop.permute.xlu0 %3082
  %3085 = vset.pattern.permute.xlu0 1
  %3086 = vperm.xlu0 %3085, %v3059
  %v3087 = vpop.permute.xlu0 %3086
  %3089 = vset.pattern.permute.xlu0 1
  %3090 = vperm.xlu0 %3089, %v3074
  %v3091 = vpop.permute.xlu0 %3090
  %3093 = vset.pattern.permute.xlu0 2
  %3094 = vperm.xlu0 %3093, %v3059
  %v3095 = vpop.permute.xlu0 %3094
  %3097 = vset.pattern.permute.xlu0 2
  %3098 = vperm.xlu0 %3097, %v3074
  %v3099 = vpop.permute.xlu0 %3098
  %3101 = vset.pattern.permute.xlu0 3
  %3102 = vperm.xlu0 %3101, %v3059
  %v3103 = vpop.permute.xlu0 %3102
  %3105 = vset.pattern.permute.xlu0 3
  %3106 = vperm.xlu0 %3105, %v3074
  %v3107 = vpop.permute.xlu0 %3106
  %3109 = vset.pattern.permute.xlu0 4
  %3110 = vperm.xlu0 %3109, %v3059
  %v3111 = vpop.permute.xlu0 %3110
  %3113 = vset.pattern.permute.xlu0 4
  %3114 = vperm.xlu0 %3113, %v3074
  %v3115 = vpop.permute.xlu0 %3114
  %3117 = vset.pattern.permute.xlu0 5
  %3118 = vperm.xlu0 %3117, %v3059
  %v3119 = vpop.permute.xlu0 %3118
  %3121 = vset.pattern.permute.xlu0 5
  %3122 = vperm.xlu0 %3121, %v3074
  %v3123 = vpop.permute.xlu0 %3122
  %3125 = vset.pattern.permute.xlu0 6
  %3126 = vperm.xlu0 %3125, %v3059
  %v3127 = vpop.permute.xlu0 %3126
  %3129 = vset.pattern.permute.xlu0 6
  %3130 = vperm.xlu0 %3129, %v3074
  %v3131 = vpop.permute.xlu0 %3130
  %3133 = vset.pattern.permute.xlu0 7
  %3134 = vperm.xlu0 %3133, %v3059
  %v3135 = vpop.permute.xlu0 %3134
  %3137 = vset.pattern.permute.xlu0 7
  %3138 = vperm.xlu0 %3137, %v3074
  %v3139 = vpop.permute.xlu0 %3138
  %v3141 = vsel %vm985, %v3078, %v3087
  %v3142 = vsel %vm985, %v3083, %v3091
  %v3143 = vsel %vm987, %v3141, %v3095
  %v3144 = vsel %vm987, %v3142, %v3099
  %v3145 = vsel %vm989, %v3143, %v3103
  %v3146 = vsel %vm989, %v3144, %v3107
  %v3147 = vsel %vm985, %v3111, %v3119
  %v3148 = vsel %vm985, %v3115, %v3123
  %v3149 = vsel %vm987, %v3147, %v3127
  %v3150 = vsel %vm987, %v3148, %v3131
  %v3151 = vsel %vm989, %v3149, %v3135
  %v3152 = vsel %vm989, %v3150, %v3139
  %v3153 = vmul.f32 %v2401, %v3145
  %v3154 = vmul.f32 %v2402, %v3151
  %v3155 = vmul.f32 %v2403, %v3146
  %v3156 = vmul.f32 %v2404, %v3152
  %v3157 = vadd.f32 %v3153, %v40
  %v3158 = vadd.f32 %v3154, %v41
  %v3159 = vadd.f32 %v3155, %v42
  %v3160 = vadd.f32 %v3156, %v43
  %v3161 = vmax.f32 %v3157, 0.0
  %v3162 = vmax.f32 %v3158, 0.0
  %v3163 = vmax.f32 %v3159, 0.0
  %v3164 = vmax.f32 %v3160, 0.0
  %3165 = vst [vmem:[%s11] sm:$0xff] %v3161
  %3166 = vst [vmem:[%s11 + $0x8] sm:$0xff] %v3162
  %3167 = vst [vmem:[%s11 + $0x10] sm:$0xff] %v3163
  %3168 = vst [vmem:[%s11 + $0x18] sm:$0xff] %v3164
  // Predicated region
  $region46: #{basic_block_forward.1} parent=0 // pred_check
    _
  $region47: #{basic_block_forward.1} parent=0 // pred_check_branch
    %3170 = sbr.rel (0) target = $region49
  $region48: #{basic_block_forward.1} parent=0 // pred_region
    _
  $region49: #{basic_block_forward.1} parent=0 // pred_fallthru
    _
  // Predicated region
  $region50: #{basic_block_forward.1} parent=0 // pred_check
    _
  $region51: #{basic_block_forward.1} parent=0 // pred_check_branch
    %3172 = sbr.rel (0) target = $region53
  $region52: #{basic_block_forward.1} parent=0 // pred_region
    _
  $region53: #{basic_block_forward.1} parent=0 // pred_fallthru
    _

</llo_original>
